<compile_context>
chip_gen: v7x
topology: tpu7x:2x2x1
jax: 0.10.0
libtpu: 0.0.40
codegen_flags: <defaults>
</compile_context>

<pallas_src>
import jax
import jax.numpy as jnp
from jax.experimental import pallas as pl
from jax.experimental.pallas import tpu as pltpu


def _lstm_attn_kernel(xg0_ref,     # (T, Bb, 4H) f32 : x @ W_ih0^T + (b_ih0+b_hh0), gate-permuted
                      w0h_ref,     # (H, 4H)  mxu dtype  W_hh0^T          (gate-permuted cols)
                      w1x_ref,     # (H, 4H)  mxu dtype  W_ih1^T          (gate-permuted cols)
                      w1h_ref,     # (H, 4H)  mxu dtype  W_hh1^T          (gate-permuted cols)
                      b1_ref,      # (1, 4H)  f32        b_ih1 + b_hh1    (gate-permuted)
                      attn_w_ref,  # (H, 1)   mxu dtype
                      attn_b_ref,  # (1, 1)   f32  (SMEM)
                      fc_w_ref,    # (H, 1)   mxu dtype
                      fc_b_ref,    # (1, 1)   f32  (SMEM)
                      out_ref):    # (Bb, 1)  f32
    T, Bb, _ = xg0_ref.shape
    H = w0h_ref.shape[0]
    mxu_dtype = w0h_ref.dtype
    f32 = jnp.float32

    # Weights pinned in VMEM; load once.
    w0h = w0h_ref[...]
    w1x = w1x_ref[...]
    w1h = w1h_ref[...]
    # Hoist the layer-1 bias broadcast out of the (unrolled) time loop.
    b1 = jnp.broadcast_to(b1_ref[...], (Bb, 4 * H))

    def sigmoid(x):
        # Single EUP push per call (vs exp + reciprocal).
        return 0.5 * (jnp.tanh(0.5 * x) + 1.0)

    def gates_to_hc(gates, c_prev):
        # Gate columns are [i | f | o | g]: one contiguous sigmoid slab (3H),
        # one tanh slab (H).  H is a multiple of 128, so every sub-slice below
        # is a lane-aligned 128-lane band.
        sfo = sigmoid(gates[:, 0:3 * H])
        g_g = jnp.tanh(gates[:, 3 * H:4 * H])
        i_g = sfo[:, 0 * H:1 * H]
        f_g = sfo[:, 1 * H:2 * H]
        o_g = sfo[:, 2 * H:3 * H]
        c_new = f_g * c_prev + i_g * g_g          # state math stays f32
        h_new = o_g * jnp.tanh(c_new)
        return h_new, c_new

    # Loop-carried state lives in vregs (no VMEM scratch round-trips).
    h0 = jnp.zeros((Bb, H), f32)
    c0 = jnp.zeros((Bb, H), f32)
    h1 = jnp.zeros((Bb, H), f32)
    c1 = jnp.zeros((Bb, H), f32)

    h1_steps = []
    # Static Python loop == fully unrolled (T is small & static): the scheduler
    # sees across timesteps.
    for t in range(T):
        # Layer-1 recurrent dot depends only on h1_{t-1}: issue it first so it
        # overlaps this step's layer-0 cell (it is off h0_t's critical path).
        rec1 = jnp.dot(h1.astype(mxu_dtype), w1h, preferred_element_type=f32)

        # Layer 0: only the recurrent matmul sits on the serial chain
        # (input projection + b0 precomputed in the wrapper).
        g0 = xg0_ref[t] + jnp.dot(h0.astype(mxu_dtype), w0h,
                                  preferred_element_type=f32)
        h0, c0 = gates_to_hc(g0, c0)

        # Layer 1.
        # TODO(synk): inter-layer dropout omitted (eval semantics).
        g1 = rec1 + jnp.dot(h0.astype(mxu_dtype), w1x,
                            preferred_element_type=f32) + b1
        h1, c1 = gates_to_hc(g1, c1)
        h1_steps.append(h1)

    # ---- Deferred attention (entirely off the recurrence critical path). ----
    h1_seq = jnp.concatenate(h1_steps, axis=0)                       # (T*Bb, H)
    s = jnp.dot(h1_seq.astype(mxu_dtype), attn_w_ref[...],
                preferred_element_type=f32) + attn_b_ref[0, 0]        # (T*Bb, 1)
    s = s.reshape(T, Bb, 1)
    m = jnp.max(s, axis=0, keepdims=True)                             # (1, Bb, 1)
    p = jnp.exp(s - m)                                                # (T, Bb, 1)
    denom = jnp.sum(p, axis=0, keepdims=True)                         # (1, Bb, 1)
    attn = p * pl.reciprocal(denom, approx=True)                      # (T, Bb, 1)

    context = jnp.zeros((Bb, H), f32)
    for t in range(T):
        context = context + attn[t] * h1_steps[t]                     # (Bb, H)

    out = jnp.dot(context.astype(mxu_dtype), fc_w_ref[...],
                  preferred_element_type=f32) + fc_b_ref[0, 0]        # (Bb, 1)
    out_ref[...] = out.astype(out_ref.dtype)


def lstm_with_attention(x, params, *, mxu_dtype=jnp.bfloat16, block_b=None):
    """x: (B, T, Din) float32. Returns (B, 1) float32.

    block_b: rows per grid step.  Default (None) = B, i.e. grid of 1 — best on
    single-TensorCore chips (v5e/v6e), where a batch grid is a serial loop.
    On v7x pass block_b = B // 2 so the "parallel" axis can shard over the
    2 TensorCores.
    """
    B, T, Din = x.shape
    H = params["whh0"].shape[1]
    if block_b is None:
        block_b = B
    assert B % block_b == 0 and (block_b == B or block_b % 8 == 0)

    f32 = jnp.float32

    def permute_gates(w):
        # torch nn.LSTM gate order along the 4H axis is [i, f, g, o];
        # kernel wants [i, f, o, g] (contiguous sigmoid slab + tanh slab).
        i, f, g, o = jnp.split(w, 4, axis=-1)
        return jnp.concatenate([i, f, o, g], axis=-1)

    # ---- Layer-0 input projection done in the wrapper (off the recurrence). --
    w0x = permute_gates(params["wih0"].T).astype(mxu_dtype)           # (Din, 4H)
    b0 = permute_gates((params["bih0"] + params["bhh0"])
                       .reshape(1, 4 * H)).astype(f32)                # (1, 4H)
    x_tm = jnp.transpose(x, (1, 0, 2)).reshape(T * B, Din)            # t-major
    xg0 = (jnp.dot(x_tm.astype(mxu_dtype), w0x, preferred_element_type=f32)
           + b0).reshape(T, B, 4 * H)                                 # lane-dense

    # ---- Recurrent / head weights: transpose, gate-permute, cast. -----------
    w0h = permute_gates(params["whh0"].T).astype(mxu_dtype)           # (H, 4H)
    w1x = permute_gates(params["wih1"].T).astype(mxu_dtype)           # (H, 4H)
    w1h = permute_gates(params["whh1"].T).astype(mxu_dtype)           # (H, 4H)
    b1 = permute_gates((params["bih1"] + params["bhh1"])
                       .reshape(1, 4 * H)).astype(f32)                # (1, 4H)
    attn_w = params["attn_w"].reshape(1, H).T.astype(mxu_dtype)       # (H, 1)
    attn_b = params["attn_b"].reshape(1, 1).astype(f32)
    fc_w = params["fc_w"].reshape(1, H).T.astype(mxu_dtype)           # (H, 1)
    fc_b = params["fc_b"].reshape(1, 1).astype(f32)

    vmem = pltpu.MemorySpace.VMEM
    smem = pltpu.MemorySpace.SMEM

    def pinned(shape):   # grid-invariant block: resident in VMEM across the grid
        return pl.BlockSpec(shape, lambda i: (0, 0), memory_space=vmem)

    in_specs = [
        pl.BlockSpec((T, block_b, 4 * H), lambda i: (0, i, 0),
                     memory_space=vmem),                              # xg0
        pinned((H, 4 * H)),                                           # w0h
        pinned((H, 4 * H)),                                           # w1x
        pinned((H, 4 * H)),                                           # w1h
        pinned((1, 4 * H)),                                           # b1
        pinned((H, 1)),                                               # attn_w
        pl.BlockSpec(memory_space=smem),                              # attn_b
        pinned((H, 1)),                                               # fc_w
        pl.BlockSpec(memory_space=smem),                              # fc_b
    ]
    out_specs = pl.BlockSpec((block_b, 1), lambda i: (i, 0), memory_space=vmem)

    out = pl.pallas_call(
        _lstm_attn_kernel,
        out_shape=jax.ShapeDtypeStruct((B, 1), f32),
        grid=(B // block_b,),
        in_specs=in_specs,
        out_specs=out_specs,
        compiler_params=pltpu.CompilerParams(
            dimension_semantics=("parallel",)),
    )(xg0, w0h, w1x, w1h, b1, attn_w, attn_b, fc_w, fc_b)
    return out


def _reference(x, params, mxu_dtype=jnp.float32):
    """Pure-JAX reference (torch eval semantics).

    `mxu_dtype` mirrors the kernel's matmul-operand precision:
    float32 == exact torch parity; bfloat16 matches the kernel's MXU casts.
    State / elementwise math stays float32 either way.
    """
    B, T, Din = x.shape
    H = params["whh0"].shape[1]

    def mm(a, w):  # a @ w.T with operand cast, f32 accumulation
        return jnp.dot(a.astype(mxu_dtype), w.T.astype(mxu_dtype),
                       preferred_element_type=jnp.float32)

    def cell(x_t, h, c, wih, whh, bih, bhh):
        g = mm(x_t, wih) + mm(h, whh) + bih + bhh
        i = jax.nn.sigmoid(g[:, 0 * H:1 * H])
        f = jax.nn.sigmoid(g[:, 1 * H:2 * H])
        gg = jnp.tanh(g[:, 2 * H:3 * H])
        o = jax.nn.sigmoid(g[:, 3 * H:4 * H])
        c = f * c + i * gg
        h = o * jnp.tanh(c)
        return h, c

    h0 = jnp.zeros((B, H)); c0 = jnp.zeros((B, H))
    h1 = jnp.zeros((B, H)); c1 = jnp.zeros((B, H))
    outs = []
    for t in range(T):
        h0, c0 = cell(x[:, t, :], h0, c0, params["wih0"], params["whh0"],
                      params["bih0"], params["bhh0"])
        h1, c1 = cell(h0, h1, c1, params["wih1"], params["whh1"],
                      params["bih1"], params["bhh1"])
        outs.append(h1)
    lstm_out = jnp.stack(outs, axis=1)                                  # (B, T, H)
    scores = (mm(lstm_out.reshape(B * T, H), params["attn_w"])
              + params["attn_b"]).reshape(B, T, 1)
    attn = jax.nn.softmax(scores, axis=1)
    context = jnp.sum(attn * lstm_out, axis=1)                          # (B, H)
    return mm(context, params["fc_w"]) + params["fc_b"]                 # (B, 1)


def _init_params(key, input_dim, hidden_dim):
    H = hidden_dim
    k = 1.0 / jnp.sqrt(jnp.float32(H))
    keys = jax.random.split(key, 12)
    u = lambda kk, shape: jax.random.uniform(kk, shape, jnp.float32, -k, k)
    return {
        "wih0": u(keys[0], (4 * H, input_dim)),
        "whh0": u(keys[1], (4 * H, H)),
        "bih0": u(keys[2], (4 * H,)),
        "bhh0": u(keys[3], (4 * H,)),
        "wih1": u(keys[4], (4 * H, H)),
        "whh1": u(keys[5], (4 * H, H)),
        "bih1": u(keys[6], (4 * H,)),
        "bhh1": u(keys[7], (4 * H,)),
        "attn_w": u(keys[8], (1, H)),
        "attn_b": u(keys[9], (1,)),
        "fc_w": u(keys[10], (1, H)),
        "fc_b": u(keys[11], (1,)),
    }


if __name__ == "__main__":
    # H matches the module default (hidden_dim=128) so gate slices are lane-aligned.
    B, T, Din, H = 16, 8, 4, 128

    key = jax.random.PRNGKey(0)
    kx, kp = jax.random.split(key)
    x = jax.random.normal(kx, (B, T, Din), dtype=jnp.float32)
    params = _init_params(kp, Din, H)

    mxu_dtype = jnp.bfloat16  # bf16 matmul operands (full-rate MXU), f32 state
    # Default block_b = B  -> grid of 1 (best for single-TC v5e/v6e).
    # On v7x, pass block_b=B//2 to shard the batch over both TensorCores.
    out = lstm_with_attention(x, params, mxu_dtype=mxu_dtype)
    out = jax.block_until_ready(out)

    ref = _reference(x, params, mxu_dtype=mxu_dtype)
    assert out.shape == (B, 1)
    # Tolerance covers approx-reciprocal, the tanh-form sigmoid, and bf16
    # operand-rounding / op-ordering noise.
    assert jnp.allclose(out, ref, rtol=1e-2, atol=1e-2), (out, ref)

    print("KERNEL_OK")
</pallas_src>

<mosaic_0001>
module attributes {stable_mosaic.version = 11 : i64} {
  func.func @_lstm_attn_kernel(%arg0: i32, %arg1: memref<8x16x512xf32, #tpu.memory_space<vmem>>, %arg2: memref<128x512xbf16, #tpu.memory_space<vmem>>, %arg3: memref<128x512xbf16, #tpu.memory_space<vmem>>, %arg4: memref<128x512xbf16, #tpu.memory_space<vmem>>, %arg5: memref<1x512xf32, #tpu.memory_space<vmem>>, %arg6: memref<128x1xbf16, #tpu.memory_space<vmem>>, %arg7: memref<1x1xf32, #tpu.memory_space<smem>>, %arg8: memref<128x1xbf16, #tpu.memory_space<vmem>>, %arg9: memref<1x1xf32, #tpu.memory_space<smem>>, %arg10: memref<16x1xf32, #tpu.memory_space<vmem>>) attributes {dimension_semantics = [#tpu.dimension_semantics<parallel>], iteration_bounds = array<i64: 1>, scalar_prefetch = 0 : i64, scratch_operands = 0 : i64, tpu.core_type = #tpu.core_type<tc>, window_params = [{transform_indices = @transform_0, window_bounds = array<i64: 8, 16, 512>}, {pipeline_mode = #tpu.pipeline_mode<synchronous>, transform_indices = @transform_1, window_bounds = array<i64: 128, 512>}, {pipeline_mode = #tpu.pipeline_mode<synchronous>, transform_indices = @transform_2, window_bounds = array<i64: 128, 512>}, {pipeline_mode = #tpu.pipeline_mode<synchronous>, transform_indices = @transform_3, window_bounds = array<i64: 128, 512>}, {pipeline_mode = #tpu.pipeline_mode<synchronous>, transform_indices = @transform_4, window_bounds = array<i64: 1, 512>}, {pipeline_mode = #tpu.pipeline_mode<synchronous>, transform_indices = @transform_5, window_bounds = array<i64: 128, 1>}, {transform_indices = @transform_6, window_bounds = array<i64: 1, 1>}, {pipeline_mode = #tpu.pipeline_mode<synchronous>, transform_indices = @transform_7, window_bounds = array<i64: 128, 1>}, {transform_indices = @transform_8, window_bounds = array<i64: 1, 1>}, {transform_indices = @transform_9, window_bounds = array<i64: 16, 1>}]} {
    %c0 = arith.constant 0 : index
    %c0_0 = arith.constant 0 : index
    %0 = vector.load %arg2[%c0, %c0_0] : memref<128x512xbf16, #tpu.memory_space<vmem>>, vector<128x512xbf16>
    %c0_1 = arith.constant 0 : index
    %c0_2 = arith.constant 0 : index
    %1 = vector.load %arg3[%c0_1, %c0_2] : memref<128x512xbf16, #tpu.memory_space<vmem>>, vector<128x512xbf16>
    %c0_3 = arith.constant 0 : index
    %c0_4 = arith.constant 0 : index
    %2 = vector.load %arg4[%c0_3, %c0_4] : memref<128x512xbf16, #tpu.memory_space<vmem>>, vector<128x512xbf16>
    %c0_5 = arith.constant 0 : index
    %c0_6 = arith.constant 0 : index
    %3 = vector.load %arg5[%c0_5, %c0_6] : memref<1x512xf32, #tpu.memory_space<vmem>>, vector<1x512xf32>
    %4 = vector.shape_cast %3 : vector<1x512xf32> to vector<1x512xf32>
    %5 = vector.broadcast %4 : vector<1x512xf32> to vector<16x512xf32>
    %cst = arith.constant 0.000000e+00 : f32
    %6 = vector.broadcast %cst : f32 to vector<16x128xf32>
    %cst_7 = arith.constant 0.000000e+00 : f32
    %7 = vector.broadcast %cst_7 : f32 to vector<16x128xf32>
    %cst_8 = arith.constant 0.000000e+00 : f32
    %8 = vector.broadcast %cst_8 : f32 to vector<16x128xf32>
    %cst_9 = arith.constant 0.000000e+00 : f32
    %9 = vector.broadcast %cst_9 : f32 to vector<16x128xf32>
    %10 = arith.truncf %8 : vector<16x128xf32> to vector<16x128xbf16>
    %cst_10 = arith.constant dense<0.000000e+00> : vector<16x512xf32>
    %11 = tpu.matmul %10, %2, %cst_10 {dimension_numbers = #tpu.dot_dimension_numbers<[1], [0], [0], [1], [0, 0, 1, 1], [], []>} : vector<16x128xbf16>, vector<128x512xbf16>, vector<16x512xf32> -> vector<16x512xf32>
    %c0_11 = arith.constant 0 : index
    %c0_12 = arith.constant 0 : index
    %c0_13 = arith.constant 0 : index
    %12 = vector.load %arg1[%c0_11, %c0_12, %c0_13] : memref<8x16x512xf32, #tpu.memory_space<vmem>>, vector<1x16x512xf32>
    %13 = vector.shape_cast %12 : vector<1x16x512xf32> to vector<16x512xf32>
    %14 = arith.truncf %6 : vector<16x128xf32> to vector<16x128xbf16>
    %cst_14 = arith.constant dense<0.000000e+00> : vector<16x512xf32>
    %15 = tpu.matmul %14, %0, %cst_14 {dimension_numbers = #tpu.dot_dimension_numbers<[1], [0], [0], [1], [0, 0, 1, 1], [], []>} : vector<16x128xbf16>, vector<128x512xbf16>, vector<16x512xf32> -> vector<16x512xf32>
    %16 = arith.addf %13, %15 : vector<16x512xf32>
    %17 = vector.extract_strided_slice %16 {offsets = [0, 0], sizes = [16, 384], strides = [1, 1]} : vector<16x512xf32> to vector<16x384xf32>
    %cst_15 = arith.constant 5.000000e-01 : f32
    %18 = vector.broadcast %cst_15 : f32 to vector<16x384xf32>
    %19 = arith.mulf %18, %17 : vector<16x384xf32>
    %20 = math.tanh %19 : vector<16x384xf32>
    %cst_16 = arith.constant 1.000000e+00 : f32
    %21 = vector.broadcast %cst_16 : f32 to vector<16x384xf32>
    %22 = arith.addf %20, %21 : vector<16x384xf32>
    %cst_17 = arith.constant 5.000000e-01 : f32
    %23 = vector.broadcast %cst_17 : f32 to vector<16x384xf32>
    %24 = arith.mulf %23, %22 : vector<16x384xf32>
    %25 = vector.extract_strided_slice %16 {offsets = [0, 384], sizes = [16, 128], strides = [1, 1]} : vector<16x512xf32> to vector<16x128xf32>
    %26 = math.tanh %25 : vector<16x128xf32>
    %27 = vector.extract_strided_slice %24 {offsets = [0, 0], sizes = [16, 128], strides = [1, 1]} : vector<16x384xf32> to vector<16x128xf32>
    %28 = vector.extract_strided_slice %24 {offsets = [0, 128], sizes = [16, 128], strides = [1, 1]} : vector<16x384xf32> to vector<16x128xf32>
    %29 = vector.extract_strided_slice %24 {offsets = [0, 256], sizes = [16, 128], strides = [1, 1]} : vector<16x384xf32> to vector<16x128xf32>
    %30 = arith.mulf %28, %7 : vector<16x128xf32>
    %31 = arith.mulf %27, %26 : vector<16x128xf32>
    %32 = arith.addf %30, %31 : vector<16x128xf32>
    %33 = math.tanh %32 : vector<16x128xf32>
    %34 = arith.mulf %29, %33 : vector<16x128xf32>
    %35 = arith.truncf %34 : vector<16x128xf32> to vector<16x128xbf16>
    %cst_18 = arith.constant dense<0.000000e+00> : vector<16x512xf32>
    %36 = tpu.matmul %35, %1, %cst_18 {dimension_numbers = #tpu.dot_dimension_numbers<[1], [0], [0], [1], [0, 0, 1, 1], [], []>} : vector<16x128xbf16>, vector<128x512xbf16>, vector<16x512xf32> -> vector<16x512xf32>
    %37 = arith.addf %11, %36 : vector<16x512xf32>
    %38 = arith.addf %37, %5 : vector<16x512xf32>
    %39 = vector.extract_strided_slice %38 {offsets = [0, 0], sizes = [16, 384], strides = [1, 1]} : vector<16x512xf32> to vector<16x384xf32>
    %cst_19 = arith.constant 5.000000e-01 : f32
    %40 = vector.broadcast %cst_19 : f32 to vector<16x384xf32>
    %41 = arith.mulf %40, %39 : vector<16x384xf32>
    %42 = math.tanh %41 : vector<16x384xf32>
    %cst_20 = arith.constant 1.000000e+00 : f32
    %43 = vector.broadcast %cst_20 : f32 to vector<16x384xf32>
    %44 = arith.addf %42, %43 : vector<16x384xf32>
    %cst_21 = arith.constant 5.000000e-01 : f32
    %45 = vector.broadcast %cst_21 : f32 to vector<16x384xf32>
    %46 = arith.mulf %45, %44 : vector<16x384xf32>
    %47 = vector.extract_strided_slice %38 {offsets = [0, 384], sizes = [16, 128], strides = [1, 1]} : vector<16x512xf32> to vector<16x128xf32>
    %48 = math.tanh %47 : vector<16x128xf32>
    %49 = vector.extract_strided_slice %46 {offsets = [0, 0], sizes = [16, 128], strides = [1, 1]} : vector<16x384xf32> to vector<16x128xf32>
    %50 = vector.extract_strided_slice %46 {offsets = [0, 128], sizes = [16, 128], strides = [1, 1]} : vector<16x384xf32> to vector<16x128xf32>
    %51 = vector.extract_strided_slice %46 {offsets = [0, 256], sizes = [16, 128], strides = [1, 1]} : vector<16x384xf32> to vector<16x128xf32>
    %52 = arith.mulf %50, %9 : vector<16x128xf32>
    %53 = arith.mulf %49, %48 : vector<16x128xf32>
    %54 = arith.addf %52, %53 : vector<16x128xf32>
    %55 = math.tanh %54 : vector<16x128xf32>
    %56 = arith.mulf %51, %55 : vector<16x128xf32>
    %57 = arith.truncf %56 : vector<16x128xf32> to vector<16x128xbf16>
    %cst_22 = arith.constant dense<0.000000e+00> : vector<16x512xf32>
    %58 = tpu.matmul %57, %2, %cst_22 {dimension_numbers = #tpu.dot_dimension_numbers<[1], [0], [0], [1], [0, 0, 1, 1], [], []>} : vector<16x128xbf16>, vector<128x512xbf16>, vector<16x512xf32> -> vector<16x512xf32>
    %c1 = arith.constant 1 : index
    %c0_23 = arith.constant 0 : index
    %c0_24 = arith.constant 0 : index
    %59 = vector.load %arg1[%c1, %c0_23, %c0_24] : memref<8x16x512xf32, #tpu.memory_space<vmem>>, vector<1x16x512xf32>
    %60 = vector.shape_cast %59 : vector<1x16x512xf32> to vector<16x512xf32>
    %61 = arith.truncf %34 : vector<16x128xf32> to vector<16x128xbf16>
    %cst_25 = arith.constant dense<0.000000e+00> : vector<16x512xf32>
    %62 = tpu.matmul %61, %0, %cst_25 {dimension_numbers = #tpu.dot_dimension_numbers<[1], [0], [0], [1], [0, 0, 1, 1], [], []>} : vector<16x128xbf16>, vector<128x512xbf16>, vector<16x512xf32> -> vector<16x512xf32>
    %63 = arith.addf %60, %62 : vector<16x512xf32>
    %64 = vector.extract_strided_slice %63 {offsets = [0, 0], sizes = [16, 384], strides = [1, 1]} : vector<16x512xf32> to vector<16x384xf32>
    %cst_26 = arith.constant 5.000000e-01 : f32
    %65 = vector.broadcast %cst_26 : f32 to vector<16x384xf32>
    %66 = arith.mulf %65, %64 : vector<16x384xf32>
    %67 = math.tanh %66 : vector<16x384xf32>
    %cst_27 = arith.constant 1.000000e+00 : f32
    %68 = vector.broadcast %cst_27 : f32 to vector<16x384xf32>
    %69 = arith.addf %67, %68 : vector<16x384xf32>
    %cst_28 = arith.constant 5.000000e-01 : f32
    %70 = vector.broadcast %cst_28 : f32 to vector<16x384xf32>
    %71 = arith.mulf %70, %69 : vector<16x384xf32>
    %72 = vector.extract_strided_slice %63 {offsets = [0, 384], sizes = [16, 128], strides = [1, 1]} : vector<16x512xf32> to vector<16x128xf32>
    %73 = math.tanh %72 : vector<16x128xf32>
    %74 = vector.extract_strided_slice %71 {offsets = [0, 0], sizes = [16, 128], strides = [1, 1]} : vector<16x384xf32> to vector<16x128xf32>
    %75 = vector.extract_strided_slice %71 {offsets = [0, 128], sizes = [16, 128], strides = [1, 1]} : vector<16x384xf32> to vector<16x128xf32>
    %76 = vector.extract_strided_slice %71 {offsets = [0, 256], sizes = [16, 128], strides = [1, 1]} : vector<16x384xf32> to vector<16x128xf32>
    %77 = arith.mulf %75, %32 : vector<16x128xf32>
    %78 = arith.mulf %74, %73 : vector<16x128xf32>
    %79 = arith.addf %77, %78 : vector<16x128xf32>
    %80 = math.tanh %79 : vector<16x128xf32>
    %81 = arith.mulf %76, %80 : vector<16x128xf32>
    %82 = arith.truncf %81 : vector<16x128xf32> to vector<16x128xbf16>
    %cst_29 = arith.constant dense<0.000000e+00> : vector<16x512xf32>
    %83 = tpu.matmul %82, %1, %cst_29 {dimension_numbers = #tpu.dot_dimension_numbers<[1], [0], [0], [1], [0, 0, 1, 1], [], []>} : vector<16x128xbf16>, vector<128x512xbf16>, vector<16x512xf32> -> vector<16x512xf32>
    %84 = arith.addf %58, %83 : vector<16x512xf32>
    %85 = arith.addf %84, %5 : vector<16x512xf32>
    %86 = vector.extract_strided_slice %85 {offsets = [0, 0], sizes = [16, 384], strides = [1, 1]} : vector<16x512xf32> to vector<16x384xf32>
    %cst_30 = arith.constant 5.000000e-01 : f32
    %87 = vector.broadcast %cst_30 : f32 to vector<16x384xf32>
    %88 = arith.mulf %87, %86 : vector<16x384xf32>
    %89 = math.tanh %88 : vector<16x384xf32>
    %cst_31 = arith.constant 1.000000e+00 : f32
    %90 = vector.broadcast %cst_31 : f32 to vector<16x384xf32>
    %91 = arith.addf %89, %90 : vector<16x384xf32>
    %cst_32 = arith.constant 5.000000e-01 : f32
    %92 = vector.broadcast %cst_32 : f32 to vector<16x384xf32>
    %93 = arith.mulf %92, %91 : vector<16x384xf32>
    %94 = vector.extract_strided_slice %85 {offsets = [0, 384], sizes = [16, 128], strides = [1, 1]} : vector<16x512xf32> to vector<16x128xf32>
    %95 = math.tanh %94 : vector<16x128xf32>
    %96 = vector.extract_strided_slice %93 {offsets = [0, 0], sizes = [16, 128], strides = [1, 1]} : vector<16x384xf32> to vector<16x128xf32>
    %97 = vector.extract_strided_slice %93 {offsets = [0, 128], sizes = [16, 128], strides = [1, 1]} : vector<16x384xf32> to vector<16x128xf32>
    %98 = vector.extract_strided_slice %93 {offsets = [0, 256], sizes = [16, 128], strides = [1, 1]} : vector<16x384xf32> to vector<16x128xf32>
    %99 = arith.mulf %97, %54 : vector<16x128xf32>
    %100 = arith.mulf %96, %95 : vector<16x128xf32>
    %101 = arith.addf %99, %100 : vector<16x128xf32>
    %102 = math.tanh %101 : vector<16x128xf32>
    %103 = arith.mulf %98, %102 : vector<16x128xf32>
    %104 = arith.truncf %103 : vector<16x128xf32> to vector<16x128xbf16>
    %cst_33 = arith.constant dense<0.000000e+00> : vector<16x512xf32>
    %105 = tpu.matmul %104, %2, %cst_33 {dimension_numbers = #tpu.dot_dimension_numbers<[1], [0], [0], [1], [0, 0, 1, 1], [], []>} : vector<16x128xbf16>, vector<128x512xbf16>, vector<16x512xf32> -> vector<16x512xf32>
    %c2 = arith.constant 2 : index
    %c0_34 = arith.constant 0 : index
    %c0_35 = arith.constant 0 : index
    %106 = vector.load %arg1[%c2, %c0_34, %c0_35] : memref<8x16x512xf32, #tpu.memory_space<vmem>>, vector<1x16x512xf32>
    %107 = vector.shape_cast %106 : vector<1x16x512xf32> to vector<16x512xf32>
    %108 = arith.truncf %81 : vector<16x128xf32> to vector<16x128xbf16>
    %cst_36 = arith.constant dense<0.000000e+00> : vector<16x512xf32>
    %109 = tpu.matmul %108, %0, %cst_36 {dimension_numbers = #tpu.dot_dimension_numbers<[1], [0], [0], [1], [0, 0, 1, 1], [], []>} : vector<16x128xbf16>, vector<128x512xbf16>, vector<16x512xf32> -> vector<16x512xf32>
    %110 = arith.addf %107, %109 : vector<16x512xf32>
    %111 = vector.extract_strided_slice %110 {offsets = [0, 0], sizes = [16, 384], strides = [1, 1]} : vector<16x512xf32> to vector<16x384xf32>
    %cst_37 = arith.constant 5.000000e-01 : f32
    %112 = vector.broadcast %cst_37 : f32 to vector<16x384xf32>
    %113 = arith.mulf %112, %111 : vector<16x384xf32>
    %114 = math.tanh %113 : vector<16x384xf32>
    %cst_38 = arith.constant 1.000000e+00 : f32
    %115 = vector.broadcast %cst_38 : f32 to vector<16x384xf32>
    %116 = arith.addf %114, %115 : vector<16x384xf32>
    %cst_39 = arith.constant 5.000000e-01 : f32
    %117 = vector.broadcast %cst_39 : f32 to vector<16x384xf32>
    %118 = arith.mulf %117, %116 : vector<16x384xf32>
    %119 = vector.extract_strided_slice %110 {offsets = [0, 384], sizes = [16, 128], strides = [1, 1]} : vector<16x512xf32> to vector<16x128xf32>
    %120 = math.tanh %119 : vector<16x128xf32>
    %121 = vector.extract_strided_slice %118 {offsets = [0, 0], sizes = [16, 128], strides = [1, 1]} : vector<16x384xf32> to vector<16x128xf32>
    %122 = vector.extract_strided_slice %118 {offsets = [0, 128], sizes = [16, 128], strides = [1, 1]} : vector<16x384xf32> to vector<16x128xf32>
    %123 = vector.extract_strided_slice %118 {offsets = [0, 256], sizes = [16, 128], strides = [1, 1]} : vector<16x384xf32> to vector<16x128xf32>
    %124 = arith.mulf %122, %79 : vector<16x128xf32>
    %125 = arith.mulf %121, %120 : vector<16x128xf32>
    %126 = arith.addf %124, %125 : vector<16x128xf32>
    %127 = math.tanh %126 : vector<16x128xf32>
    %128 = arith.mulf %123, %127 : vector<16x128xf32>
    %129 = arith.truncf %128 : vector<16x128xf32> to vector<16x128xbf16>
    %cst_40 = arith.constant dense<0.000000e+00> : vector<16x512xf32>
    %130 = tpu.matmul %129, %1, %cst_40 {dimension_numbers = #tpu.dot_dimension_numbers<[1], [0], [0], [1], [0, 0, 1, 1], [], []>} : vector<16x128xbf16>, vector<128x512xbf16>, vector<16x512xf32> -> vector<16x512xf32>
    %131 = arith.addf %105, %130 : vector<16x512xf32>
    %132 = arith.addf %131, %5 : vector<16x512xf32>
    %133 = vector.extract_strided_slice %132 {offsets = [0, 0], sizes = [16, 384], strides = [1, 1]} : vector<16x512xf32> to vector<16x384xf32>
    %cst_41 = arith.constant 5.000000e-01 : f32
    %134 = vector.broadcast %cst_41 : f32 to vector<16x384xf32>
    %135 = arith.mulf %134, %133 : vector<16x384xf32>
    %136 = math.tanh %135 : vector<16x384xf32>
    %cst_42 = arith.constant 1.000000e+00 : f32
    %137 = vector.broadcast %cst_42 : f32 to vector<16x384xf32>
    %138 = arith.addf %136, %137 : vector<16x384xf32>
    %cst_43 = arith.constant 5.000000e-01 : f32
    %139 = vector.broadcast %cst_43 : f32 to vector<16x384xf32>
    %140 = arith.mulf %139, %138 : vector<16x384xf32>
    %141 = vector.extract_strided_slice %132 {offsets = [0, 384], sizes = [16, 128], strides = [1, 1]} : vector<16x512xf32> to vector<16x128xf32>
    %142 = math.tanh %141 : vector<16x128xf32>
    %143 = vector.extract_strided_slice %140 {offsets = [0, 0], sizes = [16, 128], strides = [1, 1]} : vector<16x384xf32> to vector<16x128xf32>
    %144 = vector.extract_strided_slice %140 {offsets = [0, 128], sizes = [16, 128], strides = [1, 1]} : vector<16x384xf32> to vector<16x128xf32>
    %145 = vector.extract_strided_slice %140 {offsets = [0, 256], sizes = [16, 128], strides = [1, 1]} : vector<16x384xf32> to vector<16x128xf32>
    %146 = arith.mulf %144, %101 : vector<16x128xf32>
    %147 = arith.mulf %143, %142 : vector<16x128xf32>
    %148 = arith.addf %146, %147 : vector<16x128xf32>
    %149 = math.tanh %148 : vector<16x128xf32>
    %150 = arith.mulf %145, %149 : vector<16x128xf32>
    %151 = arith.truncf %150 : vector<16x128xf32> to vector<16x128xbf16>
    %cst_44 = arith.constant dense<0.000000e+00> : vector<16x512xf32>
    %152 = tpu.matmul %151, %2, %cst_44 {dimension_numbers = #tpu.dot_dimension_numbers<[1], [0], [0], [1], [0, 0, 1, 1], [], []>} : vector<16x128xbf16>, vector<128x512xbf16>, vector<16x512xf32> -> vector<16x512xf32>
    %c3 = arith.constant 3 : index
    %c0_45 = arith.constant 0 : index
    %c0_46 = arith.constant 0 : index
    %153 = vector.load %arg1[%c3, %c0_45, %c0_46] : memref<8x16x512xf32, #tpu.memory_space<vmem>>, vector<1x16x512xf32>
    %154 = vector.shape_cast %153 : vector<1x16x512xf32> to vector<16x512xf32>
    %155 = arith.truncf %128 : vector<16x128xf32> to vector<16x128xbf16>
    %cst_47 = arith.constant dense<0.000000e+00> : vector<16x512xf32>
    %156 = tpu.matmul %155, %0, %cst_47 {dimension_numbers = #tpu.dot_dimension_numbers<[1], [0], [0], [1], [0, 0, 1, 1], [], []>} : vector<16x128xbf16>, vector<128x512xbf16>, vector<16x512xf32> -> vector<16x512xf32>
    %157 = arith.addf %154, %156 : vector<16x512xf32>
    %158 = vector.extract_strided_slice %157 {offsets = [0, 0], sizes = [16, 384], strides = [1, 1]} : vector<16x512xf32> to vector<16x384xf32>
    %cst_48 = arith.constant 5.000000e-01 : f32
    %159 = vector.broadcast %cst_48 : f32 to vector<16x384xf32>
    %160 = arith.mulf %159, %158 : vector<16x384xf32>
    %161 = math.tanh %160 : vector<16x384xf32>
    %cst_49 = arith.constant 1.000000e+00 : f32
    %162 = vector.broadcast %cst_49 : f32 to vector<16x384xf32>
    %163 = arith.addf %161, %162 : vector<16x384xf32>
    %cst_50 = arith.constant 5.000000e-01 : f32
    %164 = vector.broadcast %cst_50 : f32 to vector<16x384xf32>
    %165 = arith.mulf %164, %163 : vector<16x384xf32>
    %166 = vector.extract_strided_slice %157 {offsets = [0, 384], sizes = [16, 128], strides = [1, 1]} : vector<16x512xf32> to vector<16x128xf32>
    %167 = math.tanh %166 : vector<16x128xf32>
    %168 = vector.extract_strided_slice %165 {offsets = [0, 0], sizes = [16, 128], strides = [1, 1]} : vector<16x384xf32> to vector<16x128xf32>
    %169 = vector.extract_strided_slice %165 {offsets = [0, 128], sizes = [16, 128], strides = [1, 1]} : vector<16x384xf32> to vector<16x128xf32>
    %170 = vector.extract_strided_slice %165 {offsets = [0, 256], sizes = [16, 128], strides = [1, 1]} : vector<16x384xf32> to vector<16x128xf32>
    %171 = arith.mulf %169, %126 : vector<16x128xf32>
    %172 = arith.mulf %168, %167 : vector<16x128xf32>
    %173 = arith.addf %171, %172 : vector<16x128xf32>
    %174 = math.tanh %173 : vector<16x128xf32>
    %175 = arith.mulf %170, %174 : vector<16x128xf32>
    %176 = arith.truncf %175 : vector<16x128xf32> to vector<16x128xbf16>
    %cst_51 = arith.constant dense<0.000000e+00> : vector<16x512xf32>
    %177 = tpu.matmul %176, %1, %cst_51 {dimension_numbers = #tpu.dot_dimension_numbers<[1], [0], [0], [1], [0, 0, 1, 1], [], []>} : vector<16x128xbf16>, vector<128x512xbf16>, vector<16x512xf32> -> vector<16x512xf32>
    %178 = arith.addf %152, %177 : vector<16x512xf32>
    %179 = arith.addf %178, %5 : vector<16x512xf32>
    %180 = vector.extract_strided_slice %179 {offsets = [0, 0], sizes = [16, 384], strides = [1, 1]} : vector<16x512xf32> to vector<16x384xf32>
    %cst_52 = arith.constant 5.000000e-01 : f32
    %181 = vector.broadcast %cst_52 : f32 to vector<16x384xf32>
    %182 = arith.mulf %181, %180 : vector<16x384xf32>
    %183 = math.tanh %182 : vector<16x384xf32>
    %cst_53 = arith.constant 1.000000e+00 : f32
    %184 = vector.broadcast %cst_53 : f32 to vector<16x384xf32>
    %185 = arith.addf %183, %184 : vector<16x384xf32>
    %cst_54 = arith.constant 5.000000e-01 : f32
    %186 = vector.broadcast %cst_54 : f32 to vector<16x384xf32>
    %187 = arith.mulf %186, %185 : vector<16x384xf32>
    %188 = vector.extract_strided_slice %179 {offsets = [0, 384], sizes = [16, 128], strides = [1, 1]} : vector<16x512xf32> to vector<16x128xf32>
    %189 = math.tanh %188 : vector<16x128xf32>
    %190 = vector.extract_strided_slice %187 {offsets = [0, 0], sizes = [16, 128], strides = [1, 1]} : vector<16x384xf32> to vector<16x128xf32>
    %191 = vector.extract_strided_slice %187 {offsets = [0, 128], sizes = [16, 128], strides = [1, 1]} : vector<16x384xf32> to vector<16x128xf32>
    %192 = vector.extract_strided_slice %187 {offsets = [0, 256], sizes = [16, 128], strides = [1, 1]} : vector<16x384xf32> to vector<16x128xf32>
    %193 = arith.mulf %191, %148 : vector<16x128xf32>
    %194 = arith.mulf %190, %189 : vector<16x128xf32>
    %195 = arith.addf %193, %194 : vector<16x128xf32>
    %196 = math.tanh %195 : vector<16x128xf32>
    %197 = arith.mulf %192, %196 : vector<16x128xf32>
    %198 = arith.truncf %197 : vector<16x128xf32> to vector<16x128xbf16>
    %cst_55 = arith.constant dense<0.000000e+00> : vector<16x512xf32>
    %199 = tpu.matmul %198, %2, %cst_55 {dimension_numbers = #tpu.dot_dimension_numbers<[1], [0], [0], [1], [0, 0, 1, 1], [], []>} : vector<16x128xbf16>, vector<128x512xbf16>, vector<16x512xf32> -> vector<16x512xf32>
    %c4 = arith.constant 4 : index
    %c0_56 = arith.constant 0 : index
    %c0_57 = arith.constant 0 : index
    %200 = vector.load %arg1[%c4, %c0_56, %c0_57] : memref<8x16x512xf32, #tpu.memory_space<vmem>>, vector<1x16x512xf32>
    %201 = vector.shape_cast %200 : vector<1x16x512xf32> to vector<16x512xf32>
    %202 = arith.truncf %175 : vector<16x128xf32> to vector<16x128xbf16>
    %cst_58 = arith.constant dense<0.000000e+00> : vector<16x512xf32>
    %203 = tpu.matmul %202, %0, %cst_58 {dimension_numbers = #tpu.dot_dimension_numbers<[1], [0], [0], [1], [0, 0, 1, 1], [], []>} : vector<16x128xbf16>, vector<128x512xbf16>, vector<16x512xf32> -> vector<16x512xf32>
    %204 = arith.addf %201, %203 : vector<16x512xf32>
    %205 = vector.extract_strided_slice %204 {offsets = [0, 0], sizes = [16, 384], strides = [1, 1]} : vector<16x512xf32> to vector<16x384xf32>
    %cst_59 = arith.constant 5.000000e-01 : f32
    %206 = vector.broadcast %cst_59 : f32 to vector<16x384xf32>
    %207 = arith.mulf %206, %205 : vector<16x384xf32>
    %208 = math.tanh %207 : vector<16x384xf32>
    %cst_60 = arith.constant 1.000000e+00 : f32
    %209 = vector.broadcast %cst_60 : f32 to vector<16x384xf32>
    %210 = arith.addf %208, %209 : vector<16x384xf32>
    %cst_61 = arith.constant 5.000000e-01 : f32
    %211 = vector.broadcast %cst_61 : f32 to vector<16x384xf32>
    %212 = arith.mulf %211, %210 : vector<16x384xf32>
    %213 = vector.extract_strided_slice %204 {offsets = [0, 384], sizes = [16, 128], strides = [1, 1]} : vector<16x512xf32> to vector<16x128xf32>
    %214 = math.tanh %213 : vector<16x128xf32>
    %215 = vector.extract_strided_slice %212 {offsets = [0, 0], sizes = [16, 128], strides = [1, 1]} : vector<16x384xf32> to vector<16x128xf32>
    %216 = vector.extract_strided_slice %212 {offsets = [0, 128], sizes = [16, 128], strides = [1, 1]} : vector<16x384xf32> to vector<16x128xf32>
    %217 = vector.extract_strided_slice %212 {offsets = [0, 256], sizes = [16, 128], strides = [1, 1]} : vector<16x384xf32> to vector<16x128xf32>
    %218 = arith.mulf %216, %173 : vector<16x128xf32>
    %219 = arith.mulf %215, %214 : vector<16x128xf32>
    %220 = arith.addf %218, %219 : vector<16x128xf32>
    %221 = math.tanh %220 : vector<16x128xf32>
    %222 = arith.mulf %217, %221 : vector<16x128xf32>
    %223 = arith.truncf %222 : vector<16x128xf32> to vector<16x128xbf16>
    %cst_62 = arith.constant dense<0.000000e+00> : vector<16x512xf32>
    %224 = tpu.matmul %223, %1, %cst_62 {dimension_numbers = #tpu.dot_dimension_numbers<[1], [0], [0], [1], [0, 0, 1, 1], [], []>} : vector<16x128xbf16>, vector<128x512xbf16>, vector<16x512xf32> -> vector<16x512xf32>
    %225 = arith.addf %199, %224 : vector<16x512xf32>
    %226 = arith.addf %225, %5 : vector<16x512xf32>
    %227 = vector.extract_strided_slice %226 {offsets = [0, 0], sizes = [16, 384], strides = [1, 1]} : vector<16x512xf32> to vector<16x384xf32>
    %cst_63 = arith.constant 5.000000e-01 : f32
    %228 = vector.broadcast %cst_63 : f32 to vector<16x384xf32>
    %229 = arith.mulf %228, %227 : vector<16x384xf32>
    %230 = math.tanh %229 : vector<16x384xf32>
    %cst_64 = arith.constant 1.000000e+00 : f32
    %231 = vector.broadcast %cst_64 : f32 to vector<16x384xf32>
    %232 = arith.addf %230, %231 : vector<16x384xf32>
    %cst_65 = arith.constant 5.000000e-01 : f32
    %233 = vector.broadcast %cst_65 : f32 to vector<16x384xf32>
    %234 = arith.mulf %233, %232 : vector<16x384xf32>
    %235 = vector.extract_strided_slice %226 {offsets = [0, 384], sizes = [16, 128], strides = [1, 1]} : vector<16x512xf32> to vector<16x128xf32>
    %236 = math.tanh %235 : vector<16x128xf32>
    %237 = vector.extract_strided_slice %234 {offsets = [0, 0], sizes = [16, 128], strides = [1, 1]} : vector<16x384xf32> to vector<16x128xf32>
    %238 = vector.extract_strided_slice %234 {offsets = [0, 128], sizes = [16, 128], strides = [1, 1]} : vector<16x384xf32> to vector<16x128xf32>
    %239 = vector.extract_strided_slice %234 {offsets = [0, 256], sizes = [16, 128], strides = [1, 1]} : vector<16x384xf32> to vector<16x128xf32>
    %240 = arith.mulf %238, %195 : vector<16x128xf32>
    %241 = arith.mulf %237, %236 : vector<16x128xf32>
    %242 = arith.addf %240, %241 : vector<16x128xf32>
    %243 = math.tanh %242 : vector<16x128xf32>
    %244 = arith.mulf %239, %243 : vector<16x128xf32>
    %245 = arith.truncf %244 : vector<16x128xf32> to vector<16x128xbf16>
    %cst_66 = arith.constant dense<0.000000e+00> : vector<16x512xf32>
    %246 = tpu.matmul %245, %2, %cst_66 {dimension_numbers = #tpu.dot_dimension_numbers<[1], [0], [0], [1], [0, 0, 1, 1], [], []>} : vector<16x128xbf16>, vector<128x512xbf16>, vector<16x512xf32> -> vector<16x512xf32>
    %c5 = arith.constant 5 : index
    %c0_67 = arith.constant 0 : index
    %c0_68 = arith.constant 0 : index
    %247 = vector.load %arg1[%c5, %c0_67, %c0_68] : memref<8x16x512xf32, #tpu.memory_space<vmem>>, vector<1x16x512xf32>
    %248 = vector.shape_cast %247 : vector<1x16x512xf32> to vector<16x512xf32>
    %249 = arith.truncf %222 : vector<16x128xf32> to vector<16x128xbf16>
    %cst_69 = arith.constant dense<0.000000e+00> : vector<16x512xf32>
    %250 = tpu.matmul %249, %0, %cst_69 {dimension_numbers = #tpu.dot_dimension_numbers<[1], [0], [0], [1], [0, 0, 1, 1], [], []>} : vector<16x128xbf16>, vector<128x512xbf16>, vector<16x512xf32> -> vector<16x512xf32>
    %251 = arith.addf %248, %250 : vector<16x512xf32>
    %252 = vector.extract_strided_slice %251 {offsets = [0, 0], sizes = [16, 384], strides = [1, 1]} : vector<16x512xf32> to vector<16x384xf32>
    %cst_70 = arith.constant 5.000000e-01 : f32
    %253 = vector.broadcast %cst_70 : f32 to vector<16x384xf32>
    %254 = arith.mulf %253, %252 : vector<16x384xf32>
    %255 = math.tanh %254 : vector<16x384xf32>
    %cst_71 = arith.constant 1.000000e+00 : f32
    %256 = vector.broadcast %cst_71 : f32 to vector<16x384xf32>
    %257 = arith.addf %255, %256 : vector<16x384xf32>
    %cst_72 = arith.constant 5.000000e-01 : f32
    %258 = vector.broadcast %cst_72 : f32 to vector<16x384xf32>
    %259 = arith.mulf %258, %257 : vector<16x384xf32>
    %260 = vector.extract_strided_slice %251 {offsets = [0, 384], sizes = [16, 128], strides = [1, 1]} : vector<16x512xf32> to vector<16x128xf32>
    %261 = math.tanh %260 : vector<16x128xf32>
    %262 = vector.extract_strided_slice %259 {offsets = [0, 0], sizes = [16, 128], strides = [1, 1]} : vector<16x384xf32> to vector<16x128xf32>
    %263 = vector.extract_strided_slice %259 {offsets = [0, 128], sizes = [16, 128], strides = [1, 1]} : vector<16x384xf32> to vector<16x128xf32>
    %264 = vector.extract_strided_slice %259 {offsets = [0, 256], sizes = [16, 128], strides = [1, 1]} : vector<16x384xf32> to vector<16x128xf32>
    %265 = arith.mulf %263, %220 : vector<16x128xf32>
    %266 = arith.mulf %262, %261 : vector<16x128xf32>
    %267 = arith.addf %265, %266 : vector<16x128xf32>
    %268 = math.tanh %267 : vector<16x128xf32>
    %269 = arith.mulf %264, %268 : vector<16x128xf32>
    %270 = arith.truncf %269 : vector<16x128xf32> to vector<16x128xbf16>
    %cst_73 = arith.constant dense<0.000000e+00> : vector<16x512xf32>
    %271 = tpu.matmul %270, %1, %cst_73 {dimension_numbers = #tpu.dot_dimension_numbers<[1], [0], [0], [1], [0, 0, 1, 1], [], []>} : vector<16x128xbf16>, vector<128x512xbf16>, vector<16x512xf32> -> vector<16x512xf32>
    %272 = arith.addf %246, %271 : vector<16x512xf32>
    %273 = arith.addf %272, %5 : vector<16x512xf32>
    %274 = vector.extract_strided_slice %273 {offsets = [0, 0], sizes = [16, 384], strides = [1, 1]} : vector<16x512xf32> to vector<16x384xf32>
    %cst_74 = arith.constant 5.000000e-01 : f32
    %275 = vector.broadcast %cst_74 : f32 to vector<16x384xf32>
    %276 = arith.mulf %275, %274 : vector<16x384xf32>
    %277 = math.tanh %276 : vector<16x384xf32>
    %cst_75 = arith.constant 1.000000e+00 : f32
    %278 = vector.broadcast %cst_75 : f32 to vector<16x384xf32>
    %279 = arith.addf %277, %278 : vector<16x384xf32>
    %cst_76 = arith.constant 5.000000e-01 : f32
    %280 = vector.broadcast %cst_76 : f32 to vector<16x384xf32>
    %281 = arith.mulf %280, %279 : vector<16x384xf32>
    %282 = vector.extract_strided_slice %273 {offsets = [0, 384], sizes = [16, 128], strides = [1, 1]} : vector<16x512xf32> to vector<16x128xf32>
    %283 = math.tanh %282 : vector<16x128xf32>
    %284 = vector.extract_strided_slice %281 {offsets = [0, 0], sizes = [16, 128], strides = [1, 1]} : vector<16x384xf32> to vector<16x128xf32>
    %285 = vector.extract_strided_slice %281 {offsets = [0, 128], sizes = [16, 128], strides = [1, 1]} : vector<16x384xf32> to vector<16x128xf32>
    %286 = vector.extract_strided_slice %281 {offsets = [0, 256], sizes = [16, 128], strides = [1, 1]} : vector<16x384xf32> to vector<16x128xf32>
    %287 = arith.mulf %285, %242 : vector<16x128xf32>
    %288 = arith.mulf %284, %283 : vector<16x128xf32>
    %289 = arith.addf %287, %288 : vector<16x128xf32>
    %290 = math.tanh %289 : vector<16x128xf32>
    %291 = arith.mulf %286, %290 : vector<16x128xf32>
    %292 = arith.truncf %291 : vector<16x128xf32> to vector<16x128xbf16>
    %cst_77 = arith.constant dense<0.000000e+00> : vector<16x512xf32>
    %293 = tpu.matmul %292, %2, %cst_77 {dimension_numbers = #tpu.dot_dimension_numbers<[1], [0], [0], [1], [0, 0, 1, 1], [], []>} : vector<16x128xbf16>, vector<128x512xbf16>, vector<16x512xf32> -> vector<16x512xf32>
    %c6 = arith.constant 6 : index
    %c0_78 = arith.constant 0 : index
    %c0_79 = arith.constant 0 : index
    %294 = vector.load %arg1[%c6, %c0_78, %c0_79] : memref<8x16x512xf32, #tpu.memory_space<vmem>>, vector<1x16x512xf32>
    %295 = vector.shape_cast %294 : vector<1x16x512xf32> to vector<16x512xf32>
    %296 = arith.truncf %269 : vector<16x128xf32> to vector<16x128xbf16>
    %cst_80 = arith.constant dense<0.000000e+00> : vector<16x512xf32>
    %297 = tpu.matmul %296, %0, %cst_80 {dimension_numbers = #tpu.dot_dimension_numbers<[1], [0], [0], [1], [0, 0, 1, 1], [], []>} : vector<16x128xbf16>, vector<128x512xbf16>, vector<16x512xf32> -> vector<16x512xf32>
    %298 = arith.addf %295, %297 : vector<16x512xf32>
    %299 = vector.extract_strided_slice %298 {offsets = [0, 0], sizes = [16, 384], strides = [1, 1]} : vector<16x512xf32> to vector<16x384xf32>
    %cst_81 = arith.constant 5.000000e-01 : f32
    %300 = vector.broadcast %cst_81 : f32 to vector<16x384xf32>
    %301 = arith.mulf %300, %299 : vector<16x384xf32>
    %302 = math.tanh %301 : vector<16x384xf32>
    %cst_82 = arith.constant 1.000000e+00 : f32
    %303 = vector.broadcast %cst_82 : f32 to vector<16x384xf32>
    %304 = arith.addf %302, %303 : vector<16x384xf32>
    %cst_83 = arith.constant 5.000000e-01 : f32
    %305 = vector.broadcast %cst_83 : f32 to vector<16x384xf32>
    %306 = arith.mulf %305, %304 : vector<16x384xf32>
    %307 = vector.extract_strided_slice %298 {offsets = [0, 384], sizes = [16, 128], strides = [1, 1]} : vector<16x512xf32> to vector<16x128xf32>
    %308 = math.tanh %307 : vector<16x128xf32>
    %309 = vector.extract_strided_slice %306 {offsets = [0, 0], sizes = [16, 128], strides = [1, 1]} : vector<16x384xf32> to vector<16x128xf32>
    %310 = vector.extract_strided_slice %306 {offsets = [0, 128], sizes = [16, 128], strides = [1, 1]} : vector<16x384xf32> to vector<16x128xf32>
    %311 = vector.extract_strided_slice %306 {offsets = [0, 256], sizes = [16, 128], strides = [1, 1]} : vector<16x384xf32> to vector<16x128xf32>
    %312 = arith.mulf %310, %267 : vector<16x128xf32>
    %313 = arith.mulf %309, %308 : vector<16x128xf32>
    %314 = arith.addf %312, %313 : vector<16x128xf32>
    %315 = math.tanh %314 : vector<16x128xf32>
    %316 = arith.mulf %311, %315 : vector<16x128xf32>
    %317 = arith.truncf %316 : vector<16x128xf32> to vector<16x128xbf16>
    %cst_84 = arith.constant dense<0.000000e+00> : vector<16x512xf32>
    %318 = tpu.matmul %317, %1, %cst_84 {dimension_numbers = #tpu.dot_dimension_numbers<[1], [0], [0], [1], [0, 0, 1, 1], [], []>} : vector<16x128xbf16>, vector<128x512xbf16>, vector<16x512xf32> -> vector<16x512xf32>
    %319 = arith.addf %293, %318 : vector<16x512xf32>
    %320 = arith.addf %319, %5 : vector<16x512xf32>
    %321 = vector.extract_strided_slice %320 {offsets = [0, 0], sizes = [16, 384], strides = [1, 1]} : vector<16x512xf32> to vector<16x384xf32>
    %cst_85 = arith.constant 5.000000e-01 : f32
    %322 = vector.broadcast %cst_85 : f32 to vector<16x384xf32>
    %323 = arith.mulf %322, %321 : vector<16x384xf32>
    %324 = math.tanh %323 : vector<16x384xf32>
    %cst_86 = arith.constant 1.000000e+00 : f32
    %325 = vector.broadcast %cst_86 : f32 to vector<16x384xf32>
    %326 = arith.addf %324, %325 : vector<16x384xf32>
    %cst_87 = arith.constant 5.000000e-01 : f32
    %327 = vector.broadcast %cst_87 : f32 to vector<16x384xf32>
    %328 = arith.mulf %327, %326 : vector<16x384xf32>
    %329 = vector.extract_strided_slice %320 {offsets = [0, 384], sizes = [16, 128], strides = [1, 1]} : vector<16x512xf32> to vector<16x128xf32>
    %330 = math.tanh %329 : vector<16x128xf32>
    %331 = vector.extract_strided_slice %328 {offsets = [0, 0], sizes = [16, 128], strides = [1, 1]} : vector<16x384xf32> to vector<16x128xf32>
    %332 = vector.extract_strided_slice %328 {offsets = [0, 128], sizes = [16, 128], strides = [1, 1]} : vector<16x384xf32> to vector<16x128xf32>
    %333 = vector.extract_strided_slice %328 {offsets = [0, 256], sizes = [16, 128], strides = [1, 1]} : vector<16x384xf32> to vector<16x128xf32>
    %334 = arith.mulf %332, %289 : vector<16x128xf32>
    %335 = arith.mulf %331, %330 : vector<16x128xf32>
    %336 = arith.addf %334, %335 : vector<16x128xf32>
    %337 = math.tanh %336 : vector<16x128xf32>
    %338 = arith.mulf %333, %337 : vector<16x128xf32>
    %339 = arith.truncf %338 : vector<16x128xf32> to vector<16x128xbf16>
    %cst_88 = arith.constant dense<0.000000e+00> : vector<16x512xf32>
    %340 = tpu.matmul %339, %2, %cst_88 {dimension_numbers = #tpu.dot_dimension_numbers<[1], [0], [0], [1], [0, 0, 1, 1], [], []>} : vector<16x128xbf16>, vector<128x512xbf16>, vector<16x512xf32> -> vector<16x512xf32>
    %c7 = arith.constant 7 : index
    %c0_89 = arith.constant 0 : index
    %c0_90 = arith.constant 0 : index
    %341 = vector.load %arg1[%c7, %c0_89, %c0_90] : memref<8x16x512xf32, #tpu.memory_space<vmem>>, vector<1x16x512xf32>
    %342 = vector.shape_cast %341 : vector<1x16x512xf32> to vector<16x512xf32>
    %343 = arith.truncf %316 : vector<16x128xf32> to vector<16x128xbf16>
    %cst_91 = arith.constant dense<0.000000e+00> : vector<16x512xf32>
    %344 = tpu.matmul %343, %0, %cst_91 {dimension_numbers = #tpu.dot_dimension_numbers<[1], [0], [0], [1], [0, 0, 1, 1], [], []>} : vector<16x128xbf16>, vector<128x512xbf16>, vector<16x512xf32> -> vector<16x512xf32>
    %345 = arith.addf %342, %344 : vector<16x512xf32>
    %346 = vector.extract_strided_slice %345 {offsets = [0, 0], sizes = [16, 384], strides = [1, 1]} : vector<16x512xf32> to vector<16x384xf32>
    %cst_92 = arith.constant 5.000000e-01 : f32
    %347 = vector.broadcast %cst_92 : f32 to vector<16x384xf32>
    %348 = arith.mulf %347, %346 : vector<16x384xf32>
    %349 = math.tanh %348 : vector<16x384xf32>
    %cst_93 = arith.constant 1.000000e+00 : f32
    %350 = vector.broadcast %cst_93 : f32 to vector<16x384xf32>
    %351 = arith.addf %349, %350 : vector<16x384xf32>
    %cst_94 = arith.constant 5.000000e-01 : f32
    %352 = vector.broadcast %cst_94 : f32 to vector<16x384xf32>
    %353 = arith.mulf %352, %351 : vector<16x384xf32>
    %354 = vector.extract_strided_slice %345 {offsets = [0, 384], sizes = [16, 128], strides = [1, 1]} : vector<16x512xf32> to vector<16x128xf32>
    %355 = math.tanh %354 : vector<16x128xf32>
    %356 = vector.extract_strided_slice %353 {offsets = [0, 0], sizes = [16, 128], strides = [1, 1]} : vector<16x384xf32> to vector<16x128xf32>
    %357 = vector.extract_strided_slice %353 {offsets = [0, 128], sizes = [16, 128], strides = [1, 1]} : vector<16x384xf32> to vector<16x128xf32>
    %358 = vector.extract_strided_slice %353 {offsets = [0, 256], sizes = [16, 128], strides = [1, 1]} : vector<16x384xf32> to vector<16x128xf32>
    %359 = arith.mulf %357, %314 : vector<16x128xf32>
    %360 = arith.mulf %356, %355 : vector<16x128xf32>
    %361 = arith.addf %359, %360 : vector<16x128xf32>
    %362 = math.tanh %361 : vector<16x128xf32>
    %363 = arith.mulf %358, %362 : vector<16x128xf32>
    %364 = arith.truncf %363 : vector<16x128xf32> to vector<16x128xbf16>
    %cst_95 = arith.constant dense<0.000000e+00> : vector<16x512xf32>
    %365 = tpu.matmul %364, %1, %cst_95 {dimension_numbers = #tpu.dot_dimension_numbers<[1], [0], [0], [1], [0, 0, 1, 1], [], []>} : vector<16x128xbf16>, vector<128x512xbf16>, vector<16x512xf32> -> vector<16x512xf32>
    %366 = arith.addf %340, %365 : vector<16x512xf32>
    %367 = arith.addf %366, %5 : vector<16x512xf32>
    %368 = vector.extract_strided_slice %367 {offsets = [0, 0], sizes = [16, 384], strides = [1, 1]} : vector<16x512xf32> to vector<16x384xf32>
    %cst_96 = arith.constant 5.000000e-01 : f32
    %369 = vector.broadcast %cst_96 : f32 to vector<16x384xf32>
    %370 = arith.mulf %369, %368 : vector<16x384xf32>
    %371 = math.tanh %370 : vector<16x384xf32>
    %cst_97 = arith.constant 1.000000e+00 : f32
    %372 = vector.broadcast %cst_97 : f32 to vector<16x384xf32>
    %373 = arith.addf %371, %372 : vector<16x384xf32>
    %cst_98 = arith.constant 5.000000e-01 : f32
    %374 = vector.broadcast %cst_98 : f32 to vector<16x384xf32>
    %375 = arith.mulf %374, %373 : vector<16x384xf32>
    %376 = vector.extract_strided_slice %367 {offsets = [0, 384], sizes = [16, 128], strides = [1, 1]} : vector<16x512xf32> to vector<16x128xf32>
    %377 = math.tanh %376 : vector<16x128xf32>
    %378 = vector.extract_strided_slice %375 {offsets = [0, 0], sizes = [16, 128], strides = [1, 1]} : vector<16x384xf32> to vector<16x128xf32>
    %379 = vector.extract_strided_slice %375 {offsets = [0, 128], sizes = [16, 128], strides = [1, 1]} : vector<16x384xf32> to vector<16x128xf32>
    %380 = vector.extract_strided_slice %375 {offsets = [0, 256], sizes = [16, 128], strides = [1, 1]} : vector<16x384xf32> to vector<16x128xf32>
    %381 = arith.mulf %379, %336 : vector<16x128xf32>
    %382 = arith.mulf %378, %377 : vector<16x128xf32>
    %383 = arith.addf %381, %382 : vector<16x128xf32>
    %384 = math.tanh %383 : vector<16x128xf32>
    %385 = arith.mulf %380, %384 : vector<16x128xf32>
    %386 = tpu.concatenate %56, %103, %150, %197, %244, %291, %338, %385 in 0 : vector<16x128xf32>, vector<16x128xf32>, vector<16x128xf32>, vector<16x128xf32>, vector<16x128xf32>, vector<16x128xf32>, vector<16x128xf32>, vector<16x128xf32> -> vector<128x128xf32>
    %387 = arith.truncf %386 : vector<128x128xf32> to vector<128x128xbf16>
    %c0_99 = arith.constant 0 : index
    %c0_100 = arith.constant 0 : index
    %388 = vector.load %arg6[%c0_99, %c0_100] : memref<128x1xbf16, #tpu.memory_space<vmem>>, vector<128x1xbf16>
    %cst_101 = arith.constant dense<0.000000e+00> : vector<128x1xf32>
    %389 = tpu.matmul %387, %388, %cst_101 {dimension_numbers = #tpu.dot_dimension_numbers<[1], [0], [0], [1], [0, 0, 1, 1], [], []>} : vector<128x128xbf16>, vector<128x1xbf16>, vector<128x1xf32> -> vector<128x1xf32>
    %c0_102 = arith.constant 0 : index
    %c0_103 = arith.constant 0 : index
    %390 = memref.load %arg7[%c0_102, %c0_103] : memref<1x1xf32, #tpu.memory_space<smem>>
    %391 = vector.broadcast %390 : f32 to vector<128x1xf32>
    %392 = arith.addf %389, %391 : vector<128x1xf32>
    %393 = vector.shape_cast %392 : vector<128x1xf32> to vector<8x16x1xf32>
    %cst_104 = arith.constant dense<0xFF800000> : vector<16x1xf32>
    %394 = vector.multi_reduction <maximumf>, %393, %cst_104 [0] : vector<8x16x1xf32> to vector<16x1xf32>
    %395 = vector.shape_cast %394 : vector<16x1xf32> to vector<1x16x1xf32>
    %396 = vector.broadcast %395 : vector<1x16x1xf32> to vector<8x16x1xf32>
    %397 = arith.subf %393, %396 : vector<8x16x1xf32>
    %398 = math.exp %397 : vector<8x16x1xf32>
    %cst_105 = arith.constant dense<0.000000e+00> : vector<16x1xf32>
    %399 = vector.multi_reduction <add>, %398, %cst_105 [0] : vector<8x16x1xf32> to vector<16x1xf32>
    %400 = vector.shape_cast %399 : vector<16x1xf32> to vector<1x16x1xf32>
    %401 = tpu.reciprocal %400 {approx = true} : vector<1x16x1xf32> -> vector<1x16x1xf32>
    %402 = vector.broadcast %401 : vector<1x16x1xf32> to vector<8x16x1xf32>
    %403 = arith.mulf %398, %402 : vector<8x16x1xf32>
    %cst_106 = arith.constant 0.000000e+00 : f32
    %404 = vector.broadcast %cst_106 : f32 to vector<16x128xf32>
    %405 = vector.extract_strided_slice %403 {offsets = [0, 0, 0], sizes = [1, 16, 1], strides = [1, 1, 1]} : vector<8x16x1xf32> to vector<1x16x1xf32>
    %406 = vector.shape_cast %405 : vector<1x16x1xf32> to vector<16x1xf32>
    %407 = vector.broadcast %406 : vector<16x1xf32> to vector<16x128xf32>
    %408 = arith.mulf %407, %56 : vector<16x128xf32>
    %409 = arith.addf %404, %408 : vector<16x128xf32>
    %410 = vector.extract_strided_slice %403 {offsets = [1, 0, 0], sizes = [1, 16, 1], strides = [1, 1, 1]} : vector<8x16x1xf32> to vector<1x16x1xf32>
    %411 = vector.shape_cast %410 : vector<1x16x1xf32> to vector<16x1xf32>
    %412 = vector.broadcast %411 : vector<16x1xf32> to vector<16x128xf32>
    %413 = arith.mulf %412, %103 : vector<16x128xf32>
    %414 = arith.addf %409, %413 : vector<16x128xf32>
    %415 = vector.extract_strided_slice %403 {offsets = [2, 0, 0], sizes = [1, 16, 1], strides = [1, 1, 1]} : vector<8x16x1xf32> to vector<1x16x1xf32>
    %416 = vector.shape_cast %415 : vector<1x16x1xf32> to vector<16x1xf32>
    %417 = vector.broadcast %416 : vector<16x1xf32> to vector<16x128xf32>
    %418 = arith.mulf %417, %150 : vector<16x128xf32>
    %419 = arith.addf %414, %418 : vector<16x128xf32>
    %420 = vector.extract_strided_slice %403 {offsets = [3, 0, 0], sizes = [1, 16, 1], strides = [1, 1, 1]} : vector<8x16x1xf32> to vector<1x16x1xf32>
    %421 = vector.shape_cast %420 : vector<1x16x1xf32> to vector<16x1xf32>
    %422 = vector.broadcast %421 : vector<16x1xf32> to vector<16x128xf32>
    %423 = arith.mulf %422, %197 : vector<16x128xf32>
    %424 = arith.addf %419, %423 : vector<16x128xf32>
    %425 = vector.extract_strided_slice %403 {offsets = [4, 0, 0], sizes = [1, 16, 1], strides = [1, 1, 1]} : vector<8x16x1xf32> to vector<1x16x1xf32>
    %426 = vector.shape_cast %425 : vector<1x16x1xf32> to vector<16x1xf32>
    %427 = vector.broadcast %426 : vector<16x1xf32> to vector<16x128xf32>
    %428 = arith.mulf %427, %244 : vector<16x128xf32>
    %429 = arith.addf %424, %428 : vector<16x128xf32>
    %430 = vector.extract_strided_slice %403 {offsets = [5, 0, 0], sizes = [1, 16, 1], strides = [1, 1, 1]} : vector<8x16x1xf32> to vector<1x16x1xf32>
    %431 = vector.shape_cast %430 : vector<1x16x1xf32> to vector<16x1xf32>
    %432 = vector.broadcast %431 : vector<16x1xf32> to vector<16x128xf32>
    %433 = arith.mulf %432, %291 : vector<16x128xf32>
    %434 = arith.addf %429, %433 : vector<16x128xf32>
    %435 = vector.extract_strided_slice %403 {offsets = [6, 0, 0], sizes = [1, 16, 1], strides = [1, 1, 1]} : vector<8x16x1xf32> to vector<1x16x1xf32>
    %436 = vector.shape_cast %435 : vector<1x16x1xf32> to vector<16x1xf32>
    %437 = vector.broadcast %436 : vector<16x1xf32> to vector<16x128xf32>
    %438 = arith.mulf %437, %338 : vector<16x128xf32>
    %439 = arith.addf %434, %438 : vector<16x128xf32>
    %440 = vector.extract_strided_slice %403 {offsets = [7, 0, 0], sizes = [1, 16, 1], strides = [1, 1, 1]} : vector<8x16x1xf32> to vector<1x16x1xf32>
    %441 = vector.shape_cast %440 : vector<1x16x1xf32> to vector<16x1xf32>
    %442 = vector.broadcast %441 : vector<16x1xf32> to vector<16x128xf32>
    %443 = arith.mulf %442, %385 : vector<16x128xf32>
    %444 = arith.addf %439, %443 : vector<16x128xf32>
    %445 = arith.truncf %444 : vector<16x128xf32> to vector<16x128xbf16>
    %c0_107 = arith.constant 0 : index
    %c0_108 = arith.constant 0 : index
    %446 = vector.load %arg8[%c0_107, %c0_108] : memref<128x1xbf16, #tpu.memory_space<vmem>>, vector<128x1xbf16>
    %cst_109 = arith.constant dense<0.000000e+00> : vector<16x1xf32>
    %447 = tpu.matmul %445, %446, %cst_109 {dimension_numbers = #tpu.dot_dimension_numbers<[1], [0], [0], [1], [0, 0, 1, 1], [], []>} : vector<16x128xbf16>, vector<128x1xbf16>, vector<16x1xf32> -> vector<16x1xf32>
    %c0_110 = arith.constant 0 : index
    %c0_111 = arith.constant 0 : index
    %448 = memref.load %arg9[%c0_110, %c0_111] : memref<1x1xf32, #tpu.memory_space<smem>>
    %449 = vector.broadcast %448 : f32 to vector<16x1xf32>
    %450 = arith.addf %447, %449 : vector<16x1xf32>
    %c0_112 = arith.constant 0 : index
    %c0_113 = arith.constant 0 : index
    %451 = vector.load %arg10[%c0_112, %c0_113] : memref<16x1xf32, #tpu.memory_space<vmem>>, vector<16x1xf32>
    tpu.vector_store %arg10[%c0_112, %c0_113], %450 {strides = array<i32>} : memref<16x1xf32, #tpu.memory_space<vmem>>, vector<16x1xf32>,
    return
  }
  func.func @transform_0(%arg0: i32) -> (i32, i32, i32) {
    %c0_i32 = arith.constant 0 : i32
    %c0_i32_0 = arith.constant 0 : i32
    %c0_i32_1 = arith.constant 0 : i32
    return %c0_i32, %arg0, %c0_i32_0 : i32, i32, i32
  }
  func.func @transform_1(%arg0: i32) -> (i32, i32) {
    %c0_i32 = arith.constant 0 : i32
    %c0_i32_0 = arith.constant 0 : i32
    %c0_i32_1 = arith.constant 0 : i32
    return %c0_i32, %c0_i32_0 : i32, i32
  }
  func.func @transform_2(%arg0: i32) -> (i32, i32) {
    %c0_i32 = arith.constant 0 : i32
    %c0_i32_0 = arith.constant 0 : i32
    %c0_i32_1 = arith.constant 0 : i32
    return %c0_i32, %c0_i32_0 : i32, i32
  }
  func.func @transform_3(%arg0: i32) -> (i32, i32) {
    %c0_i32 = arith.constant 0 : i32
    %c0_i32_0 = arith.constant 0 : i32
    %c0_i32_1 = arith.constant 0 : i32
    return %c0_i32, %c0_i32_0 : i32, i32
  }
  func.func @transform_4(%arg0: i32) -> (i32, i32) {
    %c0_i32 = arith.constant 0 : i32
    %c0_i32_0 = arith.constant 0 : i32
    %c0_i32_1 = arith.constant 0 : i32
    return %c0_i32, %c0_i32_0 : i32, i32
  }
  func.func @transform_5(%arg0: i32) -> (i32, i32) {
    %c0_i32 = arith.constant 0 : i32
    %c0_i32_0 = arith.constant 0 : i32
    %c0_i32_1 = arith.constant 0 : i32
    return %c0_i32, %c0_i32_0 : i32, i32
  }
  func.func @transform_6(%arg0: i32) -> (i32, i32) {
    %c0_i32 = arith.constant 0 : i32
    %c0_i32_0 = arith.constant 0 : i32
    %c0_i32_1 = arith.constant 0 : i32
    return %c0_i32, %c0_i32_0 : i32, i32
  }
  func.func @transform_7(%arg0: i32) -> (i32, i32) {
    %c0_i32 = arith.constant 0 : i32
    %c0_i32_0 = arith.constant 0 : i32
    %c0_i32_1 = arith.constant 0 : i32
    return %c0_i32, %c0_i32_0 : i32, i32
  }
  func.func @transform_8(%arg0: i32) -> (i32, i32) {
    %c0_i32 = arith.constant 0 : i32
    %c0_i32_0 = arith.constant 0 : i32
    %c0_i32_1 = arith.constant 0 : i32
    return %c0_i32, %c0_i32_0 : i32, i32
  }
  func.func @transform_9(%arg0: i32) -> (i32, i32) {
    %c0_i32 = arith.constant 0 : i32
    %c0_i32_0 = arith.constant 0 : i32
    return %arg0, %c0_i32 : i32, i32
  }
}

</mosaic_0001>

<llo_original>
// kernel: tpu_custom_call.1
$region0: #{tpu_custom_call.1}
  #allocation0 [shape = 'u32[]', space=smem, size = 0x4, offset = 0x4, fixed_abs, tag = 'smem constant byte address 0x4 - core index']
  #allocation1 [shape = 'u32[144,128]{1,0:T(1,128)}', space=vmem, size = 0x12000, scoped, tag = 'internal scratch']
  #allocation2 [shape = 'f32[1,1]{1,0:T(1,128)S(6)}', space=smem, size = 0x200, scoped, tag = 'scoped memory for tpu_custom_call.1']
  #allocation3 [shape = 'f32[1,1]{1,0:T(1,128)S(6)}', space=smem, size = 0x200, scoped, tag = 'scoped memory for tpu_custom_call.1']
  %s0 = inlined_call_operand.hbm [shape: f32[8,16,512], index: 0, kind: input, shape index: {}]
  %s1 = inlined_call_operand.hbm [shape: bf16[128,512], index: 1, kind: input, shape index: {}]
  %s2 = inlined_call_operand.hbm [shape: bf16[128,512], index: 2, kind: input, shape index: {}]
  %s3 = inlined_call_operand.hbm [shape: bf16[128,512], index: 3, kind: input, shape index: {}]
  %s4 = inlined_call_operand.vmem [shape: f32[1,512], index: 4, kind: input, shape index: {}]
  %s5 = inlined_call_operand.vmem [shape: bf16[128,1], index: 5, kind: input, shape index: {}]
  %s6 = inlined_call_operand.<no memory space> [shape: f32[1,1], index: 6, kind: input, shape index: {}]
  %s7 = inlined_call_operand.vmem [shape: bf16[128,1], index: 7, kind: input, shape index: {}]
  %s8 = inlined_call_operand.<no memory space> [shape: f32[1,1], index: 8, kind: input, shape index: {}]
  %s9 = inlined_call_operand.vmem [shape: f32[16,1], index: 9, kind: output, shape index: {}]
  %s10 = sld [smem:[#allocation0]]
  $region62: #{tpu_custom_call.1} parent=0
    _
  %s12 = ssub.s32 1, %s10
  %s13 = scalar_select 0, %s12, %s10
  %14 = sst [smem:[#allocation2]] %s6
  %15 = sst [smem:[#allocation3]] %s8
  $region1: #{tpu_custom_call.1} parent=0
    #allocation4 [shape = 'u8[262144]{0}', space=vmem, size = 0x40000, scoped, tag = 'input window, operand 0, single buffered']
    #allocation5 [shape = 's32[1]{0}', space=sflag, size = 0x4, scoped, tag = 'scoped memory for tpu_custom_call.1']
    #allocation6 [shape = 'u8[131072]{0}', space=vmem, size = 0x20000, scoped, tag = 'input window, operand 1, single buffered']
    #allocation7 [shape = 's32[1]{0}', space=sflag, size = 0x4, scoped, tag = 'scoped memory for tpu_custom_call.1']
    #allocation8 [shape = 'u8[131072]{0}', space=vmem, size = 0x20000, scoped, tag = 'input window, operand 2, single buffered']
    #allocation9 [shape = 'u8[131072]{0}', space=vmem, size = 0x20000, scoped, tag = 'input window, operand 3, single buffered']
    #allocation10 [shape = 's32[1]{0}', space=sflag, size = 0x4, scoped, tag = 'scoped memory for tpu_custom_call.1']
    %16 = vsyncpa [#allocation5], 0
    %17 = vsyncpa [#allocation7], 0
    %18 = vsyncpa [#allocation10], 0
    // Predicated region
    $region2: #{tpu_custom_call.1} parent=1 // pred_check
      _
    $region3: #{tpu_custom_call.1} parent=1 // pred_check_branch
      %20 = sbr.rel (0) target = $region5
    $region4: #{tpu_custom_call.1} parent=1 // pred_region
      %s22 = ssub.s32 8192, 8192
      %23 = vsyncadd [#allocation5], %s22
      %s24 = sshll.u32 [#allocation4], 4
      %s25 = int_to_ptr.vmem [resolvable:$true] %s24
      %30 = dma.hbm_to_vmem [thread:$0]  %s0, 8192, %s25, [#allocation5], 512, 512, 32
    $region5: #{tpu_custom_call.1} parent=1 // pred_fallthru
      _
    // Predicated region
    $region6: #{tpu_custom_call.1} parent=1 // pred_check
      _
    $region7: #{tpu_custom_call.1} parent=1 // pred_check_branch
      %32 = sbr.rel (0) target = $region9
    $region8: #{tpu_custom_call.1} parent=1 // pred_region
      %s34 = ssub.s32 4096, 4096
      %35 = vsyncadd [#allocation7], %s34
      %s36 = sshll.u32 [#allocation6], 4
      %s37 = int_to_ptr.vmem [resolvable:$true] %s36
      %42 = dma.hbm_to_vmem [thread:$0]  %s1, 4096, %s37, [#allocation7], 256, 256, 16
    $region9: #{tpu_custom_call.1} parent=1 // pred_fallthru
      _
    // Predicated region
    $region10: #{tpu_custom_call.1} parent=1 // pred_check
      _
    $region11: #{tpu_custom_call.1} parent=1 // pred_check_branch
      %44 = sbr.rel (0) target = $region13
    $region12: #{tpu_custom_call.1} parent=1 // pred_region
      %s46 = ssub.s32 4096, 4096
      %47 = vsyncadd [#allocation7], %s46
      %s48 = sshll.u32 [#allocation8], 4
      %s49 = int_to_ptr.vmem [resolvable:$true] %s48
      %54 = dma.hbm_to_vmem [thread:$0]  %s2, 4096, %s49, [#allocation7], 256, 256, 16
    $region13: #{tpu_custom_call.1} parent=1 // pred_fallthru
      _
    // Predicated region
    $region14: #{tpu_custom_call.1} parent=1 // pred_check
      _
    $region15: #{tpu_custom_call.1} parent=1 // pred_check_branch
      %56 = sbr.rel (0) target = $region17
    $region16: #{tpu_custom_call.1} parent=1 // pred_region
      %s58 = ssub.s32 4096, 4096
      %59 = vsyncadd [#allocation10], %s58
      %s60 = sshll.u32 [#allocation9], 4
      %s61 = int_to_ptr.vmem [resolvable:$true] %s60
      %66 = dma.hbm_to_vmem [thread:$0]  %s3, 4096, %s61, [#allocation10], 256, 256, 16
    $region17: #{tpu_custom_call.1} parent=1 // pred_fallthru
      _
    // Predicated region
    $region18: #{tpu_custom_call.1} parent=1 // pred_check
      _
    $region19: #{tpu_custom_call.1} parent=1 // pred_check_branch
      %68 = sbr.rel (0) target = $region21
    $region20: #{tpu_custom_call.1} parent=1 // pred_region
      _
    $region21: #{tpu_custom_call.1} parent=1 // pred_fallthru
      _
    // Predicated region
    $region22: #{tpu_custom_call.1} parent=1 // pred_check
      _
    $region23: #{tpu_custom_call.1} parent=1 // pred_check_branch
      %70 = sbr.rel (0) target = $region25
    $region24: #{tpu_custom_call.1} parent=1 // pred_region
      _
    $region25: #{tpu_custom_call.1} parent=1 // pred_fallthru
      _
    // Predicated region
    $region26: #{tpu_custom_call.1} parent=1 // pred_check
      _
    $region27: #{tpu_custom_call.1} parent=1 // pred_check_branch
      %72 = sbr.rel (0) target = $region29
    $region28: #{tpu_custom_call.1} parent=1 // pred_region
      _
    $region29: #{tpu_custom_call.1} parent=1 // pred_fallthru
      _
    // Predicated region
    $region30: #{tpu_custom_call.1} parent=1 // pred_check
      _
    $region31: #{tpu_custom_call.1} parent=1 // pred_check_branch
      %74 = sbr.rel (0) target = $region33
    $region32: #{tpu_custom_call.1} parent=1 // pred_region
      _
    $region33: #{tpu_custom_call.1} parent=1 // pred_fallthru
      _
    // Predicated region
    $region34: #{tpu_custom_call.1} parent=1 // pred_check
      _
    $region35: #{tpu_custom_call.1} parent=1 // pred_check_branch
      %76 = sbr.rel (0) target = $region37
    $region36: #{tpu_custom_call.1} parent=1 // pred_region
      _
    $region37: #{tpu_custom_call.1} parent=1 // pred_fallthru
      _
    // Predicated region
    $region38: #{tpu_custom_call.1} parent=1 // pred_check
      _
    $region39: #{tpu_custom_call.1} parent=1 // pred_check_branch
      %78 = sbr.rel (0) target = $region41
    $region40: #{tpu_custom_call.1} parent=1 // pred_region
      %79 = dma.done [#allocation5], 8192
    $region41: #{tpu_custom_call.1} parent=1 // pred_fallthru
      _
    // Predicated region
    $region42: #{tpu_custom_call.1} parent=1 // pred_check
      _
    $region43: #{tpu_custom_call.1} parent=1 // pred_check_branch
      %81 = sbr.rel (0) target = $region45
    $region44: #{tpu_custom_call.1} parent=1 // pred_region
      %82 = dma.done [#allocation7], 4096
    $region45: #{tpu_custom_call.1} parent=1 // pred_fallthru
      _
    // Predicated region
    $region46: #{tpu_custom_call.1} parent=1 // pred_check
      _
    $region47: #{tpu_custom_call.1} parent=1 // pred_check_branch
      %84 = sbr.rel (0) target = $region49
    $region48: #{tpu_custom_call.1} parent=1 // pred_region
      %85 = dma.done [#allocation7], 4096
    $region49: #{tpu_custom_call.1} parent=1 // pred_fallthru
      _
    // Predicated region
    $region50: #{tpu_custom_call.1} parent=1 // pred_check
      _
    $region51: #{tpu_custom_call.1} parent=1 // pred_check_branch
      %87 = sbr.rel (0) target = $region53
    $region52: #{tpu_custom_call.1} parent=1 // pred_region
      %88 = dma.done [#allocation10], 4096
    $region53: #{tpu_custom_call.1} parent=1 // pred_fallthru
      _
    %v90 = vld [vmem:[#allocation6] sm:$0xff]
    %v91 = vld [vmem:[#allocation6 + $0x8] sm:$0xff]
    %v92 = vld [vmem:[#allocation6 + $0x10] sm:$0xff]
    %v93 = vld [vmem:[#allocation6 + $0x18] sm:$0xff]
    %v94 = vld [vmem:[#allocation6 + $0x20] sm:$0xff]
    %v95 = vld [vmem:[#allocation6 + $0x28] sm:$0xff]
    %v96 = vld [vmem:[#allocation6 + $0x30] sm:$0xff]
    %v97 = vld [vmem:[#allocation6 + $0x38] sm:$0xff]
    %v98 = vld [vmem:[#allocation6 + $0x40] sm:$0xff]
    %v99 = vld [vmem:[#allocation6 + $0x48] sm:$0xff]
    %v100 = vld [vmem:[#allocation6 + $0x50] sm:$0xff]
    %v101 = vld [vmem:[#allocation6 + $0x58] sm:$0xff]
    %v102 = vld [vmem:[#allocation6 + $0x60] sm:$0xff]
    %v103 = vld [vmem:[#allocation6 + $0x68] sm:$0xff]
    %v104 = vld [vmem:[#allocation6 + $0x70] sm:$0xff]
    %v105 = vld [vmem:[#allocation6 + $0x78] sm:$0xff]
    %v106 = vld [vmem:[#allocation6 + $0x80] sm:$0xff]
    %v107 = vld [vmem:[#allocation6 + $0x88] sm:$0xff]
    %v108 = vld [vmem:[#allocation6 + $0x90] sm:$0xff]
    %v109 = vld [vmem:[#allocation6 + $0x98] sm:$0xff]
    %v110 = vld [vmem:[#allocation6 + $0xa0] sm:$0xff]
    %v111 = vld [vmem:[#allocation6 + $0xa8] sm:$0xff]
    %v112 = vld [vmem:[#allocation6 + $0xb0] sm:$0xff]
    %v113 = vld [vmem:[#allocation6 + $0xb8] sm:$0xff]
    %v114 = vld [vmem:[#allocation6 + $0xc0] sm:$0xff]
    %v115 = vld [vmem:[#allocation6 + $0xc8] sm:$0xff]
    %v116 = vld [vmem:[#allocation6 + $0xd0] sm:$0xff]
    %v117 = vld [vmem:[#allocation6 + $0xd8] sm:$0xff]
    %v118 = vld [vmem:[#allocation6 + $0xe0] sm:$0xff]
    %v119 = vld [vmem:[#allocation6 + $0xe8] sm:$0xff]
    %v120 = vld [vmem:[#allocation6 + $0xf0] sm:$0xff]
    %v121 = vld [vmem:[#allocation6 + $0xf8] sm:$0xff]
    %v122 = vld [vmem:[#allocation8] sm:$0xff]
    %v123 = vld [vmem:[#allocation8 + $0x8] sm:$0xff]
    %v124 = vld [vmem:[#allocation8 + $0x10] sm:$0xff]
    %v125 = vld [vmem:[#allocation8 + $0x18] sm:$0xff]
    %v126 = vld [vmem:[#allocation8 + $0x20] sm:$0xff]
    %v127 = vld [vmem:[#allocation8 + $0x28] sm:$0xff]
    %v128 = vld [vmem:[#allocation8 + $0x30] sm:$0xff]
    %v129 = vld [vmem:[#allocation8 + $0x38] sm:$0xff]
    %v130 = vld [vmem:[#allocation8 + $0x40] sm:$0xff]
    %v131 = vld [vmem:[#allocation8 + $0x48] sm:$0xff]
    %v132 = vld [vmem:[#allocation8 + $0x50] sm:$0xff]
    %v133 = vld [vmem:[#allocation8 + $0x58] sm:$0xff]
    %v134 = vld [vmem:[#allocation8 + $0x60] sm:$0xff]
    %v135 = vld [vmem:[#allocation8 + $0x68] sm:$0xff]
    %v136 = vld [vmem:[#allocation8 + $0x70] sm:$0xff]
    %v137 = vld [vmem:[#allocation8 + $0x78] sm:$0xff]
    %v138 = vld [vmem:[#allocation8 + $0x80] sm:$0xff]
    %v139 = vld [vmem:[#allocation8 + $0x88] sm:$0xff]
    %v140 = vld [vmem:[#allocation8 + $0x90] sm:$0xff]
    %v141 = vld [vmem:[#allocation8 + $0x98] sm:$0xff]
    %v142 = vld [vmem:[#allocation8 + $0xa0] sm:$0xff]
    %v143 = vld [vmem:[#allocation8 + $0xa8] sm:$0xff]
    %v144 = vld [vmem:[#allocation8 + $0xb0] sm:$0xff]
    %v145 = vld [vmem:[#allocation8 + $0xb8] sm:$0xff]
    %v146 = vld [vmem:[#allocation8 + $0xc0] sm:$0xff]
    %v147 = vld [vmem:[#allocation8 + $0xc8] sm:$0xff]
    %v148 = vld [vmem:[#allocation8 + $0xd0] sm:$0xff]
    %v149 = vld [vmem:[#allocation8 + $0xd8] sm:$0xff]
    %v150 = vld [vmem:[#allocation8 + $0xe0] sm:$0xff]
    %v151 = vld [vmem:[#allocation8 + $0xe8] sm:$0xff]
    %v152 = vld [vmem:[#allocation8 + $0xf0] sm:$0xff]
    %v153 = vld [vmem:[#allocation8 + $0xf8] sm:$0xff]
    %v154 = vld [vmem:[#allocation9] sm:$0xff]
    %v155 = vld [vmem:[#allocation9 + $0x8] sm:$0xff]
    %v156 = vld [vmem:[#allocation9 + $0x10] sm:$0xff]
    %v157 = vld [vmem:[#allocation9 + $0x18] sm:$0xff]
    %v158 = vld [vmem:[#allocation9 + $0x20] sm:$0xff]
    %v159 = vld [vmem:[#allocation9 + $0x28] sm:$0xff]
    %v160 = vld [vmem:[#allocation9 + $0x30] sm:$0xff]
    %v161 = vld [vmem:[#allocation9 + $0x38] sm:$0xff]
    %v162 = vld [vmem:[#allocation9 + $0x40] sm:$0xff]
    %v163 = vld [vmem:[#allocation9 + $0x48] sm:$0xff]
    %v164 = vld [vmem:[#allocation9 + $0x50] sm:$0xff]
    %v165 = vld [vmem:[#allocation9 + $0x58] sm:$0xff]
    %v166 = vld [vmem:[#allocation9 + $0x60] sm:$0xff]
    %v167 = vld [vmem:[#allocation9 + $0x68] sm:$0xff]
    %v168 = vld [vmem:[#allocation9 + $0x70] sm:$0xff]
    %v169 = vld [vmem:[#allocation9 + $0x78] sm:$0xff]
    %v170 = vld [vmem:[#allocation9 + $0x80] sm:$0xff]
    %v171 = vld [vmem:[#allocation9 + $0x88] sm:$0xff]
    %v172 = vld [vmem:[#allocation9 + $0x90] sm:$0xff]
    %v173 = vld [vmem:[#allocation9 + $0x98] sm:$0xff]
    %v174 = vld [vmem:[#allocation9 + $0xa0] sm:$0xff]
    %v175 = vld [vmem:[#allocation9 + $0xa8] sm:$0xff]
    %v176 = vld [vmem:[#allocation9 + $0xb0] sm:$0xff]
    %v177 = vld [vmem:[#allocation9 + $0xb8] sm:$0xff]
    %v178 = vld [vmem:[#allocation9 + $0xc0] sm:$0xff]
    %v179 = vld [vmem:[#allocation9 + $0xc8] sm:$0xff]
    %v180 = vld [vmem:[#allocation9 + $0xd0] sm:$0xff]
    %v181 = vld [vmem:[#allocation9 + $0xd8] sm:$0xff]
    %v182 = vld [vmem:[#allocation9 + $0xe0] sm:$0xff]
    %v183 = vld [vmem:[#allocation9 + $0xe8] sm:$0xff]
    %v184 = vld [vmem:[#allocation9 + $0xf0] sm:$0xff]
    %v185 = vld [vmem:[#allocation9 + $0xf8] sm:$0xff]
    %v186 = vld [vmem:[%s4] sm:$0xf]
    %v188 = vlaneseq
    %v189 = vshrl.u32 %v188, 7
    %v190 = vsub.s32 0, %v189
    %v191 = vrot.slane %v186, %v190
    %v192 = vlaneseq
    %v193 = vshrl.u32 %v192, 7
    %v194 = vsub.s32 1, %v193
    %v195 = vrot.slane %v186, %v194
    %v196 = vlaneseq
    %v197 = vshrl.u32 %v196, 7
    %v198 = vsub.s32 2, %v197
    %v199 = vrot.slane %v186, %v198
    %v200 = vlaneseq
    %v201 = vshrl.u32 %v200, 7
    %v202 = vsub.s32 3, %v201
    %v203 = vrot.slane %v186, %v202
    %v208 = vld [vmem:[#allocation4] sm:$0xff]
    %v209 = vld [vmem:[#allocation4 + $0x8] sm:$0xff]
    %v210 = vld [vmem:[#allocation4 + $0x10] sm:$0xff]
    %v211 = vld [vmem:[#allocation4 + $0x18] sm:$0xff]
    %v212 = vld [vmem:[#allocation4 + $0x20] sm:$0xff]
    %v213 = vld [vmem:[#allocation4 + $0x28] sm:$0xff]
    %v214 = vld [vmem:[#allocation4 + $0x30] sm:$0xff]
    %v215 = vld [vmem:[#allocation4 + $0x38] sm:$0xff]
    %v248 = vunpack.c.l.b16 %v90
    %v249 = vunpack.c.h.b16 %v90
    %v250 = vunpack.c.l.b16 %v91
    %v251 = vunpack.c.h.b16 %v91
    %v252 = vunpack.c.l.b16 %v92
    %v253 = vunpack.c.h.b16 %v92
    %v254 = vunpack.c.l.b16 %v93
    %v255 = vunpack.c.h.b16 %v93
    %v256 = vunpack.c.l.b16 %v94
    %v257 = vunpack.c.h.b16 %v94
    %v258 = vunpack.c.l.b16 %v95
    %v259 = vunpack.c.h.b16 %v95
    %v260 = vunpack.c.l.b16 %v96
    %v261 = vunpack.c.h.b16 %v96
    %v262 = vunpack.c.l.b16 %v97
    %v263 = vunpack.c.h.b16 %v97
    %v264 = vunpack.c.l.b16 %v98
    %v265 = vunpack.c.h.b16 %v98
    %v266 = vunpack.c.l.b16 %v99
    %v267 = vunpack.c.h.b16 %v99
    %v268 = vunpack.c.l.b16 %v100
    %v269 = vunpack.c.h.b16 %v100
    %v270 = vunpack.c.l.b16 %v101
    %v271 = vunpack.c.h.b16 %v101
    %v272 = vunpack.c.l.b16 %v102
    %v273 = vunpack.c.h.b16 %v102
    %v274 = vunpack.c.l.b16 %v103
    %v275 = vunpack.c.h.b16 %v103
    %v276 = vunpack.c.l.b16 %v104
    %v277 = vunpack.c.h.b16 %v104
    %v278 = vunpack.c.l.b16 %v105
    %v279 = vunpack.c.h.b16 %v105
    %v280 = vunpack.c.l.b16 %v106
    %v281 = vunpack.c.h.b16 %v106
    %v282 = vunpack.c.l.b16 %v107
    %v283 = vunpack.c.h.b16 %v107
    %v284 = vunpack.c.l.b16 %v108
    %v285 = vunpack.c.h.b16 %v108
    %v286 = vunpack.c.l.b16 %v109
    %v287 = vunpack.c.h.b16 %v109
    %v288 = vunpack.c.l.b16 %v110
    %v289 = vunpack.c.h.b16 %v110
    %v290 = vunpack.c.l.b16 %v111
    %v291 = vunpack.c.h.b16 %v111
    %v292 = vunpack.c.l.b16 %v112
    %v293 = vunpack.c.h.b16 %v112
    %v294 = vunpack.c.l.b16 %v113
    %v295 = vunpack.c.h.b16 %v113
    %v296 = vunpack.c.l.b16 %v114
    %v297 = vunpack.c.h.b16 %v114
    %v298 = vunpack.c.l.b16 %v115
    %v299 = vunpack.c.h.b16 %v115
    %v300 = vunpack.c.l.b16 %v116
    %v301 = vunpack.c.h.b16 %v116
    %v302 = vunpack.c.l.b16 %v117
    %v303 = vunpack.c.h.b16 %v117
    %v304 = vunpack.c.l.b16 %v118
    %v305 = vunpack.c.h.b16 %v118
    %v306 = vunpack.c.l.b16 %v119
    %v307 = vunpack.c.h.b16 %v119
    %v308 = vunpack.c.l.b16 %v120
    %v309 = vunpack.c.h.b16 %v120
    %v310 = vunpack.c.l.b16 %v121
    %v311 = vunpack.c.h.b16 %v121
    %v312 = vpack.c.b16 %v252, %v248
    %v313 = vpack.c.b16 %v253, %v249
    %v314 = vpack.c.b16 %v254, %v250
    %v315 = vpack.c.b16 %v255, %v251
    %v316 = vpack.c.b16 %v260, %v256
    %v317 = vpack.c.b16 %v261, %v257
    %v318 = vpack.c.b16 %v262, %v258
    %v319 = vpack.c.b16 %v263, %v259
    %v320 = vpack.c.b16 %v268, %v264
    %v321 = vpack.c.b16 %v269, %v265
    %v322 = vpack.c.b16 %v270, %v266
    %v323 = vpack.c.b16 %v271, %v267
    %v324 = vpack.c.b16 %v276, %v272
    %v325 = vpack.c.b16 %v277, %v273
    %v326 = vpack.c.b16 %v278, %v274
    %v327 = vpack.c.b16 %v279, %v275
    %v328 = vpack.c.b16 %v284, %v280
    %v329 = vpack.c.b16 %v285, %v281
    %v330 = vpack.c.b16 %v286, %v282
    %v331 = vpack.c.b16 %v287, %v283
    %v332 = vpack.c.b16 %v292, %v288
    %v333 = vpack.c.b16 %v293, %v289
    %v334 = vpack.c.b16 %v294, %v290
    %v335 = vpack.c.b16 %v295, %v291
    %v336 = vpack.c.b16 %v300, %v296
    %v337 = vpack.c.b16 %v301, %v297
    %v338 = vpack.c.b16 %v302, %v298
    %v339 = vpack.c.b16 %v303, %v299
    %v340 = vpack.c.b16 %v308, %v304
    %v341 = vpack.c.b16 %v309, %v305
    %v342 = vpack.c.b16 %v310, %v306
    %v343 = vpack.c.b16 %v311, %v307
    %376 = vmatprep.subr.bf16.mxu0 %v313
    %377 = vmatpush1.bf16.msra.mxu0 %v312
    %378 = vmatprep.subr.bf16.mxu0 %v317
    %379 = vmatpush1.bf16.msra.mxu0 %v316
    %380 = vmatprep.subr.bf16.mxu0 %v321
    %381 = vmatpush1.bf16.msra.mxu0 %v320
    %382 = vmatprep.subr.bf16.mxu0 %v325
    %383 = vmatpush1.bf16.msra.mxu0 %v324
    %384 = vmatprep.subr.bf16.mxu0 %v329
    %385 = vmatpush1.bf16.msra.mxu0 %v328
    %386 = vmatprep.subr.bf16.mxu0 %v333
    %387 = vmatpush1.bf16.msra.mxu0 %v332
    %388 = vmatprep.subr.bf16.mxu0 %v337
    %389 = vmatpush1.bf16.msra.mxu0 %v336
    %390 = vmatprep.subr.bf16.mxu0 %v341
    %391 = vmatpush1.bf16.msra.mxu0 %v340
    %392 = vmatprep.subr.bf16.mxu0 0
    %393 = vmatpush1.bf16.msra.mxu0 0
    %394 = vmatprep.subr.bf16.mxu0 0
    %395 = vmatpush1.bf16.msra.mxu0 0
    %396 = vmatprep.subr.bf16.mxu0 0
    %397 = vmatpush1.bf16.msra.mxu0 0
    %398 = vmatprep.subr.bf16.mxu0 0
    %399 = vmatpush1.bf16.msra.mxu0 0
    %400 = vmatprep.subr.bf16.mxu0 0
    %401 = vmatpush1.bf16.msra.mxu0 0
    %402 = vmatprep.subr.bf16.mxu0 0
    %403 = vmatpush1.bf16.msra.mxu0 0
    %404 = vmatprep.subr.bf16.mxu0 0
    %405 = vmatpush1.bf16.msra.mxu0 0
    %406 = vmatprep.subr.bf16.mxu0 0
    %407 = vmatpush1.bf16.msra.mxu0 0
    %408 = vmatprep.mubr.bf16.mxu0 0
    %409 = vmatmul.mubr.bf16.gmra.mrb[0].mxu0 0
    %v410 = vpop.f32.mrb[0].mxu0
    %v411 = vadd.f32 0.0, %v410
    %v412 = vpop.f32.mrb[0].mxu0
    %v413 = vadd.f32 0.0, %v412
    %v414 = vpop.f32.mrb[0].mxu0
    %v415 = vadd.f32 0.0, %v414
    %v416 = vpop.f32.mrb[0].mxu0
    %v417 = vadd.f32 0.0, %v416
    %418 = vdwg.mxu0
    %419 = vmatprep.subr.bf16.mxu0 %v315
    %420 = vmatpush1.bf16.msra.mxu0 %v314
    %421 = vmatprep.subr.bf16.mxu0 %v319
    %422 = vmatpush1.bf16.msra.mxu0 %v318
    %423 = vmatprep.subr.bf16.mxu0 %v323
    %424 = vmatpush1.bf16.msra.mxu0 %v322
    %425 = vmatprep.subr.bf16.mxu0 %v327
    %426 = vmatpush1.bf16.msra.mxu0 %v326
    %427 = vmatprep.subr.bf16.mxu0 %v331
    %428 = vmatpush1.bf16.msra.mxu0 %v330
    %429 = vmatprep.subr.bf16.mxu0 %v335
    %430 = vmatpush1.bf16.msra.mxu0 %v334
    %431 = vmatprep.subr.bf16.mxu0 %v339
    %432 = vmatpush1.bf16.msra.mxu0 %v338
    %433 = vmatprep.subr.bf16.mxu0 %v343
    %434 = vmatpush1.bf16.msra.mxu0 %v342
    %435 = vmatprep.subr.bf16.mxu0 0
    %436 = vmatpush1.bf16.msra.mxu0 0
    %437 = vmatprep.subr.bf16.mxu0 0
    %438 = vmatpush1.bf16.msra.mxu0 0
    %439 = vmatprep.subr.bf16.mxu0 0
    %440 = vmatpush1.bf16.msra.mxu0 0
    %441 = vmatprep.subr.bf16.mxu0 0
    %442 = vmatpush1.bf16.msra.mxu0 0
    %443 = vmatprep.subr.bf16.mxu0 0
    %444 = vmatpush1.bf16.msra.mxu0 0
    %445 = vmatprep.subr.bf16.mxu0 0
    %446 = vmatpush1.bf16.msra.mxu0 0
    %447 = vmatprep.subr.bf16.mxu0 0
    %448 = vmatpush1.bf16.msra.mxu0 0
    %449 = vmatprep.subr.bf16.mxu0 0
    %450 = vmatpush1.bf16.msra.mxu0 0
    %451 = vmatprep.mubr.bf16.mxu0 0
    %452 = vmatmul.mubr.bf16.gmra.mrb[0].mxu0 0
    %v453 = vpop.f32.mrb[0].mxu0
    %v454 = vadd.f32 0.0, %v453
    %v455 = vpop.f32.mrb[0].mxu0
    %v456 = vadd.f32 0.0, %v455
    %v457 = vpop.f32.mrb[0].mxu0
    %v458 = vadd.f32 0.0, %v457
    %v459 = vpop.f32.mrb[0].mxu0
    %v460 = vadd.f32 0.0, %v459
    %461 = vdwg.mxu0
    %v462 = vadd.f32 %v208, %v411
    %v463 = vadd.f32 %v209, %v413
    %v464 = vadd.f32 %v210, %v454
    %v465 = vadd.f32 %v211, %v456
    %v466 = vadd.f32 %v212, %v415
    %v467 = vadd.f32 %v213, %v417
    %v468 = vadd.f32 %v214, %v458
    %v469 = vadd.f32 %v215, %v460
    %v470 = vmul.f32 %v462, 0.5
    %v471 = vmul.f32 %v463, 0.5
    %v472 = vmul.f32 %v464, 0.5
    %v473 = vmul.f32 %v466, 0.5
    %v474 = vmul.f32 %v467, 0.5
    %v475 = vmul.f32 %v468, 0.5
    %v476 = vtanh.pop %v470
    %v477 = vtanh.pop %v471
    %v478 = vtanh.pop %v472
    %v479 = vtanh.pop %v473
    %v480 = vtanh.pop %v474
    %v481 = vtanh.pop %v475
    %v482 = vadd.f32 %v476, 1.0
    %v483 = vadd.f32 %v477, 1.0
    %v484 = vadd.f32 %v478, 1.0
    %v485 = vadd.f32 %v479, 1.0
    %v486 = vadd.f32 %v480, 1.0
    %v487 = vadd.f32 %v481, 1.0
    %v488 = vmul.f32 %v482, 0.5
    %v489 = vmul.f32 %v483, 0.5
    %v490 = vmul.f32 %v484, 0.5
    %v491 = vmul.f32 %v485, 0.5
    %v492 = vmul.f32 %v486, 0.5
    %v493 = vmul.f32 %v487, 0.5
    %v494 = vtanh.pop %v465
    %v495 = vtanh.pop %v469
    %v496 = vmul.f32 %v489, 0.0
    %v497 = vmul.f32 %v492, 0.0
    %v498 = vmul.f32 %v488, %v494
    %v499 = vmul.f32 %v491, %v495
    %v500 = vadd.f32 %v496, %v498
    %v501 = vadd.f32 %v497, %v499
    %v502 = vtanh.pop %v500
    %v503 = vtanh.pop %v501
    %v504 = vmul.f32 %v490, %v502
    %v505 = vmul.f32 %v493, %v503
    %v506 = vpack.c.bf16 %v505, %v504
    %v539 = vunpack.c.l.b16 %v122
    %v540 = vunpack.c.h.b16 %v122
    %v541 = vunpack.c.l.b16 %v123
    %v542 = vunpack.c.h.b16 %v123
    %v543 = vunpack.c.l.b16 %v124
    %v544 = vunpack.c.h.b16 %v124
    %v545 = vunpack.c.l.b16 %v125
    %v546 = vunpack.c.h.b16 %v125
    %v547 = vunpack.c.l.b16 %v126
    %v548 = vunpack.c.h.b16 %v126
    %v549 = vunpack.c.l.b16 %v127
    %v550 = vunpack.c.h.b16 %v127
    %v551 = vunpack.c.l.b16 %v128
    %v552 = vunpack.c.h.b16 %v128
    %v553 = vunpack.c.l.b16 %v129
    %v554 = vunpack.c.h.b16 %v129
    %v555 = vunpack.c.l.b16 %v130
    %v556 = vunpack.c.h.b16 %v130
    %v557 = vunpack.c.l.b16 %v131
    %v558 = vunpack.c.h.b16 %v131
    %v559 = vunpack.c.l.b16 %v132
    %v560 = vunpack.c.h.b16 %v132
    %v561 = vunpack.c.l.b16 %v133
    %v562 = vunpack.c.h.b16 %v133
    %v563 = vunpack.c.l.b16 %v134
    %v564 = vunpack.c.h.b16 %v134
    %v565 = vunpack.c.l.b16 %v135
    %v566 = vunpack.c.h.b16 %v135
    %v567 = vunpack.c.l.b16 %v136
    %v568 = vunpack.c.h.b16 %v136
    %v569 = vunpack.c.l.b16 %v137
    %v570 = vunpack.c.h.b16 %v137
    %v571 = vunpack.c.l.b16 %v138
    %v572 = vunpack.c.h.b16 %v138
    %v573 = vunpack.c.l.b16 %v139
    %v574 = vunpack.c.h.b16 %v139
    %v575 = vunpack.c.l.b16 %v140
    %v576 = vunpack.c.h.b16 %v140
    %v577 = vunpack.c.l.b16 %v141
    %v578 = vunpack.c.h.b16 %v141
    %v579 = vunpack.c.l.b16 %v142
    %v580 = vunpack.c.h.b16 %v142
    %v581 = vunpack.c.l.b16 %v143
    %v582 = vunpack.c.h.b16 %v143
    %v583 = vunpack.c.l.b16 %v144
    %v584 = vunpack.c.h.b16 %v144
    %v585 = vunpack.c.l.b16 %v145
    %v586 = vunpack.c.h.b16 %v145
    %v587 = vunpack.c.l.b16 %v146
    %v588 = vunpack.c.h.b16 %v146
    %v589 = vunpack.c.l.b16 %v147
    %v590 = vunpack.c.h.b16 %v147
    %v591 = vunpack.c.l.b16 %v148
    %v592 = vunpack.c.h.b16 %v148
    %v593 = vunpack.c.l.b16 %v149
    %v594 = vunpack.c.h.b16 %v149
    %v595 = vunpack.c.l.b16 %v150
    %v596 = vunpack.c.h.b16 %v150
    %v597 = vunpack.c.l.b16 %v151
    %v598 = vunpack.c.h.b16 %v151
    %v599 = vunpack.c.l.b16 %v152
    %v600 = vunpack.c.h.b16 %v152
    %v601 = vunpack.c.l.b16 %v153
    %v602 = vunpack.c.h.b16 %v153
    %v603 = vpack.c.b16 %v543, %v539
    %v604 = vpack.c.b16 %v544, %v540
    %v605 = vpack.c.b16 %v545, %v541
    %v606 = vpack.c.b16 %v546, %v542
    %v607 = vpack.c.b16 %v551, %v547
    %v608 = vpack.c.b16 %v552, %v548
    %v609 = vpack.c.b16 %v553, %v549
    %v610 = vpack.c.b16 %v554, %v550
    %v611 = vpack.c.b16 %v559, %v555
    %v612 = vpack.c.b16 %v560, %v556
    %v613 = vpack.c.b16 %v561, %v557
    %v614 = vpack.c.b16 %v562, %v558
    %v615 = vpack.c.b16 %v567, %v563
    %v616 = vpack.c.b16 %v568, %v564
    %v617 = vpack.c.b16 %v569, %v565
    %v618 = vpack.c.b16 %v570, %v566
    %v619 = vpack.c.b16 %v575, %v571
    %v620 = vpack.c.b16 %v576, %v572
    %v621 = vpack.c.b16 %v577, %v573
    %v622 = vpack.c.b16 %v578, %v574
    %v623 = vpack.c.b16 %v583, %v579
    %v624 = vpack.c.b16 %v584, %v580
    %v625 = vpack.c.b16 %v585, %v581
    %v626 = vpack.c.b16 %v586, %v582
    %v627 = vpack.c.b16 %v591, %v587
    %v628 = vpack.c.b16 %v592, %v588
    %v629 = vpack.c.b16 %v593, %v589
    %v630 = vpack.c.b16 %v594, %v590
    %v631 = vpack.c.b16 %v599, %v595
    %v632 = vpack.c.b16 %v600, %v596
    %v633 = vpack.c.b16 %v601, %v597
    %v634 = vpack.c.b16 %v602, %v598
    %667 = vmatprep.subr.bf16.mxu0 %v604
    %668 = vmatpush1.bf16.msra.mxu0 %v603
    %669 = vmatprep.subr.bf16.mxu0 %v608
    %670 = vmatpush1.bf16.msra.mxu0 %v607
    %671 = vmatprep.subr.bf16.mxu0 %v612
    %672 = vmatpush1.bf16.msra.mxu0 %v611
    %673 = vmatprep.subr.bf16.mxu0 %v616
    %674 = vmatpush1.bf16.msra.mxu0 %v615
    %675 = vmatprep.subr.bf16.mxu0 %v620
    %676 = vmatpush1.bf16.msra.mxu0 %v619
    %677 = vmatprep.subr.bf16.mxu0 %v624
    %678 = vmatpush1.bf16.msra.mxu0 %v623
    %679 = vmatprep.subr.bf16.mxu0 %v628
    %680 = vmatpush1.bf16.msra.mxu0 %v627
    %681 = vmatprep.subr.bf16.mxu0 %v632
    %682 = vmatpush1.bf16.msra.mxu0 %v631
    %683 = vmatprep.subr.bf16.mxu0 0
    %684 = vmatpush1.bf16.msra.mxu0 0
    %685 = vmatprep.subr.bf16.mxu0 0
    %686 = vmatpush1.bf16.msra.mxu0 0
    %687 = vmatprep.subr.bf16.mxu0 0
    %688 = vmatpush1.bf16.msra.mxu0 0
    %689 = vmatprep.subr.bf16.mxu0 0
    %690 = vmatpush1.bf16.msra.mxu0 0
    %691 = vmatprep.subr.bf16.mxu0 0
    %692 = vmatpush1.bf16.msra.mxu0 0
    %693 = vmatprep.subr.bf16.mxu0 0
    %694 = vmatpush1.bf16.msra.mxu0 0
    %695 = vmatprep.subr.bf16.mxu0 0
    %696 = vmatpush1.bf16.msra.mxu0 0
    %697 = vmatprep.subr.bf16.mxu0 0
    %698 = vmatpush1.bf16.msra.mxu0 0
    %699 = vmatprep.mubr.bf16.mxu0 0
    %700 = vmatmul.mubr.bf16.gmra.mrb[0].mxu0 %v506
    %v701 = vpop.f32.mrb[0].mxu0
    %v702 = vadd.f32 0.0, %v701
    %v703 = vpop.f32.mrb[0].mxu0
    %v704 = vadd.f32 0.0, %v703
    %v705 = vpop.f32.mrb[0].mxu0
    %v706 = vadd.f32 0.0, %v705
    %v707 = vpop.f32.mrb[0].mxu0
    %v708 = vadd.f32 0.0, %v707
    %709 = vdwg.mxu0
    %710 = vmatprep.subr.bf16.mxu0 %v606
    %711 = vmatpush1.bf16.msra.mxu0 %v605
    %712 = vmatprep.subr.bf16.mxu0 %v610
    %713 = vmatpush1.bf16.msra.mxu0 %v609
    %714 = vmatprep.subr.bf16.mxu0 %v614
    %715 = vmatpush1.bf16.msra.mxu0 %v613
    %716 = vmatprep.subr.bf16.mxu0 %v618
    %717 = vmatpush1.bf16.msra.mxu0 %v617
    %718 = vmatprep.subr.bf16.mxu0 %v622
    %719 = vmatpush1.bf16.msra.mxu0 %v621
    %720 = vmatprep.subr.bf16.mxu0 %v626
    %721 = vmatpush1.bf16.msra.mxu0 %v625
    %722 = vmatprep.subr.bf16.mxu0 %v630
    %723 = vmatpush1.bf16.msra.mxu0 %v629
    %724 = vmatprep.subr.bf16.mxu0 %v634
    %725 = vmatpush1.bf16.msra.mxu0 %v633
    %726 = vmatprep.subr.bf16.mxu0 0
    %727 = vmatpush1.bf16.msra.mxu0 0
    %728 = vmatprep.subr.bf16.mxu0 0
    %729 = vmatpush1.bf16.msra.mxu0 0
    %730 = vmatprep.subr.bf16.mxu0 0
    %731 = vmatpush1.bf16.msra.mxu0 0
    %732 = vmatprep.subr.bf16.mxu0 0
    %733 = vmatpush1.bf16.msra.mxu0 0
    %734 = vmatprep.subr.bf16.mxu0 0
    %735 = vmatpush1.bf16.msra.mxu0 0
    %736 = vmatprep.subr.bf16.mxu0 0
    %737 = vmatpush1.bf16.msra.mxu0 0
    %738 = vmatprep.subr.bf16.mxu0 0
    %739 = vmatpush1.bf16.msra.mxu0 0
    %740 = vmatprep.subr.bf16.mxu0 0
    %741 = vmatpush1.bf16.msra.mxu0 0
    %742 = vmatprep.mubr.bf16.mxu0 0
    %743 = vmatmul.mubr.bf16.gmra.mrb[0].mxu0 %v506
    %v744 = vpop.f32.mrb[0].mxu0
    %v745 = vadd.f32 0.0, %v744
    %v746 = vpop.f32.mrb[0].mxu0
    %v747 = vadd.f32 0.0, %v746
    %v748 = vpop.f32.mrb[0].mxu0
    %v749 = vadd.f32 0.0, %v748
    %v750 = vpop.f32.mrb[0].mxu0
    %v751 = vadd.f32 0.0, %v750
    %752 = vdwg.mxu0
    %v785 = vunpack.c.l.b16 %v154
    %v786 = vunpack.c.h.b16 %v154
    %v787 = vunpack.c.l.b16 %v155
    %v788 = vunpack.c.h.b16 %v155
    %v789 = vunpack.c.l.b16 %v156
    %v790 = vunpack.c.h.b16 %v156
    %v791 = vunpack.c.l.b16 %v157
    %v792 = vunpack.c.h.b16 %v157
    %v793 = vunpack.c.l.b16 %v158
    %v794 = vunpack.c.h.b16 %v158
    %v795 = vunpack.c.l.b16 %v159
    %v796 = vunpack.c.h.b16 %v159
    %v797 = vunpack.c.l.b16 %v160
    %v798 = vunpack.c.h.b16 %v160
    %v799 = vunpack.c.l.b16 %v161
    %v800 = vunpack.c.h.b16 %v161
    %v801 = vunpack.c.l.b16 %v162
    %v802 = vunpack.c.h.b16 %v162
    %v803 = vunpack.c.l.b16 %v163
    %v804 = vunpack.c.h.b16 %v163
    %v805 = vunpack.c.l.b16 %v164
    %v806 = vunpack.c.h.b16 %v164
    %v807 = vunpack.c.l.b16 %v165
    %v808 = vunpack.c.h.b16 %v165
    %v809 = vunpack.c.l.b16 %v166
    %v810 = vunpack.c.h.b16 %v166
    %v811 = vunpack.c.l.b16 %v167
    %v812 = vunpack.c.h.b16 %v167
    %v813 = vunpack.c.l.b16 %v168
    %v814 = vunpack.c.h.b16 %v168
    %v815 = vunpack.c.l.b16 %v169
    %v816 = vunpack.c.h.b16 %v169
    %v817 = vunpack.c.l.b16 %v170
    %v818 = vunpack.c.h.b16 %v170
    %v819 = vunpack.c.l.b16 %v171
    %v820 = vunpack.c.h.b16 %v171
    %v821 = vunpack.c.l.b16 %v172
    %v822 = vunpack.c.h.b16 %v172
    %v823 = vunpack.c.l.b16 %v173
    %v824 = vunpack.c.h.b16 %v173
    %v825 = vunpack.c.l.b16 %v174
    %v826 = vunpack.c.h.b16 %v174
    %v827 = vunpack.c.l.b16 %v175
    %v828 = vunpack.c.h.b16 %v175
    %v829 = vunpack.c.l.b16 %v176
    %v830 = vunpack.c.h.b16 %v176
    %v831 = vunpack.c.l.b16 %v177
    %v832 = vunpack.c.h.b16 %v177
    %v833 = vunpack.c.l.b16 %v178
    %v834 = vunpack.c.h.b16 %v178
    %v835 = vunpack.c.l.b16 %v179
    %v836 = vunpack.c.h.b16 %v179
    %v837 = vunpack.c.l.b16 %v180
    %v838 = vunpack.c.h.b16 %v180
    %v839 = vunpack.c.l.b16 %v181
    %v840 = vunpack.c.h.b16 %v181
    %v841 = vunpack.c.l.b16 %v182
    %v842 = vunpack.c.h.b16 %v182
    %v843 = vunpack.c.l.b16 %v183
    %v844 = vunpack.c.h.b16 %v183
    %v845 = vunpack.c.l.b16 %v184
    %v846 = vunpack.c.h.b16 %v184
    %v847 = vunpack.c.l.b16 %v185
    %v848 = vunpack.c.h.b16 %v185
    %v849 = vpack.c.b16 %v789, %v785
    %v850 = vpack.c.b16 %v790, %v786
    %v851 = vpack.c.b16 %v791, %v787
    %v852 = vpack.c.b16 %v792, %v788
    %v853 = vpack.c.b16 %v797, %v793
    %v854 = vpack.c.b16 %v798, %v794
    %v855 = vpack.c.b16 %v799, %v795
    %v856 = vpack.c.b16 %v800, %v796
    %v857 = vpack.c.b16 %v805, %v801
    %v858 = vpack.c.b16 %v806, %v802
    %v859 = vpack.c.b16 %v807, %v803
    %v860 = vpack.c.b16 %v808, %v804
    %v861 = vpack.c.b16 %v813, %v809
    %v862 = vpack.c.b16 %v814, %v810
    %v863 = vpack.c.b16 %v815, %v811
    %v864 = vpack.c.b16 %v816, %v812
    %v865 = vpack.c.b16 %v821, %v817
    %v866 = vpack.c.b16 %v822, %v818
    %v867 = vpack.c.b16 %v823, %v819
    %v868 = vpack.c.b16 %v824, %v820
    %v869 = vpack.c.b16 %v829, %v825
    %v870 = vpack.c.b16 %v830, %v826
    %v871 = vpack.c.b16 %v831, %v827
    %v872 = vpack.c.b16 %v832, %v828
    %v873 = vpack.c.b16 %v837, %v833
    %v874 = vpack.c.b16 %v838, %v834
    %v875 = vpack.c.b16 %v839, %v835
    %v876 = vpack.c.b16 %v840, %v836
    %v877 = vpack.c.b16 %v845, %v841
    %v878 = vpack.c.b16 %v846, %v842
    %v879 = vpack.c.b16 %v847, %v843
    %v880 = vpack.c.b16 %v848, %v844
    %913 = vmatprep.subr.bf16.mxu0 %v850
    %914 = vmatpush1.bf16.msra.mxu0 %v849
    %915 = vmatprep.subr.bf16.mxu0 %v854
    %916 = vmatpush1.bf16.msra.mxu0 %v853
    %917 = vmatprep.subr.bf16.mxu0 %v858
    %918 = vmatpush1.bf16.msra.mxu0 %v857
    %919 = vmatprep.subr.bf16.mxu0 %v862
    %920 = vmatpush1.bf16.msra.mxu0 %v861
    %921 = vmatprep.subr.bf16.mxu0 %v866
    %922 = vmatpush1.bf16.msra.mxu0 %v865
    %923 = vmatprep.subr.bf16.mxu0 %v870
    %924 = vmatpush1.bf16.msra.mxu0 %v869
    %925 = vmatprep.subr.bf16.mxu0 %v874
    %926 = vmatpush1.bf16.msra.mxu0 %v873
    %927 = vmatprep.subr.bf16.mxu0 %v878
    %928 = vmatpush1.bf16.msra.mxu0 %v877
    %929 = vmatprep.subr.bf16.mxu0 0
    %930 = vmatpush1.bf16.msra.mxu0 0
    %931 = vmatprep.subr.bf16.mxu0 0
    %932 = vmatpush1.bf16.msra.mxu0 0
    %933 = vmatprep.subr.bf16.mxu0 0
    %934 = vmatpush1.bf16.msra.mxu0 0
    %935 = vmatprep.subr.bf16.mxu0 0
    %936 = vmatpush1.bf16.msra.mxu0 0
    %937 = vmatprep.subr.bf16.mxu0 0
    %938 = vmatpush1.bf16.msra.mxu0 0
    %939 = vmatprep.subr.bf16.mxu0 0
    %940 = vmatpush1.bf16.msra.mxu0 0
    %941 = vmatprep.subr.bf16.mxu0 0
    %942 = vmatpush1.bf16.msra.mxu0 0
    %943 = vmatprep.subr.bf16.mxu0 0
    %944 = vmatpush1.bf16.msra.mxu0 0
    %945 = vmatprep.mubr.bf16.mxu0 0
    %946 = vmatmul.mubr.bf16.gmra.mrb[0].mxu0 0
    %v947 = vpop.f32.mrb[0].mxu0
    %v948 = vadd.f32 %v702, %v947
    %v949 = vpop.f32.mrb[0].mxu0
    %v950 = vadd.f32 %v704, %v949
    %v951 = vpop.f32.mrb[0].mxu0
    %v952 = vadd.f32 %v706, %v951
    %v953 = vpop.f32.mrb[0].mxu0
    %v954 = vadd.f32 %v708, %v953
    %955 = vdwg.mxu0
    %956 = vmatprep.subr.bf16.mxu0 %v852
    %957 = vmatpush1.bf16.msra.mxu0 %v851
    %958 = vmatprep.subr.bf16.mxu0 %v856
    %959 = vmatpush1.bf16.msra.mxu0 %v855
    %960 = vmatprep.subr.bf16.mxu0 %v860
    %961 = vmatpush1.bf16.msra.mxu0 %v859
    %962 = vmatprep.subr.bf16.mxu0 %v864
    %963 = vmatpush1.bf16.msra.mxu0 %v863
    %964 = vmatprep.subr.bf16.mxu0 %v868
    %965 = vmatpush1.bf16.msra.mxu0 %v867
    %966 = vmatprep.subr.bf16.mxu0 %v872
    %967 = vmatpush1.bf16.msra.mxu0 %v871
    %968 = vmatprep.subr.bf16.mxu0 %v876
    %969 = vmatpush1.bf16.msra.mxu0 %v875
    %970 = vmatprep.subr.bf16.mxu0 %v880
    %971 = vmatpush1.bf16.msra.mxu0 %v879
    %972 = vmatprep.subr.bf16.mxu0 0
    %973 = vmatpush1.bf16.msra.mxu0 0
    %974 = vmatprep.subr.bf16.mxu0 0
    %975 = vmatpush1.bf16.msra.mxu0 0
    %976 = vmatprep.subr.bf16.mxu0 0
    %977 = vmatpush1.bf16.msra.mxu0 0
    %978 = vmatprep.subr.bf16.mxu0 0
    %979 = vmatpush1.bf16.msra.mxu0 0
    %980 = vmatprep.subr.bf16.mxu0 0
    %981 = vmatpush1.bf16.msra.mxu0 0
    %982 = vmatprep.subr.bf16.mxu0 0
    %983 = vmatpush1.bf16.msra.mxu0 0
    %984 = vmatprep.subr.bf16.mxu0 0
    %985 = vmatpush1.bf16.msra.mxu0 0
    %986 = vmatprep.subr.bf16.mxu0 0
    %987 = vmatpush1.bf16.msra.mxu0 0
    %988 = vmatprep.mubr.bf16.mxu0 0
    %989 = vmatmul.mubr.bf16.gmra.mrb[0].mxu0 0
    %v990 = vpop.f32.mrb[0].mxu0
    %v991 = vadd.f32 %v745, %v990
    %v992 = vpop.f32.mrb[0].mxu0
    %v993 = vadd.f32 %v747, %v992
    %v994 = vpop.f32.mrb[0].mxu0
    %v995 = vadd.f32 %v749, %v994
    %v996 = vpop.f32.mrb[0].mxu0
    %v997 = vadd.f32 %v751, %v996
    %998 = vdwg.mxu0
    %v999 = vadd.f32 %v948, %v191
    %v1000 = vadd.f32 %v950, %v195
    %v1001 = vadd.f32 %v991, %v199
    %v1002 = vadd.f32 %v993, %v203
    %v1003 = vadd.f32 %v952, %v191
    %v1004 = vadd.f32 %v954, %v195
    %v1005 = vadd.f32 %v995, %v199
    %v1006 = vadd.f32 %v997, %v203
    %v1007 = vmul.f32 %v999, 0.5
    %v1008 = vmul.f32 %v1000, 0.5
    %v1009 = vmul.f32 %v1001, 0.5
    %v1010 = vmul.f32 %v1003, 0.5
    %v1011 = vmul.f32 %v1004, 0.5
    %v1012 = vmul.f32 %v1005, 0.5
    %v1013 = vtanh.pop %v1007
    %v1014 = vtanh.pop %v1008
    %v1015 = vtanh.pop %v1009
    %v1016 = vtanh.pop %v1010
    %v1017 = vtanh.pop %v1011
    %v1018 = vtanh.pop %v1012
    %v1019 = vadd.f32 %v1013, 1.0
    %v1020 = vadd.f32 %v1014, 1.0
    %v1021 = vadd.f32 %v1015, 1.0
    %v1022 = vadd.f32 %v1016, 1.0
    %v1023 = vadd.f32 %v1017, 1.0
    %v1024 = vadd.f32 %v1018, 1.0
    %v1025 = vmul.f32 %v1019, 0.5
    %v1026 = vmul.f32 %v1020, 0.5
    %v1027 = vmul.f32 %v1021, 0.5
    %v1028 = vmul.f32 %v1022, 0.5
    %v1029 = vmul.f32 %v1023, 0.5
    %v1030 = vmul.f32 %v1024, 0.5
    %v1031 = vtanh.pop %v1002
    %v1032 = vtanh.pop %v1006
    %v1033 = vmul.f32 %v1026, 0.0
    %v1034 = vmul.f32 %v1029, 0.0
    %v1035 = vmul.f32 %v1025, %v1031
    %v1036 = vmul.f32 %v1028, %v1032
    %v1037 = vadd.f32 %v1033, %v1035
    %v1038 = vadd.f32 %v1034, %v1036
    %v1039 = vtanh.pop %v1037
    %v1040 = vtanh.pop %v1038
    %v1041 = vmul.f32 %v1027, %v1039
    %v1042 = vmul.f32 %v1030, %v1040
    %v1043 = vpack.c.bf16 %v1042, %v1041
    %s1044 = scalar_lea.vmem [#allocation4], 64
    %v1045 = vld [vmem:[%s1044] sm:$0xff]
    %v1046 = vld [vmem:[%s1044 + $0x8] sm:$0xff]
    %v1047 = vld [vmem:[%s1044 + $0x10] sm:$0xff]
    %v1048 = vld [vmem:[%s1044 + $0x18] sm:$0xff]
    %v1049 = vld [vmem:[%s1044 + $0x20] sm:$0xff]
    %v1050 = vld [vmem:[%s1044 + $0x28] sm:$0xff]
    %v1051 = vld [vmem:[%s1044 + $0x30] sm:$0xff]
    %v1052 = vld [vmem:[%s1044 + $0x38] sm:$0xff]
    %1053 = vmatprep.subr.bf16.mxu0 %v313
    %1054 = vmatpush1.bf16.msra.mxu0 %v312
    %1055 = vmatprep.subr.bf16.mxu0 %v317
    %1056 = vmatpush1.bf16.msra.mxu0 %v316
    %1057 = vmatprep.subr.bf16.mxu0 %v321
    %1058 = vmatpush1.bf16.msra.mxu0 %v320
    %1059 = vmatprep.subr.bf16.mxu0 %v325
    %1060 = vmatpush1.bf16.msra.mxu0 %v324
    %1061 = vmatprep.subr.bf16.mxu0 %v329
    %1062 = vmatpush1.bf16.msra.mxu0 %v328
    %1063 = vmatprep.subr.bf16.mxu0 %v333
    %1064 = vmatpush1.bf16.msra.mxu0 %v332
    %1065 = vmatprep.subr.bf16.mxu0 %v337
    %1066 = vmatpush1.bf16.msra.mxu0 %v336
    %1067 = vmatprep.subr.bf16.mxu0 %v341
    %1068 = vmatpush1.bf16.msra.mxu0 %v340
    %1069 = vmatprep.subr.bf16.mxu0 0
    %1070 = vmatpush1.bf16.msra.mxu0 0
    %1071 = vmatprep.subr.bf16.mxu0 0
    %1072 = vmatpush1.bf16.msra.mxu0 0
    %1073 = vmatprep.subr.bf16.mxu0 0
    %1074 = vmatpush1.bf16.msra.mxu0 0
    %1075 = vmatprep.subr.bf16.mxu0 0
    %1076 = vmatpush1.bf16.msra.mxu0 0
    %1077 = vmatprep.subr.bf16.mxu0 0
    %1078 = vmatpush1.bf16.msra.mxu0 0
    %1079 = vmatprep.subr.bf16.mxu0 0
    %1080 = vmatpush1.bf16.msra.mxu0 0
    %1081 = vmatprep.subr.bf16.mxu0 0
    %1082 = vmatpush1.bf16.msra.mxu0 0
    %1083 = vmatprep.subr.bf16.mxu0 0
    %1084 = vmatpush1.bf16.msra.mxu0 0
    %1085 = vmatprep.mubr.bf16.mxu0 0
    %1086 = vmatmul.mubr.bf16.gmra.mrb[0].mxu0 %v506
    %v1087 = vpop.f32.mrb[0].mxu0
    %v1088 = vadd.f32 0.0, %v1087
    %v1089 = vpop.f32.mrb[0].mxu0
    %v1090 = vadd.f32 0.0, %v1089
    %v1091 = vpop.f32.mrb[0].mxu0
    %v1092 = vadd.f32 0.0, %v1091
    %v1093 = vpop.f32.mrb[0].mxu0
    %v1094 = vadd.f32 0.0, %v1093
    %1095 = vdwg.mxu0
    %1096 = vmatprep.subr.bf16.mxu0 %v315
    %1097 = vmatpush1.bf16.msra.mxu0 %v314
    %1098 = vmatprep.subr.bf16.mxu0 %v319
    %1099 = vmatpush1.bf16.msra.mxu0 %v318
    %1100 = vmatprep.subr.bf16.mxu0 %v323
    %1101 = vmatpush1.bf16.msra.mxu0 %v322
    %1102 = vmatprep.subr.bf16.mxu0 %v327
    %1103 = vmatpush1.bf16.msra.mxu0 %v326
    %1104 = vmatprep.subr.bf16.mxu0 %v331
    %1105 = vmatpush1.bf16.msra.mxu0 %v330
    %1106 = vmatprep.subr.bf16.mxu0 %v335
    %1107 = vmatpush1.bf16.msra.mxu0 %v334
    %1108 = vmatprep.subr.bf16.mxu0 %v339
    %1109 = vmatpush1.bf16.msra.mxu0 %v338
    %1110 = vmatprep.subr.bf16.mxu0 %v343
    %1111 = vmatpush1.bf16.msra.mxu0 %v342
    %1112 = vmatprep.subr.bf16.mxu0 0
    %1113 = vmatpush1.bf16.msra.mxu0 0
    %1114 = vmatprep.subr.bf16.mxu0 0
    %1115 = vmatpush1.bf16.msra.mxu0 0
    %1116 = vmatprep.subr.bf16.mxu0 0
    %1117 = vmatpush1.bf16.msra.mxu0 0
    %1118 = vmatprep.subr.bf16.mxu0 0
    %1119 = vmatpush1.bf16.msra.mxu0 0
    %1120 = vmatprep.subr.bf16.mxu0 0
    %1121 = vmatpush1.bf16.msra.mxu0 0
    %1122 = vmatprep.subr.bf16.mxu0 0
    %1123 = vmatpush1.bf16.msra.mxu0 0
    %1124 = vmatprep.subr.bf16.mxu0 0
    %1125 = vmatpush1.bf16.msra.mxu0 0
    %1126 = vmatprep.subr.bf16.mxu0 0
    %1127 = vmatpush1.bf16.msra.mxu0 0
    %1128 = vmatprep.mubr.bf16.mxu0 0
    %1129 = vmatmul.mubr.bf16.gmra.mrb[0].mxu0 %v506
    %v1130 = vpop.f32.mrb[0].mxu0
    %v1131 = vadd.f32 0.0, %v1130
    %v1132 = vpop.f32.mrb[0].mxu0
    %v1133 = vadd.f32 0.0, %v1132
    %v1134 = vpop.f32.mrb[0].mxu0
    %v1135 = vadd.f32 0.0, %v1134
    %v1136 = vpop.f32.mrb[0].mxu0
    %v1137 = vadd.f32 0.0, %v1136
    %1138 = vdwg.mxu0
    %v1139 = vadd.f32 %v1045, %v1088
    %v1140 = vadd.f32 %v1046, %v1090
    %v1141 = vadd.f32 %v1047, %v1131
    %v1142 = vadd.f32 %v1048, %v1133
    %v1143 = vadd.f32 %v1049, %v1092
    %v1144 = vadd.f32 %v1050, %v1094
    %v1145 = vadd.f32 %v1051, %v1135
    %v1146 = vadd.f32 %v1052, %v1137
    %v1147 = vmul.f32 %v1139, 0.5
    %v1148 = vmul.f32 %v1140, 0.5
    %v1149 = vmul.f32 %v1141, 0.5
    %v1150 = vmul.f32 %v1143, 0.5
    %v1151 = vmul.f32 %v1144, 0.5
    %v1152 = vmul.f32 %v1145, 0.5
    %v1153 = vtanh.pop %v1147
    %v1154 = vtanh.pop %v1148
    %v1155 = vtanh.pop %v1149
    %v1156 = vtanh.pop %v1150
    %v1157 = vtanh.pop %v1151
    %v1158 = vtanh.pop %v1152
    %v1159 = vadd.f32 %v1153, 1.0
    %v1160 = vadd.f32 %v1154, 1.0
    %v1161 = vadd.f32 %v1155, 1.0
    %v1162 = vadd.f32 %v1156, 1.0
    %v1163 = vadd.f32 %v1157, 1.0
    %v1164 = vadd.f32 %v1158, 1.0
    %v1165 = vmul.f32 %v1159, 0.5
    %v1166 = vmul.f32 %v1160, 0.5
    %v1167 = vmul.f32 %v1161, 0.5
    %v1168 = vmul.f32 %v1162, 0.5
    %v1169 = vmul.f32 %v1163, 0.5
    %v1170 = vmul.f32 %v1164, 0.5
    %v1171 = vtanh.pop %v1142
    %v1172 = vtanh.pop %v1146
    %v1173 = vmul.f32 %v1166, %v500
    %v1174 = vmul.f32 %v1169, %v501
    %v1175 = vmul.f32 %v1165, %v1171
    %v1176 = vmul.f32 %v1168, %v1172
    %v1177 = vadd.f32 %v1173, %v1175
    %v1178 = vadd.f32 %v1174, %v1176
    %v1179 = vtanh.pop %v1177
    %v1180 = vtanh.pop %v1178
    %v1181 = vmul.f32 %v1167, %v1179
    %v1182 = vmul.f32 %v1170, %v1180
    %v1183 = vpack.c.bf16 %v1182, %v1181
    %1184 = vmatprep.subr.bf16.mxu0 %v604
    %1185 = vmatpush1.bf16.msra.mxu0 %v603
    %1186 = vmatprep.subr.bf16.mxu0 %v608
    %1187 = vmatpush1.bf16.msra.mxu0 %v607
    %1188 = vmatprep.subr.bf16.mxu0 %v612
    %1189 = vmatpush1.bf16.msra.mxu0 %v611
    %1190 = vmatprep.subr.bf16.mxu0 %v616
    %1191 = vmatpush1.bf16.msra.mxu0 %v615
    %1192 = vmatprep.subr.bf16.mxu0 %v620
    %1193 = vmatpush1.bf16.msra.mxu0 %v619
    %1194 = vmatprep.subr.bf16.mxu0 %v624
    %1195 = vmatpush1.bf16.msra.mxu0 %v623
    %1196 = vmatprep.subr.bf16.mxu0 %v628
    %1197 = vmatpush1.bf16.msra.mxu0 %v627
    %1198 = vmatprep.subr.bf16.mxu0 %v632
    %1199 = vmatpush1.bf16.msra.mxu0 %v631
    %1200 = vmatprep.subr.bf16.mxu0 0
    %1201 = vmatpush1.bf16.msra.mxu0 0
    %1202 = vmatprep.subr.bf16.mxu0 0
    %1203 = vmatpush1.bf16.msra.mxu0 0
    %1204 = vmatprep.subr.bf16.mxu0 0
    %1205 = vmatpush1.bf16.msra.mxu0 0
    %1206 = vmatprep.subr.bf16.mxu0 0
    %1207 = vmatpush1.bf16.msra.mxu0 0
    %1208 = vmatprep.subr.bf16.mxu0 0
    %1209 = vmatpush1.bf16.msra.mxu0 0
    %1210 = vmatprep.subr.bf16.mxu0 0
    %1211 = vmatpush1.bf16.msra.mxu0 0
    %1212 = vmatprep.subr.bf16.mxu0 0
    %1213 = vmatpush1.bf16.msra.mxu0 0
    %1214 = vmatprep.subr.bf16.mxu0 0
    %1215 = vmatpush1.bf16.msra.mxu0 0
    %1216 = vmatprep.mubr.bf16.mxu0 0
    %1217 = vmatmul.mubr.bf16.gmra.mrb[0].mxu0 %v1183
    %v1218 = vpop.f32.mrb[0].mxu0
    %v1219 = vadd.f32 0.0, %v1218
    %v1220 = vpop.f32.mrb[0].mxu0
    %v1221 = vadd.f32 0.0, %v1220
    %v1222 = vpop.f32.mrb[0].mxu0
    %v1223 = vadd.f32 0.0, %v1222
    %v1224 = vpop.f32.mrb[0].mxu0
    %v1225 = vadd.f32 0.0, %v1224
    %1226 = vdwg.mxu0
    %1227 = vmatprep.subr.bf16.mxu0 %v606
    %1228 = vmatpush1.bf16.msra.mxu0 %v605
    %1229 = vmatprep.subr.bf16.mxu0 %v610
    %1230 = vmatpush1.bf16.msra.mxu0 %v609
    %1231 = vmatprep.subr.bf16.mxu0 %v614
    %1232 = vmatpush1.bf16.msra.mxu0 %v613
    %1233 = vmatprep.subr.bf16.mxu0 %v618
    %1234 = vmatpush1.bf16.msra.mxu0 %v617
    %1235 = vmatprep.subr.bf16.mxu0 %v622
    %1236 = vmatpush1.bf16.msra.mxu0 %v621
    %1237 = vmatprep.subr.bf16.mxu0 %v626
    %1238 = vmatpush1.bf16.msra.mxu0 %v625
    %1239 = vmatprep.subr.bf16.mxu0 %v630
    %1240 = vmatpush1.bf16.msra.mxu0 %v629
    %1241 = vmatprep.subr.bf16.mxu0 %v634
    %1242 = vmatpush1.bf16.msra.mxu0 %v633
    %1243 = vmatprep.subr.bf16.mxu0 0
    %1244 = vmatpush1.bf16.msra.mxu0 0
    %1245 = vmatprep.subr.bf16.mxu0 0
    %1246 = vmatpush1.bf16.msra.mxu0 0
    %1247 = vmatprep.subr.bf16.mxu0 0
    %1248 = vmatpush1.bf16.msra.mxu0 0
    %1249 = vmatprep.subr.bf16.mxu0 0
    %1250 = vmatpush1.bf16.msra.mxu0 0
    %1251 = vmatprep.subr.bf16.mxu0 0
    %1252 = vmatpush1.bf16.msra.mxu0 0
    %1253 = vmatprep.subr.bf16.mxu0 0
    %1254 = vmatpush1.bf16.msra.mxu0 0
    %1255 = vmatprep.subr.bf16.mxu0 0
    %1256 = vmatpush1.bf16.msra.mxu0 0
    %1257 = vmatprep.subr.bf16.mxu0 0
    %1258 = vmatpush1.bf16.msra.mxu0 0
    %1259 = vmatprep.mubr.bf16.mxu0 0
    %1260 = vmatmul.mubr.bf16.gmra.mrb[0].mxu0 %v1183
    %v1261 = vpop.f32.mrb[0].mxu0
    %v1262 = vadd.f32 0.0, %v1261
    %v1263 = vpop.f32.mrb[0].mxu0
    %v1264 = vadd.f32 0.0, %v1263
    %v1265 = vpop.f32.mrb[0].mxu0
    %v1266 = vadd.f32 0.0, %v1265
    %v1267 = vpop.f32.mrb[0].mxu0
    %v1268 = vadd.f32 0.0, %v1267
    %1269 = vdwg.mxu0
    %1270 = vmatprep.subr.bf16.mxu0 %v850
    %1271 = vmatpush1.bf16.msra.mxu0 %v849
    %1272 = vmatprep.subr.bf16.mxu0 %v854
    %1273 = vmatpush1.bf16.msra.mxu0 %v853
    %1274 = vmatprep.subr.bf16.mxu0 %v858
    %1275 = vmatpush1.bf16.msra.mxu0 %v857
    %1276 = vmatprep.subr.bf16.mxu0 %v862
    %1277 = vmatpush1.bf16.msra.mxu0 %v861
    %1278 = vmatprep.subr.bf16.mxu0 %v866
    %1279 = vmatpush1.bf16.msra.mxu0 %v865
    %1280 = vmatprep.subr.bf16.mxu0 %v870
    %1281 = vmatpush1.bf16.msra.mxu0 %v869
    %1282 = vmatprep.subr.bf16.mxu0 %v874
    %1283 = vmatpush1.bf16.msra.mxu0 %v873
    %1284 = vmatprep.subr.bf16.mxu0 %v878
    %1285 = vmatpush1.bf16.msra.mxu0 %v877
    %1286 = vmatprep.subr.bf16.mxu0 0
    %1287 = vmatpush1.bf16.msra.mxu0 0
    %1288 = vmatprep.subr.bf16.mxu0 0
    %1289 = vmatpush1.bf16.msra.mxu0 0
    %1290 = vmatprep.subr.bf16.mxu0 0
    %1291 = vmatpush1.bf16.msra.mxu0 0
    %1292 = vmatprep.subr.bf16.mxu0 0
    %1293 = vmatpush1.bf16.msra.mxu0 0
    %1294 = vmatprep.subr.bf16.mxu0 0
    %1295 = vmatpush1.bf16.msra.mxu0 0
    %1296 = vmatprep.subr.bf16.mxu0 0
    %1297 = vmatpush1.bf16.msra.mxu0 0
    %1298 = vmatprep.subr.bf16.mxu0 0
    %1299 = vmatpush1.bf16.msra.mxu0 0
    %1300 = vmatprep.subr.bf16.mxu0 0
    %1301 = vmatpush1.bf16.msra.mxu0 0
    %1302 = vmatprep.mubr.bf16.mxu0 0
    %1303 = vmatmul.mubr.bf16.gmra.mrb[0].mxu0 %v1043
    %v1304 = vpop.f32.mrb[0].mxu0
    %v1305 = vadd.f32 %v1219, %v1304
    %v1306 = vpop.f32.mrb[0].mxu0
    %v1307 = vadd.f32 %v1221, %v1306
    %v1308 = vpop.f32.mrb[0].mxu0
    %v1309 = vadd.f32 %v1223, %v1308
    %v1310 = vpop.f32.mrb[0].mxu0
    %v1311 = vadd.f32 %v1225, %v1310
    %1312 = vdwg.mxu0
    %1313 = vmatprep.subr.bf16.mxu0 %v852
    %1314 = vmatpush1.bf16.msra.mxu0 %v851
    %1315 = vmatprep.subr.bf16.mxu0 %v856
    %1316 = vmatpush1.bf16.msra.mxu0 %v855
    %1317 = vmatprep.subr.bf16.mxu0 %v860
    %1318 = vmatpush1.bf16.msra.mxu0 %v859
    %1319 = vmatprep.subr.bf16.mxu0 %v864
    %1320 = vmatpush1.bf16.msra.mxu0 %v863
    %1321 = vmatprep.subr.bf16.mxu0 %v868
    %1322 = vmatpush1.bf16.msra.mxu0 %v867
    %1323 = vmatprep.subr.bf16.mxu0 %v872
    %1324 = vmatpush1.bf16.msra.mxu0 %v871
    %1325 = vmatprep.subr.bf16.mxu0 %v876
    %1326 = vmatpush1.bf16.msra.mxu0 %v875
    %1327 = vmatprep.subr.bf16.mxu0 %v880
    %1328 = vmatpush1.bf16.msra.mxu0 %v879
    %1329 = vmatprep.subr.bf16.mxu0 0
    %1330 = vmatpush1.bf16.msra.mxu0 0
    %1331 = vmatprep.subr.bf16.mxu0 0
    %1332 = vmatpush1.bf16.msra.mxu0 0
    %1333 = vmatprep.subr.bf16.mxu0 0
    %1334 = vmatpush1.bf16.msra.mxu0 0
    %1335 = vmatprep.subr.bf16.mxu0 0
    %1336 = vmatpush1.bf16.msra.mxu0 0
    %1337 = vmatprep.subr.bf16.mxu0 0
    %1338 = vmatpush1.bf16.msra.mxu0 0
    %1339 = vmatprep.subr.bf16.mxu0 0
    %1340 = vmatpush1.bf16.msra.mxu0 0
    %1341 = vmatprep.subr.bf16.mxu0 0
    %1342 = vmatpush1.bf16.msra.mxu0 0
    %1343 = vmatprep.subr.bf16.mxu0 0
    %1344 = vmatpush1.bf16.msra.mxu0 0
    %1345 = vmatprep.mubr.bf16.mxu0 0
    %1346 = vmatmul.mubr.bf16.gmra.mrb[0].mxu0 %v1043
    %v1347 = vpop.f32.mrb[0].mxu0
    %v1348 = vadd.f32 %v1262, %v1347
    %v1349 = vpop.f32.mrb[0].mxu0
    %v1350 = vadd.f32 %v1264, %v1349
    %v1351 = vpop.f32.mrb[0].mxu0
    %v1352 = vadd.f32 %v1266, %v1351
    %v1353 = vpop.f32.mrb[0].mxu0
    %v1354 = vadd.f32 %v1268, %v1353
    %1355 = vdwg.mxu0
    %v1356 = vadd.f32 %v1305, %v191
    %v1357 = vadd.f32 %v1307, %v195
    %v1358 = vadd.f32 %v1348, %v199
    %v1359 = vadd.f32 %v1350, %v203
    %v1360 = vadd.f32 %v1309, %v191
    %v1361 = vadd.f32 %v1311, %v195
    %v1362 = vadd.f32 %v1352, %v199
    %v1363 = vadd.f32 %v1354, %v203
    %v1364 = vmul.f32 %v1356, 0.5
    %v1365 = vmul.f32 %v1357, 0.5
    %v1366 = vmul.f32 %v1358, 0.5
    %v1367 = vmul.f32 %v1360, 0.5
    %v1368 = vmul.f32 %v1361, 0.5
    %v1369 = vmul.f32 %v1362, 0.5
    %v1370 = vtanh.pop %v1364
    %v1371 = vtanh.pop %v1365
    %v1372 = vtanh.pop %v1366
    %v1373 = vtanh.pop %v1367
    %v1374 = vtanh.pop %v1368
    %v1375 = vtanh.pop %v1369
    %v1376 = vadd.f32 %v1370, 1.0
    %v1377 = vadd.f32 %v1371, 1.0
    %v1378 = vadd.f32 %v1372, 1.0
    %v1379 = vadd.f32 %v1373, 1.0
    %v1380 = vadd.f32 %v1374, 1.0
    %v1381 = vadd.f32 %v1375, 1.0
    %v1382 = vmul.f32 %v1376, 0.5
    %v1383 = vmul.f32 %v1377, 0.5
    %v1384 = vmul.f32 %v1378, 0.5
    %v1385 = vmul.f32 %v1379, 0.5
    %v1386 = vmul.f32 %v1380, 0.5
    %v1387 = vmul.f32 %v1381, 0.5
    %v1388 = vtanh.pop %v1359
    %v1389 = vtanh.pop %v1363
    %v1390 = vmul.f32 %v1383, %v1037
    %v1391 = vmul.f32 %v1386, %v1038
    %v1392 = vmul.f32 %v1382, %v1388
    %v1393 = vmul.f32 %v1385, %v1389
    %v1394 = vadd.f32 %v1390, %v1392
    %v1395 = vadd.f32 %v1391, %v1393
    %v1396 = vtanh.pop %v1394
    %v1397 = vtanh.pop %v1395
    %v1398 = vmul.f32 %v1384, %v1396
    %v1399 = vmul.f32 %v1387, %v1397
    %v1400 = vpack.c.bf16 %v1399, %v1398
    %s1401 = scalar_lea.vmem [#allocation4], 128
    %v1402 = vld [vmem:[%s1401] sm:$0xff]
    %v1403 = vld [vmem:[%s1401 + $0x8] sm:$0xff]
    %v1404 = vld [vmem:[%s1401 + $0x10] sm:$0xff]
    %v1405 = vld [vmem:[%s1401 + $0x18] sm:$0xff]
    %v1406 = vld [vmem:[%s1401 + $0x20] sm:$0xff]
    %v1407 = vld [vmem:[%s1401 + $0x28] sm:$0xff]
    %v1408 = vld [vmem:[%s1401 + $0x30] sm:$0xff]
    %v1409 = vld [vmem:[%s1401 + $0x38] sm:$0xff]
    %1410 = vmatprep.subr.bf16.mxu0 %v313
    %1411 = vmatpush1.bf16.msra.mxu0 %v312
    %1412 = vmatprep.subr.bf16.mxu0 %v317
    %1413 = vmatpush1.bf16.msra.mxu0 %v316
    %1414 = vmatprep.subr.bf16.mxu0 %v321
    %1415 = vmatpush1.bf16.msra.mxu0 %v320
    %1416 = vmatprep.subr.bf16.mxu0 %v325
    %1417 = vmatpush1.bf16.msra.mxu0 %v324
    %1418 = vmatprep.subr.bf16.mxu0 %v329
    %1419 = vmatpush1.bf16.msra.mxu0 %v328
    %1420 = vmatprep.subr.bf16.mxu0 %v333
    %1421 = vmatpush1.bf16.msra.mxu0 %v332
    %1422 = vmatprep.subr.bf16.mxu0 %v337
    %1423 = vmatpush1.bf16.msra.mxu0 %v336
    %1424 = vmatprep.subr.bf16.mxu0 %v341
    %1425 = vmatpush1.bf16.msra.mxu0 %v340
    %1426 = vmatprep.subr.bf16.mxu0 0
    %1427 = vmatpush1.bf16.msra.mxu0 0
    %1428 = vmatprep.subr.bf16.mxu0 0
    %1429 = vmatpush1.bf16.msra.mxu0 0
    %1430 = vmatprep.subr.bf16.mxu0 0
    %1431 = vmatpush1.bf16.msra.mxu0 0
    %1432 = vmatprep.subr.bf16.mxu0 0
    %1433 = vmatpush1.bf16.msra.mxu0 0
    %1434 = vmatprep.subr.bf16.mxu0 0
    %1435 = vmatpush1.bf16.msra.mxu0 0
    %1436 = vmatprep.subr.bf16.mxu0 0
    %1437 = vmatpush1.bf16.msra.mxu0 0
    %1438 = vmatprep.subr.bf16.mxu0 0
    %1439 = vmatpush1.bf16.msra.mxu0 0
    %1440 = vmatprep.subr.bf16.mxu0 0
    %1441 = vmatpush1.bf16.msra.mxu0 0
    %1442 = vmatprep.mubr.bf16.mxu0 0
    %1443 = vmatmul.mubr.bf16.gmra.mrb[0].mxu0 %v1183
    %v1444 = vpop.f32.mrb[0].mxu0
    %v1445 = vadd.f32 0.0, %v1444
    %v1446 = vpop.f32.mrb[0].mxu0
    %v1447 = vadd.f32 0.0, %v1446
    %v1448 = vpop.f32.mrb[0].mxu0
    %v1449 = vadd.f32 0.0, %v1448
    %v1450 = vpop.f32.mrb[0].mxu0
    %v1451 = vadd.f32 0.0, %v1450
    %1452 = vdwg.mxu0
    %1453 = vmatprep.subr.bf16.mxu0 %v315
    %1454 = vmatpush1.bf16.msra.mxu0 %v314
    %1455 = vmatprep.subr.bf16.mxu0 %v319
    %1456 = vmatpush1.bf16.msra.mxu0 %v318
    %1457 = vmatprep.subr.bf16.mxu0 %v323
    %1458 = vmatpush1.bf16.msra.mxu0 %v322
    %1459 = vmatprep.subr.bf16.mxu0 %v327
    %1460 = vmatpush1.bf16.msra.mxu0 %v326
    %1461 = vmatprep.subr.bf16.mxu0 %v331
    %1462 = vmatpush1.bf16.msra.mxu0 %v330
    %1463 = vmatprep.subr.bf16.mxu0 %v335
    %1464 = vmatpush1.bf16.msra.mxu0 %v334
    %1465 = vmatprep.subr.bf16.mxu0 %v339
    %1466 = vmatpush1.bf16.msra.mxu0 %v338
    %1467 = vmatprep.subr.bf16.mxu0 %v343
    %1468 = vmatpush1.bf16.msra.mxu0 %v342
    %1469 = vmatprep.subr.bf16.mxu0 0
    %1470 = vmatpush1.bf16.msra.mxu0 0
    %1471 = vmatprep.subr.bf16.mxu0 0
    %1472 = vmatpush1.bf16.msra.mxu0 0
    %1473 = vmatprep.subr.bf16.mxu0 0
    %1474 = vmatpush1.bf16.msra.mxu0 0
    %1475 = vmatprep.subr.bf16.mxu0 0
    %1476 = vmatpush1.bf16.msra.mxu0 0
    %1477 = vmatprep.subr.bf16.mxu0 0
    %1478 = vmatpush1.bf16.msra.mxu0 0
    %1479 = vmatprep.subr.bf16.mxu0 0
    %1480 = vmatpush1.bf16.msra.mxu0 0
    %1481 = vmatprep.subr.bf16.mxu0 0
    %1482 = vmatpush1.bf16.msra.mxu0 0
    %1483 = vmatprep.subr.bf16.mxu0 0
    %1484 = vmatpush1.bf16.msra.mxu0 0
    %1485 = vmatprep.mubr.bf16.mxu0 0
    %1486 = vmatmul.mubr.bf16.gmra.mrb[0].mxu0 %v1183
    %v1487 = vpop.f32.mrb[0].mxu0
    %v1488 = vadd.f32 0.0, %v1487
    %v1489 = vpop.f32.mrb[0].mxu0
    %v1490 = vadd.f32 0.0, %v1489
    %v1491 = vpop.f32.mrb[0].mxu0
    %v1492 = vadd.f32 0.0, %v1491
    %v1493 = vpop.f32.mrb[0].mxu0
    %v1494 = vadd.f32 0.0, %v1493
    %1495 = vdwg.mxu0
    %v1496 = vadd.f32 %v1402, %v1445
    %v1497 = vadd.f32 %v1403, %v1447
    %v1498 = vadd.f32 %v1404, %v1488
    %v1499 = vadd.f32 %v1405, %v1490
    %v1500 = vadd.f32 %v1406, %v1449
    %v1501 = vadd.f32 %v1407, %v1451
    %v1502 = vadd.f32 %v1408, %v1492
    %v1503 = vadd.f32 %v1409, %v1494
    %v1504 = vmul.f32 %v1496, 0.5
    %v1505 = vmul.f32 %v1497, 0.5
    %v1506 = vmul.f32 %v1498, 0.5
    %v1507 = vmul.f32 %v1500, 0.5
    %v1508 = vmul.f32 %v1501, 0.5
    %v1509 = vmul.f32 %v1502, 0.5
    %v1510 = vtanh.pop %v1504
    %v1511 = vtanh.pop %v1505
    %v1512 = vtanh.pop %v1506
    %v1513 = vtanh.pop %v1507
    %v1514 = vtanh.pop %v1508
    %v1515 = vtanh.pop %v1509
    %v1516 = vadd.f32 %v1510, 1.0
    %v1517 = vadd.f32 %v1511, 1.0
    %v1518 = vadd.f32 %v1512, 1.0
    %v1519 = vadd.f32 %v1513, 1.0
    %v1520 = vadd.f32 %v1514, 1.0
    %v1521 = vadd.f32 %v1515, 1.0
    %v1522 = vmul.f32 %v1516, 0.5
    %v1523 = vmul.f32 %v1517, 0.5
    %v1524 = vmul.f32 %v1518, 0.5
    %v1525 = vmul.f32 %v1519, 0.5
    %v1526 = vmul.f32 %v1520, 0.5
    %v1527 = vmul.f32 %v1521, 0.5
    %v1528 = vtanh.pop %v1499
    %v1529 = vtanh.pop %v1503
    %v1530 = vmul.f32 %v1523, %v1177
    %v1531 = vmul.f32 %v1526, %v1178
    %v1532 = vmul.f32 %v1522, %v1528
    %v1533 = vmul.f32 %v1525, %v1529
    %v1534 = vadd.f32 %v1530, %v1532
    %v1535 = vadd.f32 %v1531, %v1533
    %v1536 = vtanh.pop %v1534
    %v1537 = vtanh.pop %v1535
    %v1538 = vmul.f32 %v1524, %v1536
    %v1539 = vmul.f32 %v1527, %v1537
    %v1540 = vpack.c.bf16 %v1539, %v1538
    %1541 = vmatprep.subr.bf16.mxu0 %v604
    %1542 = vmatpush1.bf16.msra.mxu0 %v603
    %1543 = vmatprep.subr.bf16.mxu0 %v608
    %1544 = vmatpush1.bf16.msra.mxu0 %v607
    %1545 = vmatprep.subr.bf16.mxu0 %v612
    %1546 = vmatpush1.bf16.msra.mxu0 %v611
    %1547 = vmatprep.subr.bf16.mxu0 %v616
    %1548 = vmatpush1.bf16.msra.mxu0 %v615
    %1549 = vmatprep.subr.bf16.mxu0 %v620
    %1550 = vmatpush1.bf16.msra.mxu0 %v619
    %1551 = vmatprep.subr.bf16.mxu0 %v624
    %1552 = vmatpush1.bf16.msra.mxu0 %v623
    %1553 = vmatprep.subr.bf16.mxu0 %v628
    %1554 = vmatpush1.bf16.msra.mxu0 %v627
    %1555 = vmatprep.subr.bf16.mxu0 %v632
    %1556 = vmatpush1.bf16.msra.mxu0 %v631
    %1557 = vmatprep.subr.bf16.mxu0 0
    %1558 = vmatpush1.bf16.msra.mxu0 0
    %1559 = vmatprep.subr.bf16.mxu0 0
    %1560 = vmatpush1.bf16.msra.mxu0 0
    %1561 = vmatprep.subr.bf16.mxu0 0
    %1562 = vmatpush1.bf16.msra.mxu0 0
    %1563 = vmatprep.subr.bf16.mxu0 0
    %1564 = vmatpush1.bf16.msra.mxu0 0
    %1565 = vmatprep.subr.bf16.mxu0 0
    %1566 = vmatpush1.bf16.msra.mxu0 0
    %1567 = vmatprep.subr.bf16.mxu0 0
    %1568 = vmatpush1.bf16.msra.mxu0 0
    %1569 = vmatprep.subr.bf16.mxu0 0
    %1570 = vmatpush1.bf16.msra.mxu0 0
    %1571 = vmatprep.subr.bf16.mxu0 0
    %1572 = vmatpush1.bf16.msra.mxu0 0
    %1573 = vmatprep.mubr.bf16.mxu0 0
    %1574 = vmatmul.mubr.bf16.gmra.mrb[0].mxu0 %v1540
    %v1575 = vpop.f32.mrb[0].mxu0
    %v1576 = vadd.f32 0.0, %v1575
    %v1577 = vpop.f32.mrb[0].mxu0
    %v1578 = vadd.f32 0.0, %v1577
    %v1579 = vpop.f32.mrb[0].mxu0
    %v1580 = vadd.f32 0.0, %v1579
    %v1581 = vpop.f32.mrb[0].mxu0
    %v1582 = vadd.f32 0.0, %v1581
    %1583 = vdwg.mxu0
    %1584 = vmatprep.subr.bf16.mxu0 %v606
    %1585 = vmatpush1.bf16.msra.mxu0 %v605
    %1586 = vmatprep.subr.bf16.mxu0 %v610
    %1587 = vmatpush1.bf16.msra.mxu0 %v609
    %1588 = vmatprep.subr.bf16.mxu0 %v614
    %1589 = vmatpush1.bf16.msra.mxu0 %v613
    %1590 = vmatprep.subr.bf16.mxu0 %v618
    %1591 = vmatpush1.bf16.msra.mxu0 %v617
    %1592 = vmatprep.subr.bf16.mxu0 %v622
    %1593 = vmatpush1.bf16.msra.mxu0 %v621
    %1594 = vmatprep.subr.bf16.mxu0 %v626
    %1595 = vmatpush1.bf16.msra.mxu0 %v625
    %1596 = vmatprep.subr.bf16.mxu0 %v630
    %1597 = vmatpush1.bf16.msra.mxu0 %v629
    %1598 = vmatprep.subr.bf16.mxu0 %v634
    %1599 = vmatpush1.bf16.msra.mxu0 %v633
    %1600 = vmatprep.subr.bf16.mxu0 0
    %1601 = vmatpush1.bf16.msra.mxu0 0
    %1602 = vmatprep.subr.bf16.mxu0 0
    %1603 = vmatpush1.bf16.msra.mxu0 0
    %1604 = vmatprep.subr.bf16.mxu0 0
    %1605 = vmatpush1.bf16.msra.mxu0 0
    %1606 = vmatprep.subr.bf16.mxu0 0
    %1607 = vmatpush1.bf16.msra.mxu0 0
    %1608 = vmatprep.subr.bf16.mxu0 0
    %1609 = vmatpush1.bf16.msra.mxu0 0
    %1610 = vmatprep.subr.bf16.mxu0 0
    %1611 = vmatpush1.bf16.msra.mxu0 0
    %1612 = vmatprep.subr.bf16.mxu0 0
    %1613 = vmatpush1.bf16.msra.mxu0 0
    %1614 = vmatprep.subr.bf16.mxu0 0
    %1615 = vmatpush1.bf16.msra.mxu0 0
    %1616 = vmatprep.mubr.bf16.mxu0 0
    %1617 = vmatmul.mubr.bf16.gmra.mrb[0].mxu0 %v1540
    %v1618 = vpop.f32.mrb[0].mxu0
    %v1619 = vadd.f32 0.0, %v1618
    %v1620 = vpop.f32.mrb[0].mxu0
    %v1621 = vadd.f32 0.0, %v1620
    %v1622 = vpop.f32.mrb[0].mxu0
    %v1623 = vadd.f32 0.0, %v1622
    %v1624 = vpop.f32.mrb[0].mxu0
    %v1625 = vadd.f32 0.0, %v1624
    %1626 = vdwg.mxu0
    %1627 = vmatprep.subr.bf16.mxu0 %v850
    %1628 = vmatpush1.bf16.msra.mxu0 %v849
    %1629 = vmatprep.subr.bf16.mxu0 %v854
    %1630 = vmatpush1.bf16.msra.mxu0 %v853
    %1631 = vmatprep.subr.bf16.mxu0 %v858
    %1632 = vmatpush1.bf16.msra.mxu0 %v857
    %1633 = vmatprep.subr.bf16.mxu0 %v862
    %1634 = vmatpush1.bf16.msra.mxu0 %v861
    %1635 = vmatprep.subr.bf16.mxu0 %v866
    %1636 = vmatpush1.bf16.msra.mxu0 %v865
    %1637 = vmatprep.subr.bf16.mxu0 %v870
    %1638 = vmatpush1.bf16.msra.mxu0 %v869
    %1639 = vmatprep.subr.bf16.mxu0 %v874
    %1640 = vmatpush1.bf16.msra.mxu0 %v873
    %1641 = vmatprep.subr.bf16.mxu0 %v878
    %1642 = vmatpush1.bf16.msra.mxu0 %v877
    %1643 = vmatprep.subr.bf16.mxu0 0
    %1644 = vmatpush1.bf16.msra.mxu0 0
    %1645 = vmatprep.subr.bf16.mxu0 0
    %1646 = vmatpush1.bf16.msra.mxu0 0
    %1647 = vmatprep.subr.bf16.mxu0 0
    %1648 = vmatpush1.bf16.msra.mxu0 0
    %1649 = vmatprep.subr.bf16.mxu0 0
    %1650 = vmatpush1.bf16.msra.mxu0 0
    %1651 = vmatprep.subr.bf16.mxu0 0
    %1652 = vmatpush1.bf16.msra.mxu0 0
    %1653 = vmatprep.subr.bf16.mxu0 0
    %1654 = vmatpush1.bf16.msra.mxu0 0
    %1655 = vmatprep.subr.bf16.mxu0 0
    %1656 = vmatpush1.bf16.msra.mxu0 0
    %1657 = vmatprep.subr.bf16.mxu0 0
    %1658 = vmatpush1.bf16.msra.mxu0 0
    %1659 = vmatprep.mubr.bf16.mxu0 0
    %1660 = vmatmul.mubr.bf16.gmra.mrb[0].mxu0 %v1400
    %v1661 = vpop.f32.mrb[0].mxu0
    %v1662 = vadd.f32 %v1576, %v1661
    %v1663 = vpop.f32.mrb[0].mxu0
    %v1664 = vadd.f32 %v1578, %v1663
    %v1665 = vpop.f32.mrb[0].mxu0
    %v1666 = vadd.f32 %v1580, %v1665
    %v1667 = vpop.f32.mrb[0].mxu0
    %v1668 = vadd.f32 %v1582, %v1667
    %1669 = vdwg.mxu0
    %1670 = vmatprep.subr.bf16.mxu0 %v852
    %1671 = vmatpush1.bf16.msra.mxu0 %v851
    %1672 = vmatprep.subr.bf16.mxu0 %v856
    %1673 = vmatpush1.bf16.msra.mxu0 %v855
    %1674 = vmatprep.subr.bf16.mxu0 %v860
    %1675 = vmatpush1.bf16.msra.mxu0 %v859
    %1676 = vmatprep.subr.bf16.mxu0 %v864
    %1677 = vmatpush1.bf16.msra.mxu0 %v863
    %1678 = vmatprep.subr.bf16.mxu0 %v868
    %1679 = vmatpush1.bf16.msra.mxu0 %v867
    %1680 = vmatprep.subr.bf16.mxu0 %v872
    %1681 = vmatpush1.bf16.msra.mxu0 %v871
    %1682 = vmatprep.subr.bf16.mxu0 %v876
    %1683 = vmatpush1.bf16.msra.mxu0 %v875
    %1684 = vmatprep.subr.bf16.mxu0 %v880
    %1685 = vmatpush1.bf16.msra.mxu0 %v879
    %1686 = vmatprep.subr.bf16.mxu0 0
    %1687 = vmatpush1.bf16.msra.mxu0 0
    %1688 = vmatprep.subr.bf16.mxu0 0
    %1689 = vmatpush1.bf16.msra.mxu0 0
    %1690 = vmatprep.subr.bf16.mxu0 0
    %1691 = vmatpush1.bf16.msra.mxu0 0
    %1692 = vmatprep.subr.bf16.mxu0 0
    %1693 = vmatpush1.bf16.msra.mxu0 0
    %1694 = vmatprep.subr.bf16.mxu0 0
    %1695 = vmatpush1.bf16.msra.mxu0 0
    %1696 = vmatprep.subr.bf16.mxu0 0
    %1697 = vmatpush1.bf16.msra.mxu0 0
    %1698 = vmatprep.subr.bf16.mxu0 0
    %1699 = vmatpush1.bf16.msra.mxu0 0
    %1700 = vmatprep.subr.bf16.mxu0 0
    %1701 = vmatpush1.bf16.msra.mxu0 0
    %1702 = vmatprep.mubr.bf16.mxu0 0
    %1703 = vmatmul.mubr.bf16.gmra.mrb[0].mxu0 %v1400
    %v1704 = vpop.f32.mrb[0].mxu0
    %v1705 = vadd.f32 %v1619, %v1704
    %v1706 = vpop.f32.mrb[0].mxu0
    %v1707 = vadd.f32 %v1621, %v1706
    %v1708 = vpop.f32.mrb[0].mxu0
    %v1709 = vadd.f32 %v1623, %v1708
    %v1710 = vpop.f32.mrb[0].mxu0
    %v1711 = vadd.f32 %v1625, %v1710
    %1712 = vdwg.mxu0
    %v1713 = vadd.f32 %v1662, %v191
    %v1714 = vadd.f32 %v1664, %v195
    %v1715 = vadd.f32 %v1705, %v199
    %v1716 = vadd.f32 %v1707, %v203
    %v1717 = vadd.f32 %v1666, %v191
    %v1718 = vadd.f32 %v1668, %v195
    %v1719 = vadd.f32 %v1709, %v199
    %v1720 = vadd.f32 %v1711, %v203
    %v1721 = vmul.f32 %v1713, 0.5
    %v1722 = vmul.f32 %v1714, 0.5
    %v1723 = vmul.f32 %v1715, 0.5
    %v1724 = vmul.f32 %v1717, 0.5
    %v1725 = vmul.f32 %v1718, 0.5
    %v1726 = vmul.f32 %v1719, 0.5
    %v1727 = vtanh.pop %v1721
    %v1728 = vtanh.pop %v1722
    %v1729 = vtanh.pop %v1723
    %v1730 = vtanh.pop %v1724
    %v1731 = vtanh.pop %v1725
    %v1732 = vtanh.pop %v1726
    %v1733 = vadd.f32 %v1727, 1.0
    %v1734 = vadd.f32 %v1728, 1.0
    %v1735 = vadd.f32 %v1729, 1.0
    %v1736 = vadd.f32 %v1730, 1.0
    %v1737 = vadd.f32 %v1731, 1.0
    %v1738 = vadd.f32 %v1732, 1.0
    %v1739 = vmul.f32 %v1733, 0.5
    %v1740 = vmul.f32 %v1734, 0.5
    %v1741 = vmul.f32 %v1735, 0.5
    %v1742 = vmul.f32 %v1736, 0.5
    %v1743 = vmul.f32 %v1737, 0.5
    %v1744 = vmul.f32 %v1738, 0.5
    %v1745 = vtanh.pop %v1716
    %v1746 = vtanh.pop %v1720
    %v1747 = vmul.f32 %v1740, %v1394
    %v1748 = vmul.f32 %v1743, %v1395
    %v1749 = vmul.f32 %v1739, %v1745
    %v1750 = vmul.f32 %v1742, %v1746
    %v1751 = vadd.f32 %v1747, %v1749
    %v1752 = vadd.f32 %v1748, %v1750
    %v1753 = vtanh.pop %v1751
    %v1754 = vtanh.pop %v1752
    %v1755 = vmul.f32 %v1741, %v1753
    %v1756 = vmul.f32 %v1744, %v1754
    %v1757 = vpack.c.bf16 %v1756, %v1755
    %s1758 = scalar_lea.vmem [#allocation4], 192
    %v1759 = vld [vmem:[%s1758] sm:$0xff]
    %v1760 = vld [vmem:[%s1758 + $0x8] sm:$0xff]
    %v1761 = vld [vmem:[%s1758 + $0x10] sm:$0xff]
    %v1762 = vld [vmem:[%s1758 + $0x18] sm:$0xff]
    %v1763 = vld [vmem:[%s1758 + $0x20] sm:$0xff]
    %v1764 = vld [vmem:[%s1758 + $0x28] sm:$0xff]
    %v1765 = vld [vmem:[%s1758 + $0x30] sm:$0xff]
    %v1766 = vld [vmem:[%s1758 + $0x38] sm:$0xff]
    %1767 = vmatprep.subr.bf16.mxu0 %v313
    %1768 = vmatpush1.bf16.msra.mxu0 %v312
    %1769 = vmatprep.subr.bf16.mxu0 %v317
    %1770 = vmatpush1.bf16.msra.mxu0 %v316
    %1771 = vmatprep.subr.bf16.mxu0 %v321
    %1772 = vmatpush1.bf16.msra.mxu0 %v320
    %1773 = vmatprep.subr.bf16.mxu0 %v325
    %1774 = vmatpush1.bf16.msra.mxu0 %v324
    %1775 = vmatprep.subr.bf16.mxu0 %v329
    %1776 = vmatpush1.bf16.msra.mxu0 %v328
    %1777 = vmatprep.subr.bf16.mxu0 %v333
    %1778 = vmatpush1.bf16.msra.mxu0 %v332
    %1779 = vmatprep.subr.bf16.mxu0 %v337
    %1780 = vmatpush1.bf16.msra.mxu0 %v336
    %1781 = vmatprep.subr.bf16.mxu0 %v341
    %1782 = vmatpush1.bf16.msra.mxu0 %v340
    %1783 = vmatprep.subr.bf16.mxu0 0
    %1784 = vmatpush1.bf16.msra.mxu0 0
    %1785 = vmatprep.subr.bf16.mxu0 0
    %1786 = vmatpush1.bf16.msra.mxu0 0
    %1787 = vmatprep.subr.bf16.mxu0 0
    %1788 = vmatpush1.bf16.msra.mxu0 0
    %1789 = vmatprep.subr.bf16.mxu0 0
    %1790 = vmatpush1.bf16.msra.mxu0 0
    %1791 = vmatprep.subr.bf16.mxu0 0
    %1792 = vmatpush1.bf16.msra.mxu0 0
    %1793 = vmatprep.subr.bf16.mxu0 0
    %1794 = vmatpush1.bf16.msra.mxu0 0
    %1795 = vmatprep.subr.bf16.mxu0 0
    %1796 = vmatpush1.bf16.msra.mxu0 0
    %1797 = vmatprep.subr.bf16.mxu0 0
    %1798 = vmatpush1.bf16.msra.mxu0 0
    %1799 = vmatprep.mubr.bf16.mxu0 0
    %1800 = vmatmul.mubr.bf16.gmra.mrb[0].mxu0 %v1540
    %v1801 = vpop.f32.mrb[0].mxu0
    %v1802 = vadd.f32 0.0, %v1801
    %v1803 = vpop.f32.mrb[0].mxu0
    %v1804 = vadd.f32 0.0, %v1803
    %v1805 = vpop.f32.mrb[0].mxu0
    %v1806 = vadd.f32 0.0, %v1805
    %v1807 = vpop.f32.mrb[0].mxu0
    %v1808 = vadd.f32 0.0, %v1807
    %1809 = vdwg.mxu0
    %1810 = vmatprep.subr.bf16.mxu0 %v315
    %1811 = vmatpush1.bf16.msra.mxu0 %v314
    %1812 = vmatprep.subr.bf16.mxu0 %v319
    %1813 = vmatpush1.bf16.msra.mxu0 %v318
    %1814 = vmatprep.subr.bf16.mxu0 %v323
    %1815 = vmatpush1.bf16.msra.mxu0 %v322
    %1816 = vmatprep.subr.bf16.mxu0 %v327
    %1817 = vmatpush1.bf16.msra.mxu0 %v326
    %1818 = vmatprep.subr.bf16.mxu0 %v331
    %1819 = vmatpush1.bf16.msra.mxu0 %v330
    %1820 = vmatprep.subr.bf16.mxu0 %v335
    %1821 = vmatpush1.bf16.msra.mxu0 %v334
    %1822 = vmatprep.subr.bf16.mxu0 %v339
    %1823 = vmatpush1.bf16.msra.mxu0 %v338
    %1824 = vmatprep.subr.bf16.mxu0 %v343
    %1825 = vmatpush1.bf16.msra.mxu0 %v342
    %1826 = vmatprep.subr.bf16.mxu0 0
    %1827 = vmatpush1.bf16.msra.mxu0 0
    %1828 = vmatprep.subr.bf16.mxu0 0
    %1829 = vmatpush1.bf16.msra.mxu0 0
    %1830 = vmatprep.subr.bf16.mxu0 0
    %1831 = vmatpush1.bf16.msra.mxu0 0
    %1832 = vmatprep.subr.bf16.mxu0 0
    %1833 = vmatpush1.bf16.msra.mxu0 0
    %1834 = vmatprep.subr.bf16.mxu0 0
    %1835 = vmatpush1.bf16.msra.mxu0 0
    %1836 = vmatprep.subr.bf16.mxu0 0
    %1837 = vmatpush1.bf16.msra.mxu0 0
    %1838 = vmatprep.subr.bf16.mxu0 0
    %1839 = vmatpush1.bf16.msra.mxu0 0
    %1840 = vmatprep.subr.bf16.mxu0 0
    %1841 = vmatpush1.bf16.msra.mxu0 0
    %1842 = vmatprep.mubr.bf16.mxu0 0
    %1843 = vmatmul.mubr.bf16.gmra.mrb[0].mxu0 %v1540
    %v1844 = vpop.f32.mrb[0].mxu0
    %v1845 = vadd.f32 0.0, %v1844
    %v1846 = vpop.f32.mrb[0].mxu0
    %v1847 = vadd.f32 0.0, %v1846
    %v1848 = vpop.f32.mrb[0].mxu0
    %v1849 = vadd.f32 0.0, %v1848
    %v1850 = vpop.f32.mrb[0].mxu0
    %v1851 = vadd.f32 0.0, %v1850
    %1852 = vdwg.mxu0
    %v1853 = vadd.f32 %v1759, %v1802
    %v1854 = vadd.f32 %v1760, %v1804
    %v1855 = vadd.f32 %v1761, %v1845
    %v1856 = vadd.f32 %v1762, %v1847
    %v1857 = vadd.f32 %v1763, %v1806
    %v1858 = vadd.f32 %v1764, %v1808
    %v1859 = vadd.f32 %v1765, %v1849
    %v1860 = vadd.f32 %v1766, %v1851
    %v1861 = vmul.f32 %v1853, 0.5
    %v1862 = vmul.f32 %v1854, 0.5
    %v1863 = vmul.f32 %v1855, 0.5
    %v1864 = vmul.f32 %v1857, 0.5
    %v1865 = vmul.f32 %v1858, 0.5
    %v1866 = vmul.f32 %v1859, 0.5
    %v1867 = vtanh.pop %v1861
    %v1868 = vtanh.pop %v1862
    %v1869 = vtanh.pop %v1863
    %v1870 = vtanh.pop %v1864
    %v1871 = vtanh.pop %v1865
    %v1872 = vtanh.pop %v1866
    %v1873 = vadd.f32 %v1867, 1.0
    %v1874 = vadd.f32 %v1868, 1.0
    %v1875 = vadd.f32 %v1869, 1.0
    %v1876 = vadd.f32 %v1870, 1.0
    %v1877 = vadd.f32 %v1871, 1.0
    %v1878 = vadd.f32 %v1872, 1.0
    %v1879 = vmul.f32 %v1873, 0.5
    %v1880 = vmul.f32 %v1874, 0.5
    %v1881 = vmul.f32 %v1875, 0.5
    %v1882 = vmul.f32 %v1876, 0.5
    %v1883 = vmul.f32 %v1877, 0.5
    %v1884 = vmul.f32 %v1878, 0.5
    %v1885 = vtanh.pop %v1856
    %v1886 = vtanh.pop %v1860
    %v1887 = vmul.f32 %v1880, %v1534
    %v1888 = vmul.f32 %v1883, %v1535
    %v1889 = vmul.f32 %v1879, %v1885
    %v1890 = vmul.f32 %v1882, %v1886
    %v1891 = vadd.f32 %v1887, %v1889
    %v1892 = vadd.f32 %v1888, %v1890
    %v1893 = vtanh.pop %v1891
    %v1894 = vtanh.pop %v1892
    %v1895 = vmul.f32 %v1881, %v1893
    %v1896 = vmul.f32 %v1884, %v1894
    %v1897 = vpack.c.bf16 %v1896, %v1895
    %1898 = vmatprep.subr.bf16.mxu0 %v604
    %1899 = vmatpush1.bf16.msra.mxu0 %v603
    %1900 = vmatprep.subr.bf16.mxu0 %v608
    %1901 = vmatpush1.bf16.msra.mxu0 %v607
    %1902 = vmatprep.subr.bf16.mxu0 %v612
    %1903 = vmatpush1.bf16.msra.mxu0 %v611
    %1904 = vmatprep.subr.bf16.mxu0 %v616
    %1905 = vmatpush1.bf16.msra.mxu0 %v615
    %1906 = vmatprep.subr.bf16.mxu0 %v620
    %1907 = vmatpush1.bf16.msra.mxu0 %v619
    %1908 = vmatprep.subr.bf16.mxu0 %v624
    %1909 = vmatpush1.bf16.msra.mxu0 %v623
    %1910 = vmatprep.subr.bf16.mxu0 %v628
    %1911 = vmatpush1.bf16.msra.mxu0 %v627
    %1912 = vmatprep.subr.bf16.mxu0 %v632
    %1913 = vmatpush1.bf16.msra.mxu0 %v631
    %1914 = vmatprep.subr.bf16.mxu0 0
    %1915 = vmatpush1.bf16.msra.mxu0 0
    %1916 = vmatprep.subr.bf16.mxu0 0
    %1917 = vmatpush1.bf16.msra.mxu0 0
    %1918 = vmatprep.subr.bf16.mxu0 0
    %1919 = vmatpush1.bf16.msra.mxu0 0
    %1920 = vmatprep.subr.bf16.mxu0 0
    %1921 = vmatpush1.bf16.msra.mxu0 0
    %1922 = vmatprep.subr.bf16.mxu0 0
    %1923 = vmatpush1.bf16.msra.mxu0 0
    %1924 = vmatprep.subr.bf16.mxu0 0
    %1925 = vmatpush1.bf16.msra.mxu0 0
    %1926 = vmatprep.subr.bf16.mxu0 0
    %1927 = vmatpush1.bf16.msra.mxu0 0
    %1928 = vmatprep.subr.bf16.mxu0 0
    %1929 = vmatpush1.bf16.msra.mxu0 0
    %1930 = vmatprep.mubr.bf16.mxu0 0
    %1931 = vmatmul.mubr.bf16.gmra.mrb[0].mxu0 %v1897
    %v1932 = vpop.f32.mrb[0].mxu0
    %v1933 = vadd.f32 0.0, %v1932
    %v1934 = vpop.f32.mrb[0].mxu0
    %v1935 = vadd.f32 0.0, %v1934
    %v1936 = vpop.f32.mrb[0].mxu0
    %v1937 = vadd.f32 0.0, %v1936
    %v1938 = vpop.f32.mrb[0].mxu0
    %v1939 = vadd.f32 0.0, %v1938
    %1940 = vdwg.mxu0
    %1941 = vmatprep.subr.bf16.mxu0 %v606
    %1942 = vmatpush1.bf16.msra.mxu0 %v605
    %1943 = vmatprep.subr.bf16.mxu0 %v610
    %1944 = vmatpush1.bf16.msra.mxu0 %v609
    %1945 = vmatprep.subr.bf16.mxu0 %v614
    %1946 = vmatpush1.bf16.msra.mxu0 %v613
    %1947 = vmatprep.subr.bf16.mxu0 %v618
    %1948 = vmatpush1.bf16.msra.mxu0 %v617
    %1949 = vmatprep.subr.bf16.mxu0 %v622
    %1950 = vmatpush1.bf16.msra.mxu0 %v621
    %1951 = vmatprep.subr.bf16.mxu0 %v626
    %1952 = vmatpush1.bf16.msra.mxu0 %v625
    %1953 = vmatprep.subr.bf16.mxu0 %v630
    %1954 = vmatpush1.bf16.msra.mxu0 %v629
    %1955 = vmatprep.subr.bf16.mxu0 %v634
    %1956 = vmatpush1.bf16.msra.mxu0 %v633
    %1957 = vmatprep.subr.bf16.mxu0 0
    %1958 = vmatpush1.bf16.msra.mxu0 0
    %1959 = vmatprep.subr.bf16.mxu0 0
    %1960 = vmatpush1.bf16.msra.mxu0 0
    %1961 = vmatprep.subr.bf16.mxu0 0
    %1962 = vmatpush1.bf16.msra.mxu0 0
    %1963 = vmatprep.subr.bf16.mxu0 0
    %1964 = vmatpush1.bf16.msra.mxu0 0
    %1965 = vmatprep.subr.bf16.mxu0 0
    %1966 = vmatpush1.bf16.msra.mxu0 0
    %1967 = vmatprep.subr.bf16.mxu0 0
    %1968 = vmatpush1.bf16.msra.mxu0 0
    %1969 = vmatprep.subr.bf16.mxu0 0
    %1970 = vmatpush1.bf16.msra.mxu0 0
    %1971 = vmatprep.subr.bf16.mxu0 0
    %1972 = vmatpush1.bf16.msra.mxu0 0
    %1973 = vmatprep.mubr.bf16.mxu0 0
    %1974 = vmatmul.mubr.bf16.gmra.mrb[0].mxu0 %v1897
    %v1975 = vpop.f32.mrb[0].mxu0
    %v1976 = vadd.f32 0.0, %v1975
    %v1977 = vpop.f32.mrb[0].mxu0
    %v1978 = vadd.f32 0.0, %v1977
    %v1979 = vpop.f32.mrb[0].mxu0
    %v1980 = vadd.f32 0.0, %v1979
    %v1981 = vpop.f32.mrb[0].mxu0
    %v1982 = vadd.f32 0.0, %v1981
    %1983 = vdwg.mxu0
    %1984 = vmatprep.subr.bf16.mxu0 %v850
    %1985 = vmatpush1.bf16.msra.mxu0 %v849
    %1986 = vmatprep.subr.bf16.mxu0 %v854
    %1987 = vmatpush1.bf16.msra.mxu0 %v853
    %1988 = vmatprep.subr.bf16.mxu0 %v858
    %1989 = vmatpush1.bf16.msra.mxu0 %v857
    %1990 = vmatprep.subr.bf16.mxu0 %v862
    %1991 = vmatpush1.bf16.msra.mxu0 %v861
    %1992 = vmatprep.subr.bf16.mxu0 %v866
    %1993 = vmatpush1.bf16.msra.mxu0 %v865
    %1994 = vmatprep.subr.bf16.mxu0 %v870
    %1995 = vmatpush1.bf16.msra.mxu0 %v869
    %1996 = vmatprep.subr.bf16.mxu0 %v874
    %1997 = vmatpush1.bf16.msra.mxu0 %v873
    %1998 = vmatprep.subr.bf16.mxu0 %v878
    %1999 = vmatpush1.bf16.msra.mxu0 %v877
    %2000 = vmatprep.subr.bf16.mxu0 0
    %2001 = vmatpush1.bf16.msra.mxu0 0
    %2002 = vmatprep.subr.bf16.mxu0 0
    %2003 = vmatpush1.bf16.msra.mxu0 0
    %2004 = vmatprep.subr.bf16.mxu0 0
    %2005 = vmatpush1.bf16.msra.mxu0 0
    %2006 = vmatprep.subr.bf16.mxu0 0
    %2007 = vmatpush1.bf16.msra.mxu0 0
    %2008 = vmatprep.subr.bf16.mxu0 0
    %2009 = vmatpush1.bf16.msra.mxu0 0
    %2010 = vmatprep.subr.bf16.mxu0 0
    %2011 = vmatpush1.bf16.msra.mxu0 0
    %2012 = vmatprep.subr.bf16.mxu0 0
    %2013 = vmatpush1.bf16.msra.mxu0 0
    %2014 = vmatprep.subr.bf16.mxu0 0
    %2015 = vmatpush1.bf16.msra.mxu0 0
    %2016 = vmatprep.mubr.bf16.mxu0 0
    %2017 = vmatmul.mubr.bf16.gmra.mrb[0].mxu0 %v1757
    %v2018 = vpop.f32.mrb[0].mxu0
    %v2019 = vadd.f32 %v1933, %v2018
    %v2020 = vpop.f32.mrb[0].mxu0
    %v2021 = vadd.f32 %v1935, %v2020
    %v2022 = vpop.f32.mrb[0].mxu0
    %v2023 = vadd.f32 %v1937, %v2022
    %v2024 = vpop.f32.mrb[0].mxu0
    %v2025 = vadd.f32 %v1939, %v2024
    %2026 = vdwg.mxu0
    %2027 = vmatprep.subr.bf16.mxu0 %v852
    %2028 = vmatpush1.bf16.msra.mxu0 %v851
    %2029 = vmatprep.subr.bf16.mxu0 %v856
    %2030 = vmatpush1.bf16.msra.mxu0 %v855
    %2031 = vmatprep.subr.bf16.mxu0 %v860
    %2032 = vmatpush1.bf16.msra.mxu0 %v859
    %2033 = vmatprep.subr.bf16.mxu0 %v864
    %2034 = vmatpush1.bf16.msra.mxu0 %v863
    %2035 = vmatprep.subr.bf16.mxu0 %v868
    %2036 = vmatpush1.bf16.msra.mxu0 %v867
    %2037 = vmatprep.subr.bf16.mxu0 %v872
    %2038 = vmatpush1.bf16.msra.mxu0 %v871
    %2039 = vmatprep.subr.bf16.mxu0 %v876
    %2040 = vmatpush1.bf16.msra.mxu0 %v875
    %2041 = vmatprep.subr.bf16.mxu0 %v880
    %2042 = vmatpush1.bf16.msra.mxu0 %v879
    %2043 = vmatprep.subr.bf16.mxu0 0
    %2044 = vmatpush1.bf16.msra.mxu0 0
    %2045 = vmatprep.subr.bf16.mxu0 0
    %2046 = vmatpush1.bf16.msra.mxu0 0
    %2047 = vmatprep.subr.bf16.mxu0 0
    %2048 = vmatpush1.bf16.msra.mxu0 0
    %2049 = vmatprep.subr.bf16.mxu0 0
    %2050 = vmatpush1.bf16.msra.mxu0 0
    %2051 = vmatprep.subr.bf16.mxu0 0
    %2052 = vmatpush1.bf16.msra.mxu0 0
    %2053 = vmatprep.subr.bf16.mxu0 0
    %2054 = vmatpush1.bf16.msra.mxu0 0
    %2055 = vmatprep.subr.bf16.mxu0 0
    %2056 = vmatpush1.bf16.msra.mxu0 0
    %2057 = vmatprep.subr.bf16.mxu0 0
    %2058 = vmatpush1.bf16.msra.mxu0 0
    %2059 = vmatprep.mubr.bf16.mxu0 0
    %2060 = vmatmul.mubr.bf16.gmra.mrb[0].mxu0 %v1757
    %v2061 = vpop.f32.mrb[0].mxu0
    %v2062 = vadd.f32 %v1976, %v2061
    %v2063 = vpop.f32.mrb[0].mxu0
    %v2064 = vadd.f32 %v1978, %v2063
    %v2065 = vpop.f32.mrb[0].mxu0
    %v2066 = vadd.f32 %v1980, %v2065
    %v2067 = vpop.f32.mrb[0].mxu0
    %v2068 = vadd.f32 %v1982, %v2067
    %2069 = vdwg.mxu0
    %v2070 = vadd.f32 %v2019, %v191
    %v2071 = vadd.f32 %v2021, %v195
    %v2072 = vadd.f32 %v2062, %v199
    %v2073 = vadd.f32 %v2064, %v203
    %v2074 = vadd.f32 %v2023, %v191
    %v2075 = vadd.f32 %v2025, %v195
    %v2076 = vadd.f32 %v2066, %v199
    %v2077 = vadd.f32 %v2068, %v203
    %v2078 = vmul.f32 %v2070, 0.5
    %v2079 = vmul.f32 %v2071, 0.5
    %v2080 = vmul.f32 %v2072, 0.5
    %v2081 = vmul.f32 %v2074, 0.5
    %v2082 = vmul.f32 %v2075, 0.5
    %v2083 = vmul.f32 %v2076, 0.5
    %v2084 = vtanh.pop %v2078
    %v2085 = vtanh.pop %v2079
    %v2086 = vtanh.pop %v2080
    %v2087 = vtanh.pop %v2081
    %v2088 = vtanh.pop %v2082
    %v2089 = vtanh.pop %v2083
    %v2090 = vadd.f32 %v2084, 1.0
    %v2091 = vadd.f32 %v2085, 1.0
    %v2092 = vadd.f32 %v2086, 1.0
    %v2093 = vadd.f32 %v2087, 1.0
    %v2094 = vadd.f32 %v2088, 1.0
    %v2095 = vadd.f32 %v2089, 1.0
    %v2096 = vmul.f32 %v2090, 0.5
    %v2097 = vmul.f32 %v2091, 0.5
    %v2098 = vmul.f32 %v2092, 0.5
    %v2099 = vmul.f32 %v2093, 0.5
    %v2100 = vmul.f32 %v2094, 0.5
    %v2101 = vmul.f32 %v2095, 0.5
    %v2102 = vtanh.pop %v2073
    %v2103 = vtanh.pop %v2077
    %v2104 = vmul.f32 %v2097, %v1751
    %v2105 = vmul.f32 %v2100, %v1752
    %v2106 = vmul.f32 %v2096, %v2102
    %v2107 = vmul.f32 %v2099, %v2103
    %v2108 = vadd.f32 %v2104, %v2106
    %v2109 = vadd.f32 %v2105, %v2107
    %v2110 = vtanh.pop %v2108
    %v2111 = vtanh.pop %v2109
    %v2112 = vmul.f32 %v2098, %v2110
    %v2113 = vmul.f32 %v2101, %v2111
    %v2114 = vpack.c.bf16 %v2113, %v2112
    %s2115 = scalar_lea.vmem [#allocation4], 256
    %v2116 = vld [vmem:[%s2115] sm:$0xff]
    %v2117 = vld [vmem:[%s2115 + $0x8] sm:$0xff]
    %v2118 = vld [vmem:[%s2115 + $0x10] sm:$0xff]
    %v2119 = vld [vmem:[%s2115 + $0x18] sm:$0xff]
    %v2120 = vld [vmem:[%s2115 + $0x20] sm:$0xff]
    %v2121 = vld [vmem:[%s2115 + $0x28] sm:$0xff]
    %v2122 = vld [vmem:[%s2115 + $0x30] sm:$0xff]
    %v2123 = vld [vmem:[%s2115 + $0x38] sm:$0xff]
    %2124 = vmatprep.subr.bf16.mxu0 %v313
    %2125 = vmatpush1.bf16.msra.mxu0 %v312
    %2126 = vmatprep.subr.bf16.mxu0 %v317
    %2127 = vmatpush1.bf16.msra.mxu0 %v316
    %2128 = vmatprep.subr.bf16.mxu0 %v321
    %2129 = vmatpush1.bf16.msra.mxu0 %v320
    %2130 = vmatprep.subr.bf16.mxu0 %v325
    %2131 = vmatpush1.bf16.msra.mxu0 %v324
    %2132 = vmatprep.subr.bf16.mxu0 %v329
    %2133 = vmatpush1.bf16.msra.mxu0 %v328
    %2134 = vmatprep.subr.bf16.mxu0 %v333
    %2135 = vmatpush1.bf16.msra.mxu0 %v332
    %2136 = vmatprep.subr.bf16.mxu0 %v337
    %2137 = vmatpush1.bf16.msra.mxu0 %v336
    %2138 = vmatprep.subr.bf16.mxu0 %v341
    %2139 = vmatpush1.bf16.msra.mxu0 %v340
    %2140 = vmatprep.subr.bf16.mxu0 0
    %2141 = vmatpush1.bf16.msra.mxu0 0
    %2142 = vmatprep.subr.bf16.mxu0 0
    %2143 = vmatpush1.bf16.msra.mxu0 0
    %2144 = vmatprep.subr.bf16.mxu0 0
    %2145 = vmatpush1.bf16.msra.mxu0 0
    %2146 = vmatprep.subr.bf16.mxu0 0
    %2147 = vmatpush1.bf16.msra.mxu0 0
    %2148 = vmatprep.subr.bf16.mxu0 0
    %2149 = vmatpush1.bf16.msra.mxu0 0
    %2150 = vmatprep.subr.bf16.mxu0 0
    %2151 = vmatpush1.bf16.msra.mxu0 0
    %2152 = vmatprep.subr.bf16.mxu0 0
    %2153 = vmatpush1.bf16.msra.mxu0 0
    %2154 = vmatprep.subr.bf16.mxu0 0
    %2155 = vmatpush1.bf16.msra.mxu0 0
    %2156 = vmatprep.mubr.bf16.mxu0 0
    %2157 = vmatmul.mubr.bf16.gmra.mrb[0].mxu0 %v1897
    %v2158 = vpop.f32.mrb[0].mxu0
    %v2159 = vadd.f32 0.0, %v2158
    %v2160 = vpop.f32.mrb[0].mxu0
    %v2161 = vadd.f32 0.0, %v2160
    %v2162 = vpop.f32.mrb[0].mxu0
    %v2163 = vadd.f32 0.0, %v2162
    %v2164 = vpop.f32.mrb[0].mxu0
    %v2165 = vadd.f32 0.0, %v2164
    %2166 = vdwg.mxu0
    %2167 = vmatprep.subr.bf16.mxu0 %v315
    %2168 = vmatpush1.bf16.msra.mxu0 %v314
    %2169 = vmatprep.subr.bf16.mxu0 %v319
    %2170 = vmatpush1.bf16.msra.mxu0 %v318
    %2171 = vmatprep.subr.bf16.mxu0 %v323
    %2172 = vmatpush1.bf16.msra.mxu0 %v322
    %2173 = vmatprep.subr.bf16.mxu0 %v327
    %2174 = vmatpush1.bf16.msra.mxu0 %v326
    %2175 = vmatprep.subr.bf16.mxu0 %v331
    %2176 = vmatpush1.bf16.msra.mxu0 %v330
    %2177 = vmatprep.subr.bf16.mxu0 %v335
    %2178 = vmatpush1.bf16.msra.mxu0 %v334
    %2179 = vmatprep.subr.bf16.mxu0 %v339
    %2180 = vmatpush1.bf16.msra.mxu0 %v338
    %2181 = vmatprep.subr.bf16.mxu0 %v343
    %2182 = vmatpush1.bf16.msra.mxu0 %v342
    %2183 = vmatprep.subr.bf16.mxu0 0
    %2184 = vmatpush1.bf16.msra.mxu0 0
    %2185 = vmatprep.subr.bf16.mxu0 0
    %2186 = vmatpush1.bf16.msra.mxu0 0
    %2187 = vmatprep.subr.bf16.mxu0 0
    %2188 = vmatpush1.bf16.msra.mxu0 0
    %2189 = vmatprep.subr.bf16.mxu0 0
    %2190 = vmatpush1.bf16.msra.mxu0 0
    %2191 = vmatprep.subr.bf16.mxu0 0
    %2192 = vmatpush1.bf16.msra.mxu0 0
    %2193 = vmatprep.subr.bf16.mxu0 0
    %2194 = vmatpush1.bf16.msra.mxu0 0
    %2195 = vmatprep.subr.bf16.mxu0 0
    %2196 = vmatpush1.bf16.msra.mxu0 0
    %2197 = vmatprep.subr.bf16.mxu0 0
    %2198 = vmatpush1.bf16.msra.mxu0 0
    %2199 = vmatprep.mubr.bf16.mxu0 0
    %2200 = vmatmul.mubr.bf16.gmra.mrb[0].mxu0 %v1897
    %v2201 = vpop.f32.mrb[0].mxu0
    %v2202 = vadd.f32 0.0, %v2201
    %v2203 = vpop.f32.mrb[0].mxu0
    %v2204 = vadd.f32 0.0, %v2203
    %v2205 = vpop.f32.mrb[0].mxu0
    %v2206 = vadd.f32 0.0, %v2205
    %v2207 = vpop.f32.mrb[0].mxu0
    %v2208 = vadd.f32 0.0, %v2207
    %2209 = vdwg.mxu0
    %v2210 = vadd.f32 %v2116, %v2159
    %v2211 = vadd.f32 %v2117, %v2161
    %v2212 = vadd.f32 %v2118, %v2202
    %v2213 = vadd.f32 %v2119, %v2204
    %v2214 = vadd.f32 %v2120, %v2163
    %v2215 = vadd.f32 %v2121, %v2165
    %v2216 = vadd.f32 %v2122, %v2206
    %v2217 = vadd.f32 %v2123, %v2208
    %v2218 = vmul.f32 %v2210, 0.5
    %v2219 = vmul.f32 %v2211, 0.5
    %v2220 = vmul.f32 %v2212, 0.5
    %v2221 = vmul.f32 %v2214, 0.5
    %v2222 = vmul.f32 %v2215, 0.5
    %v2223 = vmul.f32 %v2216, 0.5
    %v2224 = vtanh.pop %v2218
    %v2225 = vtanh.pop %v2219
    %v2226 = vtanh.pop %v2220
    %v2227 = vtanh.pop %v2221
    %v2228 = vtanh.pop %v2222
    %v2229 = vtanh.pop %v2223
    %v2230 = vadd.f32 %v2224, 1.0
    %v2231 = vadd.f32 %v2225, 1.0
    %v2232 = vadd.f32 %v2226, 1.0
    %v2233 = vadd.f32 %v2227, 1.0
    %v2234 = vadd.f32 %v2228, 1.0
    %v2235 = vadd.f32 %v2229, 1.0
    %v2236 = vmul.f32 %v2230, 0.5
    %v2237 = vmul.f32 %v2231, 0.5
    %v2238 = vmul.f32 %v2232, 0.5
    %v2239 = vmul.f32 %v2233, 0.5
    %v2240 = vmul.f32 %v2234, 0.5
    %v2241 = vmul.f32 %v2235, 0.5
    %v2242 = vtanh.pop %v2213
    %v2243 = vtanh.pop %v2217
    %v2244 = vmul.f32 %v2237, %v1891
    %v2245 = vmul.f32 %v2240, %v1892
    %v2246 = vmul.f32 %v2236, %v2242
    %v2247 = vmul.f32 %v2239, %v2243
    %v2248 = vadd.f32 %v2244, %v2246
    %v2249 = vadd.f32 %v2245, %v2247
    %v2250 = vtanh.pop %v2248
    %v2251 = vtanh.pop %v2249
    %v2252 = vmul.f32 %v2238, %v2250
    %v2253 = vmul.f32 %v2241, %v2251
    %v2254 = vpack.c.bf16 %v2253, %v2252
    %2255 = vmatprep.subr.bf16.mxu0 %v604
    %2256 = vmatpush1.bf16.msra.mxu0 %v603
    %2257 = vmatprep.subr.bf16.mxu0 %v608
    %2258 = vmatpush1.bf16.msra.mxu0 %v607
    %2259 = vmatprep.subr.bf16.mxu0 %v612
    %2260 = vmatpush1.bf16.msra.mxu0 %v611
    %2261 = vmatprep.subr.bf16.mxu0 %v616
    %2262 = vmatpush1.bf16.msra.mxu0 %v615
    %2263 = vmatprep.subr.bf16.mxu0 %v620
    %2264 = vmatpush1.bf16.msra.mxu0 %v619
    %2265 = vmatprep.subr.bf16.mxu0 %v624
    %2266 = vmatpush1.bf16.msra.mxu0 %v623
    %2267 = vmatprep.subr.bf16.mxu0 %v628
    %2268 = vmatpush1.bf16.msra.mxu0 %v627
    %2269 = vmatprep.subr.bf16.mxu0 %v632
    %2270 = vmatpush1.bf16.msra.mxu0 %v631
    %2271 = vmatprep.subr.bf16.mxu0 0
    %2272 = vmatpush1.bf16.msra.mxu0 0
    %2273 = vmatprep.subr.bf16.mxu0 0
    %2274 = vmatpush1.bf16.msra.mxu0 0
    %2275 = vmatprep.subr.bf16.mxu0 0
    %2276 = vmatpush1.bf16.msra.mxu0 0
    %2277 = vmatprep.subr.bf16.mxu0 0
    %2278 = vmatpush1.bf16.msra.mxu0 0
    %2279 = vmatprep.subr.bf16.mxu0 0
    %2280 = vmatpush1.bf16.msra.mxu0 0
    %2281 = vmatprep.subr.bf16.mxu0 0
    %2282 = vmatpush1.bf16.msra.mxu0 0
    %2283 = vmatprep.subr.bf16.mxu0 0
    %2284 = vmatpush1.bf16.msra.mxu0 0
    %2285 = vmatprep.subr.bf16.mxu0 0
    %2286 = vmatpush1.bf16.msra.mxu0 0
    %2287 = vmatprep.mubr.bf16.mxu0 0
    %2288 = vmatmul.mubr.bf16.gmra.mrb[0].mxu0 %v2254
    %v2289 = vpop.f32.mrb[0].mxu0
    %v2290 = vadd.f32 0.0, %v2289
    %v2291 = vpop.f32.mrb[0].mxu0
    %v2292 = vadd.f32 0.0, %v2291
    %v2293 = vpop.f32.mrb[0].mxu0
    %v2294 = vadd.f32 0.0, %v2293
    %v2295 = vpop.f32.mrb[0].mxu0
    %v2296 = vadd.f32 0.0, %v2295
    %2297 = vdwg.mxu0
    %2298 = vmatprep.subr.bf16.mxu0 %v606
    %2299 = vmatpush1.bf16.msra.mxu0 %v605
    %2300 = vmatprep.subr.bf16.mxu0 %v610
    %2301 = vmatpush1.bf16.msra.mxu0 %v609
    %2302 = vmatprep.subr.bf16.mxu0 %v614
    %2303 = vmatpush1.bf16.msra.mxu0 %v613
    %2304 = vmatprep.subr.bf16.mxu0 %v618
    %2305 = vmatpush1.bf16.msra.mxu0 %v617
    %2306 = vmatprep.subr.bf16.mxu0 %v622
    %2307 = vmatpush1.bf16.msra.mxu0 %v621
    %2308 = vmatprep.subr.bf16.mxu0 %v626
    %2309 = vmatpush1.bf16.msra.mxu0 %v625
    %2310 = vmatprep.subr.bf16.mxu0 %v630
    %2311 = vmatpush1.bf16.msra.mxu0 %v629
    %2312 = vmatprep.subr.bf16.mxu0 %v634
    %2313 = vmatpush1.bf16.msra.mxu0 %v633
    %2314 = vmatprep.subr.bf16.mxu0 0
    %2315 = vmatpush1.bf16.msra.mxu0 0
    %2316 = vmatprep.subr.bf16.mxu0 0
    %2317 = vmatpush1.bf16.msra.mxu0 0
    %2318 = vmatprep.subr.bf16.mxu0 0
    %2319 = vmatpush1.bf16.msra.mxu0 0
    %2320 = vmatprep.subr.bf16.mxu0 0
    %2321 = vmatpush1.bf16.msra.mxu0 0
    %2322 = vmatprep.subr.bf16.mxu0 0
    %2323 = vmatpush1.bf16.msra.mxu0 0
    %2324 = vmatprep.subr.bf16.mxu0 0
    %2325 = vmatpush1.bf16.msra.mxu0 0
    %2326 = vmatprep.subr.bf16.mxu0 0
    %2327 = vmatpush1.bf16.msra.mxu0 0
    %2328 = vmatprep.subr.bf16.mxu0 0
    %2329 = vmatpush1.bf16.msra.mxu0 0
    %2330 = vmatprep.mubr.bf16.mxu0 0
    %2331 = vmatmul.mubr.bf16.gmra.mrb[0].mxu0 %v2254
    %v2332 = vpop.f32.mrb[0].mxu0
    %v2333 = vadd.f32 0.0, %v2332
    %v2334 = vpop.f32.mrb[0].mxu0
    %v2335 = vadd.f32 0.0, %v2334
    %v2336 = vpop.f32.mrb[0].mxu0
    %v2337 = vadd.f32 0.0, %v2336
    %v2338 = vpop.f32.mrb[0].mxu0
    %v2339 = vadd.f32 0.0, %v2338
    %2340 = vdwg.mxu0
    %2341 = vmatprep.subr.bf16.mxu0 %v850
    %2342 = vmatpush1.bf16.msra.mxu0 %v849
    %2343 = vmatprep.subr.bf16.mxu0 %v854
    %2344 = vmatpush1.bf16.msra.mxu0 %v853
    %2345 = vmatprep.subr.bf16.mxu0 %v858
    %2346 = vmatpush1.bf16.msra.mxu0 %v857
    %2347 = vmatprep.subr.bf16.mxu0 %v862
    %2348 = vmatpush1.bf16.msra.mxu0 %v861
    %2349 = vmatprep.subr.bf16.mxu0 %v866
    %2350 = vmatpush1.bf16.msra.mxu0 %v865
    %2351 = vmatprep.subr.bf16.mxu0 %v870
    %2352 = vmatpush1.bf16.msra.mxu0 %v869
    %2353 = vmatprep.subr.bf16.mxu0 %v874
    %2354 = vmatpush1.bf16.msra.mxu0 %v873
    %2355 = vmatprep.subr.bf16.mxu0 %v878
    %2356 = vmatpush1.bf16.msra.mxu0 %v877
    %2357 = vmatprep.subr.bf16.mxu0 0
    %2358 = vmatpush1.bf16.msra.mxu0 0
    %2359 = vmatprep.subr.bf16.mxu0 0
    %2360 = vmatpush1.bf16.msra.mxu0 0
    %2361 = vmatprep.subr.bf16.mxu0 0
    %2362 = vmatpush1.bf16.msra.mxu0 0
    %2363 = vmatprep.subr.bf16.mxu0 0
    %2364 = vmatpush1.bf16.msra.mxu0 0
    %2365 = vmatprep.subr.bf16.mxu0 0
    %2366 = vmatpush1.bf16.msra.mxu0 0
    %2367 = vmatprep.subr.bf16.mxu0 0
    %2368 = vmatpush1.bf16.msra.mxu0 0
    %2369 = vmatprep.subr.bf16.mxu0 0
    %2370 = vmatpush1.bf16.msra.mxu0 0
    %2371 = vmatprep.subr.bf16.mxu0 0
    %2372 = vmatpush1.bf16.msra.mxu0 0
    %2373 = vmatprep.mubr.bf16.mxu0 0
    %2374 = vmatmul.mubr.bf16.gmra.mrb[0].mxu0 %v2114
    %v2375 = vpop.f32.mrb[0].mxu0
    %v2376 = vadd.f32 %v2290, %v2375
    %v2377 = vpop.f32.mrb[0].mxu0
    %v2378 = vadd.f32 %v2292, %v2377
    %v2379 = vpop.f32.mrb[0].mxu0
    %v2380 = vadd.f32 %v2294, %v2379
    %v2381 = vpop.f32.mrb[0].mxu0
    %v2382 = vadd.f32 %v2296, %v2381
    %2383 = vdwg.mxu0
    %2384 = vmatprep.subr.bf16.mxu0 %v852
    %2385 = vmatpush1.bf16.msra.mxu0 %v851
    %2386 = vmatprep.subr.bf16.mxu0 %v856
    %2387 = vmatpush1.bf16.msra.mxu0 %v855
    %2388 = vmatprep.subr.bf16.mxu0 %v860
    %2389 = vmatpush1.bf16.msra.mxu0 %v859
    %2390 = vmatprep.subr.bf16.mxu0 %v864
    %2391 = vmatpush1.bf16.msra.mxu0 %v863
    %2392 = vmatprep.subr.bf16.mxu0 %v868
    %2393 = vmatpush1.bf16.msra.mxu0 %v867
    %2394 = vmatprep.subr.bf16.mxu0 %v872
    %2395 = vmatpush1.bf16.msra.mxu0 %v871
    %2396 = vmatprep.subr.bf16.mxu0 %v876
    %2397 = vmatpush1.bf16.msra.mxu0 %v875
    %2398 = vmatprep.subr.bf16.mxu0 %v880
    %2399 = vmatpush1.bf16.msra.mxu0 %v879
    %2400 = vmatprep.subr.bf16.mxu0 0
    %2401 = vmatpush1.bf16.msra.mxu0 0
    %2402 = vmatprep.subr.bf16.mxu0 0
    %2403 = vmatpush1.bf16.msra.mxu0 0
    %2404 = vmatprep.subr.bf16.mxu0 0
    %2405 = vmatpush1.bf16.msra.mxu0 0
    %2406 = vmatprep.subr.bf16.mxu0 0
    %2407 = vmatpush1.bf16.msra.mxu0 0
    %2408 = vmatprep.subr.bf16.mxu0 0
    %2409 = vmatpush1.bf16.msra.mxu0 0
    %2410 = vmatprep.subr.bf16.mxu0 0
    %2411 = vmatpush1.bf16.msra.mxu0 0
    %2412 = vmatprep.subr.bf16.mxu0 0
    %2413 = vmatpush1.bf16.msra.mxu0 0
    %2414 = vmatprep.subr.bf16.mxu0 0
    %2415 = vmatpush1.bf16.msra.mxu0 0
    %2416 = vmatprep.mubr.bf16.mxu0 0
    %2417 = vmatmul.mubr.bf16.gmra.mrb[0].mxu0 %v2114
    %v2418 = vpop.f32.mrb[0].mxu0
    %v2419 = vadd.f32 %v2333, %v2418
    %v2420 = vpop.f32.mrb[0].mxu0
    %v2421 = vadd.f32 %v2335, %v2420
    %v2422 = vpop.f32.mrb[0].mxu0
    %v2423 = vadd.f32 %v2337, %v2422
    %v2424 = vpop.f32.mrb[0].mxu0
    %v2425 = vadd.f32 %v2339, %v2424
    %2426 = vdwg.mxu0
    %v2427 = vadd.f32 %v2376, %v191
    %v2428 = vadd.f32 %v2378, %v195
    %v2429 = vadd.f32 %v2419, %v199
    %v2430 = vadd.f32 %v2421, %v203
    %v2431 = vadd.f32 %v2380, %v191
    %v2432 = vadd.f32 %v2382, %v195
    %v2433 = vadd.f32 %v2423, %v199
    %v2434 = vadd.f32 %v2425, %v203
    %v2435 = vmul.f32 %v2427, 0.5
    %v2436 = vmul.f32 %v2428, 0.5
    %v2437 = vmul.f32 %v2429, 0.5
    %v2438 = vmul.f32 %v2431, 0.5
    %v2439 = vmul.f32 %v2432, 0.5
    %v2440 = vmul.f32 %v2433, 0.5
    %v2441 = vtanh.pop %v2435
    %v2442 = vtanh.pop %v2436
    %v2443 = vtanh.pop %v2437
    %v2444 = vtanh.pop %v2438
    %v2445 = vtanh.pop %v2439
    %v2446 = vtanh.pop %v2440
    %v2447 = vadd.f32 %v2441, 1.0
    %v2448 = vadd.f32 %v2442, 1.0
    %v2449 = vadd.f32 %v2443, 1.0
    %v2450 = vadd.f32 %v2444, 1.0
    %v2451 = vadd.f32 %v2445, 1.0
    %v2452 = vadd.f32 %v2446, 1.0
    %v2453 = vmul.f32 %v2447, 0.5
    %v2454 = vmul.f32 %v2448, 0.5
    %v2455 = vmul.f32 %v2449, 0.5
    %v2456 = vmul.f32 %v2450, 0.5
    %v2457 = vmul.f32 %v2451, 0.5
    %v2458 = vmul.f32 %v2452, 0.5
    %v2459 = vtanh.pop %v2430
    %v2460 = vtanh.pop %v2434
    %v2461 = vmul.f32 %v2454, %v2108
    %v2462 = vmul.f32 %v2457, %v2109
    %v2463 = vmul.f32 %v2453, %v2459
    %v2464 = vmul.f32 %v2456, %v2460
    %v2465 = vadd.f32 %v2461, %v2463
    %v2466 = vadd.f32 %v2462, %v2464
    %v2467 = vtanh.pop %v2465
    %v2468 = vtanh.pop %v2466
    %v2469 = vmul.f32 %v2455, %v2467
    %v2470 = vmul.f32 %v2458, %v2468
    %v2471 = vpack.c.bf16 %v2470, %v2469
    %s2472 = scalar_lea.vmem [#allocation4], 320
    %v2473 = vld [vmem:[%s2472] sm:$0xff]
    %v2474 = vld [vmem:[%s2472 + $0x8] sm:$0xff]
    %v2475 = vld [vmem:[%s2472 + $0x10] sm:$0xff]
    %v2476 = vld [vmem:[%s2472 + $0x18] sm:$0xff]
    %v2477 = vld [vmem:[%s2472 + $0x20] sm:$0xff]
    %v2478 = vld [vmem:[%s2472 + $0x28] sm:$0xff]
    %v2479 = vld [vmem:[%s2472 + $0x30] sm:$0xff]
    %v2480 = vld [vmem:[%s2472 + $0x38] sm:$0xff]
    %2481 = vmatprep.subr.bf16.mxu0 %v313
    %2482 = vmatpush1.bf16.msra.mxu0 %v312
    %2483 = vmatprep.subr.bf16.mxu0 %v317
    %2484 = vmatpush1.bf16.msra.mxu0 %v316
    %2485 = vmatprep.subr.bf16.mxu0 %v321
    %2486 = vmatpush1.bf16.msra.mxu0 %v320
    %2487 = vmatprep.subr.bf16.mxu0 %v325
    %2488 = vmatpush1.bf16.msra.mxu0 %v324
    %2489 = vmatprep.subr.bf16.mxu0 %v329
    %2490 = vmatpush1.bf16.msra.mxu0 %v328
    %2491 = vmatprep.subr.bf16.mxu0 %v333
    %2492 = vmatpush1.bf16.msra.mxu0 %v332
    %2493 = vmatprep.subr.bf16.mxu0 %v337
    %2494 = vmatpush1.bf16.msra.mxu0 %v336
    %2495 = vmatprep.subr.bf16.mxu0 %v341
    %2496 = vmatpush1.bf16.msra.mxu0 %v340
    %2497 = vmatprep.subr.bf16.mxu0 0
    %2498 = vmatpush1.bf16.msra.mxu0 0
    %2499 = vmatprep.subr.bf16.mxu0 0
    %2500 = vmatpush1.bf16.msra.mxu0 0
    %2501 = vmatprep.subr.bf16.mxu0 0
    %2502 = vmatpush1.bf16.msra.mxu0 0
    %2503 = vmatprep.subr.bf16.mxu0 0
    %2504 = vmatpush1.bf16.msra.mxu0 0
    %2505 = vmatprep.subr.bf16.mxu0 0
    %2506 = vmatpush1.bf16.msra.mxu0 0
    %2507 = vmatprep.subr.bf16.mxu0 0
    %2508 = vmatpush1.bf16.msra.mxu0 0
    %2509 = vmatprep.subr.bf16.mxu0 0
    %2510 = vmatpush1.bf16.msra.mxu0 0
    %2511 = vmatprep.subr.bf16.mxu0 0
    %2512 = vmatpush1.bf16.msra.mxu0 0
    %2513 = vmatprep.mubr.bf16.mxu0 0
    %2514 = vmatmul.mubr.bf16.gmra.mrb[0].mxu0 %v2254
    %v2515 = vpop.f32.mrb[0].mxu0
    %v2516 = vadd.f32 0.0, %v2515
    %v2517 = vpop.f32.mrb[0].mxu0
    %v2518 = vadd.f32 0.0, %v2517
    %v2519 = vpop.f32.mrb[0].mxu0
    %v2520 = vadd.f32 0.0, %v2519
    %v2521 = vpop.f32.mrb[0].mxu0
    %v2522 = vadd.f32 0.0, %v2521
    %2523 = vdwg.mxu0
    %2524 = vmatprep.subr.bf16.mxu0 %v315
    %2525 = vmatpush1.bf16.msra.mxu0 %v314
    %2526 = vmatprep.subr.bf16.mxu0 %v319
    %2527 = vmatpush1.bf16.msra.mxu0 %v318
    %2528 = vmatprep.subr.bf16.mxu0 %v323
    %2529 = vmatpush1.bf16.msra.mxu0 %v322
    %2530 = vmatprep.subr.bf16.mxu0 %v327
    %2531 = vmatpush1.bf16.msra.mxu0 %v326
    %2532 = vmatprep.subr.bf16.mxu0 %v331
    %2533 = vmatpush1.bf16.msra.mxu0 %v330
    %2534 = vmatprep.subr.bf16.mxu0 %v335
    %2535 = vmatpush1.bf16.msra.mxu0 %v334
    %2536 = vmatprep.subr.bf16.mxu0 %v339
    %2537 = vmatpush1.bf16.msra.mxu0 %v338
    %2538 = vmatprep.subr.bf16.mxu0 %v343
    %2539 = vmatpush1.bf16.msra.mxu0 %v342
    %2540 = vmatprep.subr.bf16.mxu0 0
    %2541 = vmatpush1.bf16.msra.mxu0 0
    %2542 = vmatprep.subr.bf16.mxu0 0
    %2543 = vmatpush1.bf16.msra.mxu0 0
    %2544 = vmatprep.subr.bf16.mxu0 0
    %2545 = vmatpush1.bf16.msra.mxu0 0
    %2546 = vmatprep.subr.bf16.mxu0 0
    %2547 = vmatpush1.bf16.msra.mxu0 0
    %2548 = vmatprep.subr.bf16.mxu0 0
    %2549 = vmatpush1.bf16.msra.mxu0 0
    %2550 = vmatprep.subr.bf16.mxu0 0
    %2551 = vmatpush1.bf16.msra.mxu0 0
    %2552 = vmatprep.subr.bf16.mxu0 0
    %2553 = vmatpush1.bf16.msra.mxu0 0
    %2554 = vmatprep.subr.bf16.mxu0 0
    %2555 = vmatpush1.bf16.msra.mxu0 0
    %2556 = vmatprep.mubr.bf16.mxu0 0
    %2557 = vmatmul.mubr.bf16.gmra.mrb[0].mxu0 %v2254
    %v2558 = vpop.f32.mrb[0].mxu0
    %v2559 = vadd.f32 0.0, %v2558
    %v2560 = vpop.f32.mrb[0].mxu0
    %v2561 = vadd.f32 0.0, %v2560
    %v2562 = vpop.f32.mrb[0].mxu0
    %v2563 = vadd.f32 0.0, %v2562
    %v2564 = vpop.f32.mrb[0].mxu0
    %v2565 = vadd.f32 0.0, %v2564
    %2566 = vdwg.mxu0
    %v2567 = vadd.f32 %v2473, %v2516
    %v2568 = vadd.f32 %v2474, %v2518
    %v2569 = vadd.f32 %v2475, %v2559
    %v2570 = vadd.f32 %v2476, %v2561
    %v2571 = vadd.f32 %v2477, %v2520
    %v2572 = vadd.f32 %v2478, %v2522
    %v2573 = vadd.f32 %v2479, %v2563
    %v2574 = vadd.f32 %v2480, %v2565
    %v2575 = vmul.f32 %v2567, 0.5
    %v2576 = vmul.f32 %v2568, 0.5
    %v2577 = vmul.f32 %v2569, 0.5
    %v2578 = vmul.f32 %v2571, 0.5
    %v2579 = vmul.f32 %v2572, 0.5
    %v2580 = vmul.f32 %v2573, 0.5
    %v2581 = vtanh.pop %v2575
    %v2582 = vtanh.pop %v2576
    %v2583 = vtanh.pop %v2577
    %v2584 = vtanh.pop %v2578
    %v2585 = vtanh.pop %v2579
    %v2586 = vtanh.pop %v2580
    %v2587 = vadd.f32 %v2581, 1.0
    %v2588 = vadd.f32 %v2582, 1.0
    %v2589 = vadd.f32 %v2583, 1.0
    %v2590 = vadd.f32 %v2584, 1.0
    %v2591 = vadd.f32 %v2585, 1.0
    %v2592 = vadd.f32 %v2586, 1.0
    %v2593 = vmul.f32 %v2587, 0.5
    %v2594 = vmul.f32 %v2588, 0.5
    %v2595 = vmul.f32 %v2589, 0.5
    %v2596 = vmul.f32 %v2590, 0.5
    %v2597 = vmul.f32 %v2591, 0.5
    %v2598 = vmul.f32 %v2592, 0.5
    %v2599 = vtanh.pop %v2570
    %v2600 = vtanh.pop %v2574
    %v2601 = vmul.f32 %v2594, %v2248
    %v2602 = vmul.f32 %v2597, %v2249
    %v2603 = vmul.f32 %v2593, %v2599
    %v2604 = vmul.f32 %v2596, %v2600
    %v2605 = vadd.f32 %v2601, %v2603
    %v2606 = vadd.f32 %v2602, %v2604
    %v2607 = vtanh.pop %v2605
    %v2608 = vtanh.pop %v2606
    %v2609 = vmul.f32 %v2595, %v2607
    %v2610 = vmul.f32 %v2598, %v2608
    %v2611 = vpack.c.bf16 %v2610, %v2609
    %2612 = vmatprep.subr.bf16.mxu0 %v604
    %2613 = vmatpush1.bf16.msra.mxu0 %v603
    %2614 = vmatprep.subr.bf16.mxu0 %v608
    %2615 = vmatpush1.bf16.msra.mxu0 %v607
    %2616 = vmatprep.subr.bf16.mxu0 %v612
    %2617 = vmatpush1.bf16.msra.mxu0 %v611
    %2618 = vmatprep.subr.bf16.mxu0 %v616
    %2619 = vmatpush1.bf16.msra.mxu0 %v615
    %2620 = vmatprep.subr.bf16.mxu0 %v620
    %2621 = vmatpush1.bf16.msra.mxu0 %v619
    %2622 = vmatprep.subr.bf16.mxu0 %v624
    %2623 = vmatpush1.bf16.msra.mxu0 %v623
    %2624 = vmatprep.subr.bf16.mxu0 %v628
    %2625 = vmatpush1.bf16.msra.mxu0 %v627
    %2626 = vmatprep.subr.bf16.mxu0 %v632
    %2627 = vmatpush1.bf16.msra.mxu0 %v631
    %2628 = vmatprep.subr.bf16.mxu0 0
    %2629 = vmatpush1.bf16.msra.mxu0 0
    %2630 = vmatprep.subr.bf16.mxu0 0
    %2631 = vmatpush1.bf16.msra.mxu0 0
    %2632 = vmatprep.subr.bf16.mxu0 0
    %2633 = vmatpush1.bf16.msra.mxu0 0
    %2634 = vmatprep.subr.bf16.mxu0 0
    %2635 = vmatpush1.bf16.msra.mxu0 0
    %2636 = vmatprep.subr.bf16.mxu0 0
    %2637 = vmatpush1.bf16.msra.mxu0 0
    %2638 = vmatprep.subr.bf16.mxu0 0
    %2639 = vmatpush1.bf16.msra.mxu0 0
    %2640 = vmatprep.subr.bf16.mxu0 0
    %2641 = vmatpush1.bf16.msra.mxu0 0
    %2642 = vmatprep.subr.bf16.mxu0 0
    %2643 = vmatpush1.bf16.msra.mxu0 0
    %2644 = vmatprep.mubr.bf16.mxu0 0
    %2645 = vmatmul.mubr.bf16.gmra.mrb[0].mxu0 %v2611
    %v2646 = vpop.f32.mrb[0].mxu0
    %v2647 = vadd.f32 0.0, %v2646
    %v2648 = vpop.f32.mrb[0].mxu0
    %v2649 = vadd.f32 0.0, %v2648
    %v2650 = vpop.f32.mrb[0].mxu0
    %v2651 = vadd.f32 0.0, %v2650
    %v2652 = vpop.f32.mrb[0].mxu0
    %v2653 = vadd.f32 0.0, %v2652
    %2654 = vdwg.mxu0
    %2655 = vmatprep.subr.bf16.mxu0 %v606
    %2656 = vmatpush1.bf16.msra.mxu0 %v605
    %2657 = vmatprep.subr.bf16.mxu0 %v610
    %2658 = vmatpush1.bf16.msra.mxu0 %v609
    %2659 = vmatprep.subr.bf16.mxu0 %v614
    %2660 = vmatpush1.bf16.msra.mxu0 %v613
    %2661 = vmatprep.subr.bf16.mxu0 %v618
    %2662 = vmatpush1.bf16.msra.mxu0 %v617
    %2663 = vmatprep.subr.bf16.mxu0 %v622
    %2664 = vmatpush1.bf16.msra.mxu0 %v621
    %2665 = vmatprep.subr.bf16.mxu0 %v626
    %2666 = vmatpush1.bf16.msra.mxu0 %v625
    %2667 = vmatprep.subr.bf16.mxu0 %v630
    %2668 = vmatpush1.bf16.msra.mxu0 %v629
    %2669 = vmatprep.subr.bf16.mxu0 %v634
    %2670 = vmatpush1.bf16.msra.mxu0 %v633
    %2671 = vmatprep.subr.bf16.mxu0 0
    %2672 = vmatpush1.bf16.msra.mxu0 0
    %2673 = vmatprep.subr.bf16.mxu0 0
    %2674 = vmatpush1.bf16.msra.mxu0 0
    %2675 = vmatprep.subr.bf16.mxu0 0
    %2676 = vmatpush1.bf16.msra.mxu0 0
    %2677 = vmatprep.subr.bf16.mxu0 0
    %2678 = vmatpush1.bf16.msra.mxu0 0
    %2679 = vmatprep.subr.bf16.mxu0 0
    %2680 = vmatpush1.bf16.msra.mxu0 0
    %2681 = vmatprep.subr.bf16.mxu0 0
    %2682 = vmatpush1.bf16.msra.mxu0 0
    %2683 = vmatprep.subr.bf16.mxu0 0
    %2684 = vmatpush1.bf16.msra.mxu0 0
    %2685 = vmatprep.subr.bf16.mxu0 0
    %2686 = vmatpush1.bf16.msra.mxu0 0
    %2687 = vmatprep.mubr.bf16.mxu0 0
    %2688 = vmatmul.mubr.bf16.gmra.mrb[0].mxu0 %v2611
    %v2689 = vpop.f32.mrb[0].mxu0
    %v2690 = vadd.f32 0.0, %v2689
    %v2691 = vpop.f32.mrb[0].mxu0
    %v2692 = vadd.f32 0.0, %v2691
    %v2693 = vpop.f32.mrb[0].mxu0
    %v2694 = vadd.f32 0.0, %v2693
    %v2695 = vpop.f32.mrb[0].mxu0
    %v2696 = vadd.f32 0.0, %v2695
    %2697 = vdwg.mxu0
    %2698 = vmatprep.subr.bf16.mxu0 %v850
    %2699 = vmatpush1.bf16.msra.mxu0 %v849
    %2700 = vmatprep.subr.bf16.mxu0 %v854
    %2701 = vmatpush1.bf16.msra.mxu0 %v853
    %2702 = vmatprep.subr.bf16.mxu0 %v858
    %2703 = vmatpush1.bf16.msra.mxu0 %v857
    %2704 = vmatprep.subr.bf16.mxu0 %v862
    %2705 = vmatpush1.bf16.msra.mxu0 %v861
    %2706 = vmatprep.subr.bf16.mxu0 %v866
    %2707 = vmatpush1.bf16.msra.mxu0 %v865
    %2708 = vmatprep.subr.bf16.mxu0 %v870
    %2709 = vmatpush1.bf16.msra.mxu0 %v869
    %2710 = vmatprep.subr.bf16.mxu0 %v874
    %2711 = vmatpush1.bf16.msra.mxu0 %v873
    %2712 = vmatprep.subr.bf16.mxu0 %v878
    %2713 = vmatpush1.bf16.msra.mxu0 %v877
    %2714 = vmatprep.subr.bf16.mxu0 0
    %2715 = vmatpush1.bf16.msra.mxu0 0
    %2716 = vmatprep.subr.bf16.mxu0 0
    %2717 = vmatpush1.bf16.msra.mxu0 0
    %2718 = vmatprep.subr.bf16.mxu0 0
    %2719 = vmatpush1.bf16.msra.mxu0 0
    %2720 = vmatprep.subr.bf16.mxu0 0
    %2721 = vmatpush1.bf16.msra.mxu0 0
    %2722 = vmatprep.subr.bf16.mxu0 0
    %2723 = vmatpush1.bf16.msra.mxu0 0
    %2724 = vmatprep.subr.bf16.mxu0 0
    %2725 = vmatpush1.bf16.msra.mxu0 0
    %2726 = vmatprep.subr.bf16.mxu0 0
    %2727 = vmatpush1.bf16.msra.mxu0 0
    %2728 = vmatprep.subr.bf16.mxu0 0
    %2729 = vmatpush1.bf16.msra.mxu0 0
    %2730 = vmatprep.mubr.bf16.mxu0 0
    %2731 = vmatmul.mubr.bf16.gmra.mrb[0].mxu0 %v2471
    %v2732 = vpop.f32.mrb[0].mxu0
    %v2733 = vadd.f32 %v2647, %v2732
    %v2734 = vpop.f32.mrb[0].mxu0
    %v2735 = vadd.f32 %v2649, %v2734
    %v2736 = vpop.f32.mrb[0].mxu0
    %v2737 = vadd.f32 %v2651, %v2736
    %v2738 = vpop.f32.mrb[0].mxu0
    %v2739 = vadd.f32 %v2653, %v2738
    %2740 = vdwg.mxu0
    %2741 = vmatprep.subr.bf16.mxu0 %v852
    %2742 = vmatpush1.bf16.msra.mxu0 %v851
    %2743 = vmatprep.subr.bf16.mxu0 %v856
    %2744 = vmatpush1.bf16.msra.mxu0 %v855
    %2745 = vmatprep.subr.bf16.mxu0 %v860
    %2746 = vmatpush1.bf16.msra.mxu0 %v859
    %2747 = vmatprep.subr.bf16.mxu0 %v864
    %2748 = vmatpush1.bf16.msra.mxu0 %v863
    %2749 = vmatprep.subr.bf16.mxu0 %v868
    %2750 = vmatpush1.bf16.msra.mxu0 %v867
    %2751 = vmatprep.subr.bf16.mxu0 %v872
    %2752 = vmatpush1.bf16.msra.mxu0 %v871
    %2753 = vmatprep.subr.bf16.mxu0 %v876
    %2754 = vmatpush1.bf16.msra.mxu0 %v875
    %2755 = vmatprep.subr.bf16.mxu0 %v880
    %2756 = vmatpush1.bf16.msra.mxu0 %v879
    %2757 = vmatprep.subr.bf16.mxu0 0
    %2758 = vmatpush1.bf16.msra.mxu0 0
    %2759 = vmatprep.subr.bf16.mxu0 0
    %2760 = vmatpush1.bf16.msra.mxu0 0
    %2761 = vmatprep.subr.bf16.mxu0 0
    %2762 = vmatpush1.bf16.msra.mxu0 0
    %2763 = vmatprep.subr.bf16.mxu0 0
    %2764 = vmatpush1.bf16.msra.mxu0 0
    %2765 = vmatprep.subr.bf16.mxu0 0
    %2766 = vmatpush1.bf16.msra.mxu0 0
    %2767 = vmatprep.subr.bf16.mxu0 0
    %2768 = vmatpush1.bf16.msra.mxu0 0
    %2769 = vmatprep.subr.bf16.mxu0 0
    %2770 = vmatpush1.bf16.msra.mxu0 0
    %2771 = vmatprep.subr.bf16.mxu0 0
    %2772 = vmatpush1.bf16.msra.mxu0 0
    %2773 = vmatprep.mubr.bf16.mxu0 0
    %2774 = vmatmul.mubr.bf16.gmra.mrb[0].mxu0 %v2471
    %v2775 = vpop.f32.mrb[0].mxu0
    %v2776 = vadd.f32 %v2690, %v2775
    %v2777 = vpop.f32.mrb[0].mxu0
    %v2778 = vadd.f32 %v2692, %v2777
    %v2779 = vpop.f32.mrb[0].mxu0
    %v2780 = vadd.f32 %v2694, %v2779
    %v2781 = vpop.f32.mrb[0].mxu0
    %v2782 = vadd.f32 %v2696, %v2781
    %2783 = vdwg.mxu0
    %v2784 = vadd.f32 %v2733, %v191
    %v2785 = vadd.f32 %v2735, %v195
    %v2786 = vadd.f32 %v2776, %v199
    %v2787 = vadd.f32 %v2778, %v203
    %v2788 = vadd.f32 %v2737, %v191
    %v2789 = vadd.f32 %v2739, %v195
    %v2790 = vadd.f32 %v2780, %v199
    %v2791 = vadd.f32 %v2782, %v203
    %v2792 = vmul.f32 %v2784, 0.5
    %v2793 = vmul.f32 %v2785, 0.5
    %v2794 = vmul.f32 %v2786, 0.5
    %v2795 = vmul.f32 %v2788, 0.5
    %v2796 = vmul.f32 %v2789, 0.5
    %v2797 = vmul.f32 %v2790, 0.5
    %v2798 = vtanh.pop %v2792
    %v2799 = vtanh.pop %v2793
    %v2800 = vtanh.pop %v2794
    %v2801 = vtanh.pop %v2795
    %v2802 = vtanh.pop %v2796
    %v2803 = vtanh.pop %v2797
    %v2804 = vadd.f32 %v2798, 1.0
    %v2805 = vadd.f32 %v2799, 1.0
    %v2806 = vadd.f32 %v2800, 1.0
    %v2807 = vadd.f32 %v2801, 1.0
    %v2808 = vadd.f32 %v2802, 1.0
    %v2809 = vadd.f32 %v2803, 1.0
    %v2810 = vmul.f32 %v2804, 0.5
    %v2811 = vmul.f32 %v2805, 0.5
    %v2812 = vmul.f32 %v2806, 0.5
    %v2813 = vmul.f32 %v2807, 0.5
    %v2814 = vmul.f32 %v2808, 0.5
    %v2815 = vmul.f32 %v2809, 0.5
    %v2816 = vtanh.pop %v2787
    %v2817 = vtanh.pop %v2791
    %v2818 = vmul.f32 %v2811, %v2465
    %v2819 = vmul.f32 %v2814, %v2466
    %v2820 = vmul.f32 %v2810, %v2816
    %v2821 = vmul.f32 %v2813, %v2817
    %v2822 = vadd.f32 %v2818, %v2820
    %v2823 = vadd.f32 %v2819, %v2821
    %v2824 = vtanh.pop %v2822
    %v2825 = vtanh.pop %v2823
    %v2826 = vmul.f32 %v2812, %v2824
    %v2827 = vmul.f32 %v2815, %v2825
    %v2828 = vpack.c.bf16 %v2827, %v2826
    %s2829 = scalar_lea.vmem [#allocation4], 384
    %v2830 = vld [vmem:[%s2829] sm:$0xff]
    %v2831 = vld [vmem:[%s2829 + $0x8] sm:$0xff]
    %v2832 = vld [vmem:[%s2829 + $0x10] sm:$0xff]
    %v2833 = vld [vmem:[%s2829 + $0x18] sm:$0xff]
    %v2834 = vld [vmem:[%s2829 + $0x20] sm:$0xff]
    %v2835 = vld [vmem:[%s2829 + $0x28] sm:$0xff]
    %v2836 = vld [vmem:[%s2829 + $0x30] sm:$0xff]
    %v2837 = vld [vmem:[%s2829 + $0x38] sm:$0xff]
    %2838 = vmatprep.subr.bf16.mxu0 %v313
    %2839 = vmatpush1.bf16.msra.mxu0 %v312
    %2840 = vmatprep.subr.bf16.mxu0 %v317
    %2841 = vmatpush1.bf16.msra.mxu0 %v316
    %2842 = vmatprep.subr.bf16.mxu0 %v321
    %2843 = vmatpush1.bf16.msra.mxu0 %v320
    %2844 = vmatprep.subr.bf16.mxu0 %v325
    %2845 = vmatpush1.bf16.msra.mxu0 %v324
    %2846 = vmatprep.subr.bf16.mxu0 %v329
    %2847 = vmatpush1.bf16.msra.mxu0 %v328
    %2848 = vmatprep.subr.bf16.mxu0 %v333
    %2849 = vmatpush1.bf16.msra.mxu0 %v332
    %2850 = vmatprep.subr.bf16.mxu0 %v337
    %2851 = vmatpush1.bf16.msra.mxu0 %v336
    %2852 = vmatprep.subr.bf16.mxu0 %v341
    %2853 = vmatpush1.bf16.msra.mxu0 %v340
    %2854 = vmatprep.subr.bf16.mxu0 0
    %2855 = vmatpush1.bf16.msra.mxu0 0
    %2856 = vmatprep.subr.bf16.mxu0 0
    %2857 = vmatpush1.bf16.msra.mxu0 0
    %2858 = vmatprep.subr.bf16.mxu0 0
    %2859 = vmatpush1.bf16.msra.mxu0 0
    %2860 = vmatprep.subr.bf16.mxu0 0
    %2861 = vmatpush1.bf16.msra.mxu0 0
    %2862 = vmatprep.subr.bf16.mxu0 0
    %2863 = vmatpush1.bf16.msra.mxu0 0
    %2864 = vmatprep.subr.bf16.mxu0 0
    %2865 = vmatpush1.bf16.msra.mxu0 0
    %2866 = vmatprep.subr.bf16.mxu0 0
    %2867 = vmatpush1.bf16.msra.mxu0 0
    %2868 = vmatprep.subr.bf16.mxu0 0
    %2869 = vmatpush1.bf16.msra.mxu0 0
    %2870 = vmatprep.mubr.bf16.mxu0 0
    %2871 = vmatmul.mubr.bf16.gmra.mrb[0].mxu0 %v2611
    %v2872 = vpop.f32.mrb[0].mxu0
    %v2873 = vadd.f32 0.0, %v2872
    %v2874 = vpop.f32.mrb[0].mxu0
    %v2875 = vadd.f32 0.0, %v2874
    %v2876 = vpop.f32.mrb[0].mxu0
    %v2877 = vadd.f32 0.0, %v2876
    %v2878 = vpop.f32.mrb[0].mxu0
    %v2879 = vadd.f32 0.0, %v2878
    %2880 = vdwg.mxu0
    %2881 = vmatprep.subr.bf16.mxu0 %v315
    %2882 = vmatpush1.bf16.msra.mxu0 %v314
    %2883 = vmatprep.subr.bf16.mxu0 %v319
    %2884 = vmatpush1.bf16.msra.mxu0 %v318
    %2885 = vmatprep.subr.bf16.mxu0 %v323
    %2886 = vmatpush1.bf16.msra.mxu0 %v322
    %2887 = vmatprep.subr.bf16.mxu0 %v327
    %2888 = vmatpush1.bf16.msra.mxu0 %v326
    %2889 = vmatprep.subr.bf16.mxu0 %v331
    %2890 = vmatpush1.bf16.msra.mxu0 %v330
    %2891 = vmatprep.subr.bf16.mxu0 %v335
    %2892 = vmatpush1.bf16.msra.mxu0 %v334
    %2893 = vmatprep.subr.bf16.mxu0 %v339
    %2894 = vmatpush1.bf16.msra.mxu0 %v338
    %2895 = vmatprep.subr.bf16.mxu0 %v343
    %2896 = vmatpush1.bf16.msra.mxu0 %v342
    %2897 = vmatprep.subr.bf16.mxu0 0
    %2898 = vmatpush1.bf16.msra.mxu0 0
    %2899 = vmatprep.subr.bf16.mxu0 0
    %2900 = vmatpush1.bf16.msra.mxu0 0
    %2901 = vmatprep.subr.bf16.mxu0 0
    %2902 = vmatpush1.bf16.msra.mxu0 0
    %2903 = vmatprep.subr.bf16.mxu0 0
    %2904 = vmatpush1.bf16.msra.mxu0 0
    %2905 = vmatprep.subr.bf16.mxu0 0
    %2906 = vmatpush1.bf16.msra.mxu0 0
    %2907 = vmatprep.subr.bf16.mxu0 0
    %2908 = vmatpush1.bf16.msra.mxu0 0
    %2909 = vmatprep.subr.bf16.mxu0 0
    %2910 = vmatpush1.bf16.msra.mxu0 0
    %2911 = vmatprep.subr.bf16.mxu0 0
    %2912 = vmatpush1.bf16.msra.mxu0 0
    %2913 = vmatprep.mubr.bf16.mxu0 0
    %2914 = vmatmul.mubr.bf16.gmra.mrb[0].mxu0 %v2611
    %v2915 = vpop.f32.mrb[0].mxu0
    %v2916 = vadd.f32 0.0, %v2915
    %v2917 = vpop.f32.mrb[0].mxu0
    %v2918 = vadd.f32 0.0, %v2917
    %v2919 = vpop.f32.mrb[0].mxu0
    %v2920 = vadd.f32 0.0, %v2919
    %v2921 = vpop.f32.mrb[0].mxu0
    %v2922 = vadd.f32 0.0, %v2921
    %2923 = vdwg.mxu0
    %v2924 = vadd.f32 %v2830, %v2873
    %v2925 = vadd.f32 %v2831, %v2875
    %v2926 = vadd.f32 %v2832, %v2916
    %v2927 = vadd.f32 %v2833, %v2918
    %v2928 = vadd.f32 %v2834, %v2877
    %v2929 = vadd.f32 %v2835, %v2879
    %v2930 = vadd.f32 %v2836, %v2920
    %v2931 = vadd.f32 %v2837, %v2922
    %v2932 = vmul.f32 %v2924, 0.5
    %v2933 = vmul.f32 %v2925, 0.5
    %v2934 = vmul.f32 %v2926, 0.5
    %v2935 = vmul.f32 %v2928, 0.5
    %v2936 = vmul.f32 %v2929, 0.5
    %v2937 = vmul.f32 %v2930, 0.5
    %v2938 = vtanh.pop %v2932
    %v2939 = vtanh.pop %v2933
    %v2940 = vtanh.pop %v2934
    %v2941 = vtanh.pop %v2935
    %v2942 = vtanh.pop %v2936
    %v2943 = vtanh.pop %v2937
    %v2944 = vadd.f32 %v2938, 1.0
    %v2945 = vadd.f32 %v2939, 1.0
    %v2946 = vadd.f32 %v2940, 1.0
    %v2947 = vadd.f32 %v2941, 1.0
    %v2948 = vadd.f32 %v2942, 1.0
    %v2949 = vadd.f32 %v2943, 1.0
    %v2950 = vmul.f32 %v2944, 0.5
    %v2951 = vmul.f32 %v2945, 0.5
    %v2952 = vmul.f32 %v2946, 0.5
    %v2953 = vmul.f32 %v2947, 0.5
    %v2954 = vmul.f32 %v2948, 0.5
    %v2955 = vmul.f32 %v2949, 0.5
    %v2956 = vtanh.pop %v2927
    %v2957 = vtanh.pop %v2931
    %v2958 = vmul.f32 %v2951, %v2605
    %v2959 = vmul.f32 %v2954, %v2606
    %v2960 = vmul.f32 %v2950, %v2956
    %v2961 = vmul.f32 %v2953, %v2957
    %v2962 = vadd.f32 %v2958, %v2960
    %v2963 = vadd.f32 %v2959, %v2961
    %v2964 = vtanh.pop %v2962
    %v2965 = vtanh.pop %v2963
    %v2966 = vmul.f32 %v2952, %v2964
    %v2967 = vmul.f32 %v2955, %v2965
    %v2968 = vpack.c.bf16 %v2967, %v2966
    %2969 = vmatprep.subr.bf16.mxu0 %v604
    %2970 = vmatpush1.bf16.msra.mxu0 %v603
    %2971 = vmatprep.subr.bf16.mxu0 %v608
    %2972 = vmatpush1.bf16.msra.mxu0 %v607
    %2973 = vmatprep.subr.bf16.mxu0 %v612
    %2974 = vmatpush1.bf16.msra.mxu0 %v611
    %2975 = vmatprep.subr.bf16.mxu0 %v616
    %2976 = vmatpush1.bf16.msra.mxu0 %v615
    %2977 = vmatprep.subr.bf16.mxu0 %v620
    %2978 = vmatpush1.bf16.msra.mxu0 %v619
    %2979 = vmatprep.subr.bf16.mxu0 %v624
    %2980 = vmatpush1.bf16.msra.mxu0 %v623
    %2981 = vmatprep.subr.bf16.mxu0 %v628
    %2982 = vmatpush1.bf16.msra.mxu0 %v627
    %2983 = vmatprep.subr.bf16.mxu0 %v632
    %2984 = vmatpush1.bf16.msra.mxu0 %v631
    %2985 = vmatprep.subr.bf16.mxu0 0
    %2986 = vmatpush1.bf16.msra.mxu0 0
    %2987 = vmatprep.subr.bf16.mxu0 0
    %2988 = vmatpush1.bf16.msra.mxu0 0
    %2989 = vmatprep.subr.bf16.mxu0 0
    %2990 = vmatpush1.bf16.msra.mxu0 0
    %2991 = vmatprep.subr.bf16.mxu0 0
    %2992 = vmatpush1.bf16.msra.mxu0 0
    %2993 = vmatprep.subr.bf16.mxu0 0
    %2994 = vmatpush1.bf16.msra.mxu0 0
    %2995 = vmatprep.subr.bf16.mxu0 0
    %2996 = vmatpush1.bf16.msra.mxu0 0
    %2997 = vmatprep.subr.bf16.mxu0 0
    %2998 = vmatpush1.bf16.msra.mxu0 0
    %2999 = vmatprep.subr.bf16.mxu0 0
    %3000 = vmatpush1.bf16.msra.mxu0 0
    %3001 = vmatprep.mubr.bf16.mxu0 0
    %3002 = vmatmul.mubr.bf16.gmra.mrb[0].mxu0 %v2968
    %v3003 = vpop.f32.mrb[0].mxu0
    %v3004 = vadd.f32 0.0, %v3003
    %v3005 = vpop.f32.mrb[0].mxu0
    %v3006 = vadd.f32 0.0, %v3005
    %v3007 = vpop.f32.mrb[0].mxu0
    %v3008 = vadd.f32 0.0, %v3007
    %v3009 = vpop.f32.mrb[0].mxu0
    %v3010 = vadd.f32 0.0, %v3009
    %3011 = vdwg.mxu0
    %3012 = vmatprep.subr.bf16.mxu0 %v606
    %3013 = vmatpush1.bf16.msra.mxu0 %v605
    %3014 = vmatprep.subr.bf16.mxu0 %v610
    %3015 = vmatpush1.bf16.msra.mxu0 %v609
    %3016 = vmatprep.subr.bf16.mxu0 %v614
    %3017 = vmatpush1.bf16.msra.mxu0 %v613
    %3018 = vmatprep.subr.bf16.mxu0 %v618
    %3019 = vmatpush1.bf16.msra.mxu0 %v617
    %3020 = vmatprep.subr.bf16.mxu0 %v622
    %3021 = vmatpush1.bf16.msra.mxu0 %v621
    %3022 = vmatprep.subr.bf16.mxu0 %v626
    %3023 = vmatpush1.bf16.msra.mxu0 %v625
    %3024 = vmatprep.subr.bf16.mxu0 %v630
    %3025 = vmatpush1.bf16.msra.mxu0 %v629
    %3026 = vmatprep.subr.bf16.mxu0 %v634
    %3027 = vmatpush1.bf16.msra.mxu0 %v633
    %3028 = vmatprep.subr.bf16.mxu0 0
    %3029 = vmatpush1.bf16.msra.mxu0 0
    %3030 = vmatprep.subr.bf16.mxu0 0
    %3031 = vmatpush1.bf16.msra.mxu0 0
    %3032 = vmatprep.subr.bf16.mxu0 0
    %3033 = vmatpush1.bf16.msra.mxu0 0
    %3034 = vmatprep.subr.bf16.mxu0 0
    %3035 = vmatpush1.bf16.msra.mxu0 0
    %3036 = vmatprep.subr.bf16.mxu0 0
    %3037 = vmatpush1.bf16.msra.mxu0 0
    %3038 = vmatprep.subr.bf16.mxu0 0
    %3039 = vmatpush1.bf16.msra.mxu0 0
    %3040 = vmatprep.subr.bf16.mxu0 0
    %3041 = vmatpush1.bf16.msra.mxu0 0
    %3042 = vmatprep.subr.bf16.mxu0 0
    %3043 = vmatpush1.bf16.msra.mxu0 0
    %3044 = vmatprep.mubr.bf16.mxu0 0
    %3045 = vmatmul.mubr.bf16.gmra.mrb[0].mxu0 %v2968
    %v3046 = vpop.f32.mrb[0].mxu0
    %v3047 = vadd.f32 0.0, %v3046
    %v3048 = vpop.f32.mrb[0].mxu0
    %v3049 = vadd.f32 0.0, %v3048
    %v3050 = vpop.f32.mrb[0].mxu0
    %v3051 = vadd.f32 0.0, %v3050
    %v3052 = vpop.f32.mrb[0].mxu0
    %v3053 = vadd.f32 0.0, %v3052
    %3054 = vdwg.mxu0
    %3055 = vmatprep.subr.bf16.mxu0 %v850
    %3056 = vmatpush1.bf16.msra.mxu0 %v849
    %3057 = vmatprep.subr.bf16.mxu0 %v854
    %3058 = vmatpush1.bf16.msra.mxu0 %v853
    %3059 = vmatprep.subr.bf16.mxu0 %v858
    %3060 = vmatpush1.bf16.msra.mxu0 %v857
    %3061 = vmatprep.subr.bf16.mxu0 %v862
    %3062 = vmatpush1.bf16.msra.mxu0 %v861
    %3063 = vmatprep.subr.bf16.mxu0 %v866
    %3064 = vmatpush1.bf16.msra.mxu0 %v865
    %3065 = vmatprep.subr.bf16.mxu0 %v870
    %3066 = vmatpush1.bf16.msra.mxu0 %v869
    %3067 = vmatprep.subr.bf16.mxu0 %v874
    %3068 = vmatpush1.bf16.msra.mxu0 %v873
    %3069 = vmatprep.subr.bf16.mxu0 %v878
    %3070 = vmatpush1.bf16.msra.mxu0 %v877
    %3071 = vmatprep.subr.bf16.mxu0 0
    %3072 = vmatpush1.bf16.msra.mxu0 0
    %3073 = vmatprep.subr.bf16.mxu0 0
    %3074 = vmatpush1.bf16.msra.mxu0 0
    %3075 = vmatprep.subr.bf16.mxu0 0
    %3076 = vmatpush1.bf16.msra.mxu0 0
    %3077 = vmatprep.subr.bf16.mxu0 0
    %3078 = vmatpush1.bf16.msra.mxu0 0
    %3079 = vmatprep.subr.bf16.mxu0 0
    %3080 = vmatpush1.bf16.msra.mxu0 0
    %3081 = vmatprep.subr.bf16.mxu0 0
    %3082 = vmatpush1.bf16.msra.mxu0 0
    %3083 = vmatprep.subr.bf16.mxu0 0
    %3084 = vmatpush1.bf16.msra.mxu0 0
    %3085 = vmatprep.subr.bf16.mxu0 0
    %3086 = vmatpush1.bf16.msra.mxu0 0
    %3087 = vmatprep.mubr.bf16.mxu0 0
    %3088 = vmatmul.mubr.bf16.gmra.mrb[0].mxu0 %v2828
    %v3089 = vpop.f32.mrb[0].mxu0
    %v3090 = vadd.f32 %v3004, %v3089
    %v3091 = vpop.f32.mrb[0].mxu0
    %v3092 = vadd.f32 %v3006, %v3091
    %v3093 = vpop.f32.mrb[0].mxu0
    %v3094 = vadd.f32 %v3008, %v3093
    %v3095 = vpop.f32.mrb[0].mxu0
    %v3096 = vadd.f32 %v3010, %v3095
    %3097 = vdwg.mxu0
    %3098 = vmatprep.subr.bf16.mxu0 %v852
    %3099 = vmatpush1.bf16.msra.mxu0 %v851
    %3100 = vmatprep.subr.bf16.mxu0 %v856
    %3101 = vmatpush1.bf16.msra.mxu0 %v855
    %3102 = vmatprep.subr.bf16.mxu0 %v860
    %3103 = vmatpush1.bf16.msra.mxu0 %v859
    %3104 = vmatprep.subr.bf16.mxu0 %v864
    %3105 = vmatpush1.bf16.msra.mxu0 %v863
    %3106 = vmatprep.subr.bf16.mxu0 %v868
    %3107 = vmatpush1.bf16.msra.mxu0 %v867
    %3108 = vmatprep.subr.bf16.mxu0 %v872
    %3109 = vmatpush1.bf16.msra.mxu0 %v871
    %3110 = vmatprep.subr.bf16.mxu0 %v876
    %3111 = vmatpush1.bf16.msra.mxu0 %v875
    %3112 = vmatprep.subr.bf16.mxu0 %v880
    %3113 = vmatpush1.bf16.msra.mxu0 %v879
    %3114 = vmatprep.subr.bf16.mxu0 0
    %3115 = vmatpush1.bf16.msra.mxu0 0
    %3116 = vmatprep.subr.bf16.mxu0 0
    %3117 = vmatpush1.bf16.msra.mxu0 0
    %3118 = vmatprep.subr.bf16.mxu0 0
    %3119 = vmatpush1.bf16.msra.mxu0 0
    %3120 = vmatprep.subr.bf16.mxu0 0
    %3121 = vmatpush1.bf16.msra.mxu0 0
    %3122 = vmatprep.subr.bf16.mxu0 0
    %3123 = vmatpush1.bf16.msra.mxu0 0
    %3124 = vmatprep.subr.bf16.mxu0 0
    %3125 = vmatpush1.bf16.msra.mxu0 0
    %3126 = vmatprep.subr.bf16.mxu0 0
    %3127 = vmatpush1.bf16.msra.mxu0 0
    %3128 = vmatprep.subr.bf16.mxu0 0
    %3129 = vmatpush1.bf16.msra.mxu0 0
    %3130 = vmatprep.mubr.bf16.mxu0 0
    %3131 = vmatmul.mubr.bf16.gmra.mrb[0].mxu0 %v2828
    %v3132 = vpop.f32.mrb[0].mxu0
    %v3133 = vadd.f32 %v3047, %v3132
    %v3134 = vpop.f32.mrb[0].mxu0
    %v3135 = vadd.f32 %v3049, %v3134
    %v3136 = vpop.f32.mrb[0].mxu0
    %v3137 = vadd.f32 %v3051, %v3136
    %v3138 = vpop.f32.mrb[0].mxu0
    %v3139 = vadd.f32 %v3053, %v3138
    %3140 = vdwg.mxu0
    %v3141 = vadd.f32 %v3090, %v191
    %v3142 = vadd.f32 %v3092, %v195
    %v3143 = vadd.f32 %v3133, %v199
    %v3144 = vadd.f32 %v3135, %v203
    %v3145 = vadd.f32 %v3094, %v191
    %v3146 = vadd.f32 %v3096, %v195
    %v3147 = vadd.f32 %v3137, %v199
    %v3148 = vadd.f32 %v3139, %v203
    %v3149 = vmul.f32 %v3141, 0.5
    %v3150 = vmul.f32 %v3142, 0.5
    %v3151 = vmul.f32 %v3143, 0.5
    %v3152 = vmul.f32 %v3145, 0.5
    %v3153 = vmul.f32 %v3146, 0.5
    %v3154 = vmul.f32 %v3147, 0.5
    %v3155 = vtanh.pop %v3149
    %v3156 = vtanh.pop %v3150
    %v3157 = vtanh.pop %v3151
    %v3158 = vtanh.pop %v3152
    %v3159 = vtanh.pop %v3153
    %v3160 = vtanh.pop %v3154
    %v3161 = vadd.f32 %v3155, 1.0
    %v3162 = vadd.f32 %v3156, 1.0
    %v3163 = vadd.f32 %v3157, 1.0
    %v3164 = vadd.f32 %v3158, 1.0
    %v3165 = vadd.f32 %v3159, 1.0
    %v3166 = vadd.f32 %v3160, 1.0
    %v3167 = vmul.f32 %v3161, 0.5
    %v3168 = vmul.f32 %v3162, 0.5
    %v3169 = vmul.f32 %v3163, 0.5
    %v3170 = vmul.f32 %v3164, 0.5
    %v3171 = vmul.f32 %v3165, 0.5
    %v3172 = vmul.f32 %v3166, 0.5
    %v3173 = vtanh.pop %v3144
    %v3174 = vtanh.pop %v3148
    %v3175 = vmul.f32 %v3168, %v2822
    %v3176 = vmul.f32 %v3171, %v2823
    %v3177 = vmul.f32 %v3167, %v3173
    %v3178 = vmul.f32 %v3170, %v3174
    %v3179 = vadd.f32 %v3175, %v3177
    %v3180 = vadd.f32 %v3176, %v3178
    %v3181 = vtanh.pop %v3179
    %v3182 = vtanh.pop %v3180
    %v3183 = vmul.f32 %v3169, %v3181
    %v3184 = vmul.f32 %v3172, %v3182
    %v3185 = vpack.c.bf16 %v3184, %v3183
    %s3186 = scalar_lea.vmem [#allocation4], 448
    %v3187 = vld [vmem:[%s3186] sm:$0xff]
    %v3188 = vld [vmem:[%s3186 + $0x8] sm:$0xff]
    %v3189 = vld [vmem:[%s3186 + $0x10] sm:$0xff]
    %v3190 = vld [vmem:[%s3186 + $0x18] sm:$0xff]
    %v3191 = vld [vmem:[%s3186 + $0x20] sm:$0xff]
    %v3192 = vld [vmem:[%s3186 + $0x28] sm:$0xff]
    %v3193 = vld [vmem:[%s3186 + $0x30] sm:$0xff]
    %v3194 = vld [vmem:[%s3186 + $0x38] sm:$0xff]
    %3195 = vmatprep.subr.bf16.mxu0 %v313
    %3196 = vmatpush1.bf16.msra.mxu0 %v312
    %3197 = vmatprep.subr.bf16.mxu0 %v317
    %3198 = vmatpush1.bf16.msra.mxu0 %v316
    %3199 = vmatprep.subr.bf16.mxu0 %v321
    %3200 = vmatpush1.bf16.msra.mxu0 %v320
    %3201 = vmatprep.subr.bf16.mxu0 %v325
    %3202 = vmatpush1.bf16.msra.mxu0 %v324
    %3203 = vmatprep.subr.bf16.mxu0 %v329
    %3204 = vmatpush1.bf16.msra.mxu0 %v328
    %3205 = vmatprep.subr.bf16.mxu0 %v333
    %3206 = vmatpush1.bf16.msra.mxu0 %v332
    %3207 = vmatprep.subr.bf16.mxu0 %v337
    %3208 = vmatpush1.bf16.msra.mxu0 %v336
    %3209 = vmatprep.subr.bf16.mxu0 %v341
    %3210 = vmatpush1.bf16.msra.mxu0 %v340
    %3211 = vmatprep.subr.bf16.mxu0 0
    %3212 = vmatpush1.bf16.msra.mxu0 0
    %3213 = vmatprep.subr.bf16.mxu0 0
    %3214 = vmatpush1.bf16.msra.mxu0 0
    %3215 = vmatprep.subr.bf16.mxu0 0
    %3216 = vmatpush1.bf16.msra.mxu0 0
    %3217 = vmatprep.subr.bf16.mxu0 0
    %3218 = vmatpush1.bf16.msra.mxu0 0
    %3219 = vmatprep.subr.bf16.mxu0 0
    %3220 = vmatpush1.bf16.msra.mxu0 0
    %3221 = vmatprep.subr.bf16.mxu0 0
    %3222 = vmatpush1.bf16.msra.mxu0 0
    %3223 = vmatprep.subr.bf16.mxu0 0
    %3224 = vmatpush1.bf16.msra.mxu0 0
    %3225 = vmatprep.subr.bf16.mxu0 0
    %3226 = vmatpush1.bf16.msra.mxu0 0
    %3227 = vmatprep.mubr.bf16.mxu0 0
    %3228 = vmatmul.mubr.bf16.gmra.mrb[0].mxu0 %v2968
    %v3229 = vpop.f32.mrb[0].mxu0
    %v3230 = vadd.f32 0.0, %v3229
    %v3231 = vpop.f32.mrb[0].mxu0
    %v3232 = vadd.f32 0.0, %v3231
    %v3233 = vpop.f32.mrb[0].mxu0
    %v3234 = vadd.f32 0.0, %v3233
    %v3235 = vpop.f32.mrb[0].mxu0
    %v3236 = vadd.f32 0.0, %v3235
    %3237 = vdwg.mxu0
    %3238 = vmatprep.subr.bf16.mxu0 %v315
    %3239 = vmatpush1.bf16.msra.mxu0 %v314
    %3240 = vmatprep.subr.bf16.mxu0 %v319
    %3241 = vmatpush1.bf16.msra.mxu0 %v318
    %3242 = vmatprep.subr.bf16.mxu0 %v323
    %3243 = vmatpush1.bf16.msra.mxu0 %v322
    %3244 = vmatprep.subr.bf16.mxu0 %v327
    %3245 = vmatpush1.bf16.msra.mxu0 %v326
    %3246 = vmatprep.subr.bf16.mxu0 %v331
    %3247 = vmatpush1.bf16.msra.mxu0 %v330
    %3248 = vmatprep.subr.bf16.mxu0 %v335
    %3249 = vmatpush1.bf16.msra.mxu0 %v334
    %3250 = vmatprep.subr.bf16.mxu0 %v339
    %3251 = vmatpush1.bf16.msra.mxu0 %v338
    %3252 = vmatprep.subr.bf16.mxu0 %v343
    %3253 = vmatpush1.bf16.msra.mxu0 %v342
    %3254 = vmatprep.subr.bf16.mxu0 0
    %3255 = vmatpush1.bf16.msra.mxu0 0
    %3256 = vmatprep.subr.bf16.mxu0 0
    %3257 = vmatpush1.bf16.msra.mxu0 0
    %3258 = vmatprep.subr.bf16.mxu0 0
    %3259 = vmatpush1.bf16.msra.mxu0 0
    %3260 = vmatprep.subr.bf16.mxu0 0
    %3261 = vmatpush1.bf16.msra.mxu0 0
    %3262 = vmatprep.subr.bf16.mxu0 0
    %3263 = vmatpush1.bf16.msra.mxu0 0
    %3264 = vmatprep.subr.bf16.mxu0 0
    %3265 = vmatpush1.bf16.msra.mxu0 0
    %3266 = vmatprep.subr.bf16.mxu0 0
    %3267 = vmatpush1.bf16.msra.mxu0 0
    %3268 = vmatprep.subr.bf16.mxu0 0
    %3269 = vmatpush1.bf16.msra.mxu0 0
    %3270 = vmatprep.mubr.bf16.mxu0 0
    %3271 = vmatmul.mubr.bf16.gmra.mrb[0].mxu0 %v2968
    %v3272 = vpop.f32.mrb[0].mxu0
    %v3273 = vadd.f32 0.0, %v3272
    %v3274 = vpop.f32.mrb[0].mxu0
    %v3275 = vadd.f32 0.0, %v3274
    %v3276 = vpop.f32.mrb[0].mxu0
    %v3277 = vadd.f32 0.0, %v3276
    %v3278 = vpop.f32.mrb[0].mxu0
    %v3279 = vadd.f32 0.0, %v3278
    %3280 = vdwg.mxu0
    %v3281 = vadd.f32 %v3187, %v3230
    %v3282 = vadd.f32 %v3188, %v3232
    %v3283 = vadd.f32 %v3189, %v3273
    %v3284 = vadd.f32 %v3190, %v3275
    %v3285 = vadd.f32 %v3191, %v3234
    %v3286 = vadd.f32 %v3192, %v3236
    %v3287 = vadd.f32 %v3193, %v3277
    %v3288 = vadd.f32 %v3194, %v3279
    %v3289 = vmul.f32 %v3281, 0.5
    %v3290 = vmul.f32 %v3282, 0.5
    %v3291 = vmul.f32 %v3283, 0.5
    %v3292 = vmul.f32 %v3285, 0.5
    %v3293 = vmul.f32 %v3286, 0.5
    %v3294 = vmul.f32 %v3287, 0.5
    %v3295 = vtanh.pop %v3289
    %v3296 = vtanh.pop %v3290
    %v3297 = vtanh.pop %v3291
    %v3298 = vtanh.pop %v3292
    %v3299 = vtanh.pop %v3293
    %v3300 = vtanh.pop %v3294
    %v3301 = vadd.f32 %v3295, 1.0
    %v3302 = vadd.f32 %v3296, 1.0
    %v3303 = vadd.f32 %v3297, 1.0
    %v3304 = vadd.f32 %v3298, 1.0
    %v3305 = vadd.f32 %v3299, 1.0
    %v3306 = vadd.f32 %v3300, 1.0
    %v3307 = vmul.f32 %v3301, 0.5
    %v3308 = vmul.f32 %v3302, 0.5
    %v3309 = vmul.f32 %v3303, 0.5
    %v3310 = vmul.f32 %v3304, 0.5
    %v3311 = vmul.f32 %v3305, 0.5
    %v3312 = vmul.f32 %v3306, 0.5
    %v3313 = vtanh.pop %v3284
    %v3314 = vtanh.pop %v3288
    %v3315 = vmul.f32 %v3308, %v2962
    %v3316 = vmul.f32 %v3311, %v2963
    %v3317 = vmul.f32 %v3307, %v3313
    %v3318 = vmul.f32 %v3310, %v3314
    %v3319 = vadd.f32 %v3315, %v3317
    %v3320 = vadd.f32 %v3316, %v3318
    %v3321 = vtanh.pop %v3319
    %v3322 = vtanh.pop %v3320
    %v3323 = vmul.f32 %v3309, %v3321
    %v3324 = vmul.f32 %v3312, %v3322
    %v3325 = vpack.c.bf16 %v3324, %v3323
    %3326 = vmatprep.subr.bf16.mxu0 %v604
    %3327 = vmatpush1.bf16.msra.mxu0 %v603
    %3328 = vmatprep.subr.bf16.mxu0 %v608
    %3329 = vmatpush1.bf16.msra.mxu0 %v607
    %3330 = vmatprep.subr.bf16.mxu0 %v612
    %3331 = vmatpush1.bf16.msra.mxu0 %v611
    %3332 = vmatprep.subr.bf16.mxu0 %v616
    %3333 = vmatpush1.bf16.msra.mxu0 %v615
    %3334 = vmatprep.subr.bf16.mxu0 %v620
    %3335 = vmatpush1.bf16.msra.mxu0 %v619
    %3336 = vmatprep.subr.bf16.mxu0 %v624
    %3337 = vmatpush1.bf16.msra.mxu0 %v623
    %3338 = vmatprep.subr.bf16.mxu0 %v628
    %3339 = vmatpush1.bf16.msra.mxu0 %v627
    %3340 = vmatprep.subr.bf16.mxu0 %v632
    %3341 = vmatpush1.bf16.msra.mxu0 %v631
    %3342 = vmatprep.subr.bf16.mxu0 0
    %3343 = vmatpush1.bf16.msra.mxu0 0
    %3344 = vmatprep.subr.bf16.mxu0 0
    %3345 = vmatpush1.bf16.msra.mxu0 0
    %3346 = vmatprep.subr.bf16.mxu0 0
    %3347 = vmatpush1.bf16.msra.mxu0 0
    %3348 = vmatprep.subr.bf16.mxu0 0
    %3349 = vmatpush1.bf16.msra.mxu0 0
    %3350 = vmatprep.subr.bf16.mxu0 0
    %3351 = vmatpush1.bf16.msra.mxu0 0
    %3352 = vmatprep.subr.bf16.mxu0 0
    %3353 = vmatpush1.bf16.msra.mxu0 0
    %3354 = vmatprep.subr.bf16.mxu0 0
    %3355 = vmatpush1.bf16.msra.mxu0 0
    %3356 = vmatprep.subr.bf16.mxu0 0
    %3357 = vmatpush1.bf16.msra.mxu0 0
    %3358 = vmatprep.mubr.bf16.mxu0 0
    %3359 = vmatmul.mubr.bf16.gmra.mrb[0].mxu0 %v3325
    %v3360 = vpop.f32.mrb[0].mxu0
    %v3361 = vadd.f32 0.0, %v3360
    %v3362 = vpop.f32.mrb[0].mxu0
    %v3363 = vadd.f32 0.0, %v3362
    %v3364 = vpop.f32.mrb[0].mxu0
    %v3365 = vadd.f32 0.0, %v3364
    %v3366 = vpop.f32.mrb[0].mxu0
    %v3367 = vadd.f32 0.0, %v3366
    %3368 = vdwg.mxu0
    %3369 = vmatprep.subr.bf16.mxu0 %v606
    %3370 = vmatpush1.bf16.msra.mxu0 %v605
    %3371 = vmatprep.subr.bf16.mxu0 %v610
    %3372 = vmatpush1.bf16.msra.mxu0 %v609
    %3373 = vmatprep.subr.bf16.mxu0 %v614
    %3374 = vmatpush1.bf16.msra.mxu0 %v613
    %3375 = vmatprep.subr.bf16.mxu0 %v618
    %3376 = vmatpush1.bf16.msra.mxu0 %v617
    %3377 = vmatprep.subr.bf16.mxu0 %v622
    %3378 = vmatpush1.bf16.msra.mxu0 %v621
    %3379 = vmatprep.subr.bf16.mxu0 %v626
    %3380 = vmatpush1.bf16.msra.mxu0 %v625
    %3381 = vmatprep.subr.bf16.mxu0 %v630
    %3382 = vmatpush1.bf16.msra.mxu0 %v629
    %3383 = vmatprep.subr.bf16.mxu0 %v634
    %3384 = vmatpush1.bf16.msra.mxu0 %v633
    %3385 = vmatprep.subr.bf16.mxu0 0
    %3386 = vmatpush1.bf16.msra.mxu0 0
    %3387 = vmatprep.subr.bf16.mxu0 0
    %3388 = vmatpush1.bf16.msra.mxu0 0
    %3389 = vmatprep.subr.bf16.mxu0 0
    %3390 = vmatpush1.bf16.msra.mxu0 0
    %3391 = vmatprep.subr.bf16.mxu0 0
    %3392 = vmatpush1.bf16.msra.mxu0 0
    %3393 = vmatprep.subr.bf16.mxu0 0
    %3394 = vmatpush1.bf16.msra.mxu0 0
    %3395 = vmatprep.subr.bf16.mxu0 0
    %3396 = vmatpush1.bf16.msra.mxu0 0
    %3397 = vmatprep.subr.bf16.mxu0 0
    %3398 = vmatpush1.bf16.msra.mxu0 0
    %3399 = vmatprep.subr.bf16.mxu0 0
    %3400 = vmatpush1.bf16.msra.mxu0 0
    %3401 = vmatprep.mubr.bf16.mxu0 0
    %3402 = vmatmul.mubr.bf16.gmra.mrb[0].mxu0 %v3325
    %v3403 = vpop.f32.mrb[0].mxu0
    %v3404 = vadd.f32 0.0, %v3403
    %v3405 = vpop.f32.mrb[0].mxu0
    %v3406 = vadd.f32 0.0, %v3405
    %v3407 = vpop.f32.mrb[0].mxu0
    %v3408 = vadd.f32 0.0, %v3407
    %v3409 = vpop.f32.mrb[0].mxu0
    %v3410 = vadd.f32 0.0, %v3409
    %3411 = vdwg.mxu0
    %3412 = vmatprep.subr.bf16.mxu0 %v850
    %3413 = vmatpush1.bf16.msra.mxu0 %v849
    %3414 = vmatprep.subr.bf16.mxu0 %v854
    %3415 = vmatpush1.bf16.msra.mxu0 %v853
    %3416 = vmatprep.subr.bf16.mxu0 %v858
    %3417 = vmatpush1.bf16.msra.mxu0 %v857
    %3418 = vmatprep.subr.bf16.mxu0 %v862
    %3419 = vmatpush1.bf16.msra.mxu0 %v861
    %3420 = vmatprep.subr.bf16.mxu0 %v866
    %3421 = vmatpush1.bf16.msra.mxu0 %v865
    %3422 = vmatprep.subr.bf16.mxu0 %v870
    %3423 = vmatpush1.bf16.msra.mxu0 %v869
    %3424 = vmatprep.subr.bf16.mxu0 %v874
    %3425 = vmatpush1.bf16.msra.mxu0 %v873
    %3426 = vmatprep.subr.bf16.mxu0 %v878
    %3427 = vmatpush1.bf16.msra.mxu0 %v877
    %3428 = vmatprep.subr.bf16.mxu0 0
    %3429 = vmatpush1.bf16.msra.mxu0 0
    %3430 = vmatprep.subr.bf16.mxu0 0
    %3431 = vmatpush1.bf16.msra.mxu0 0
    %3432 = vmatprep.subr.bf16.mxu0 0
    %3433 = vmatpush1.bf16.msra.mxu0 0
    %3434 = vmatprep.subr.bf16.mxu0 0
    %3435 = vmatpush1.bf16.msra.mxu0 0
    %3436 = vmatprep.subr.bf16.mxu0 0
    %3437 = vmatpush1.bf16.msra.mxu0 0
    %3438 = vmatprep.subr.bf16.mxu0 0
    %3439 = vmatpush1.bf16.msra.mxu0 0
    %3440 = vmatprep.subr.bf16.mxu0 0
    %3441 = vmatpush1.bf16.msra.mxu0 0
    %3442 = vmatprep.subr.bf16.mxu0 0
    %3443 = vmatpush1.bf16.msra.mxu0 0
    %3444 = vmatprep.mubr.bf16.mxu0 0
    %3445 = vmatmul.mubr.bf16.gmra.mrb[0].mxu0 %v3185
    %v3446 = vpop.f32.mrb[0].mxu0
    %v3447 = vadd.f32 %v3361, %v3446
    %v3448 = vpop.f32.mrb[0].mxu0
    %v3449 = vadd.f32 %v3363, %v3448
    %v3450 = vpop.f32.mrb[0].mxu0
    %v3451 = vadd.f32 %v3365, %v3450
    %v3452 = vpop.f32.mrb[0].mxu0
    %v3453 = vadd.f32 %v3367, %v3452
    %3454 = vdwg.mxu0
    %3455 = vmatprep.subr.bf16.mxu0 %v852
    %3456 = vmatpush1.bf16.msra.mxu0 %v851
    %3457 = vmatprep.subr.bf16.mxu0 %v856
    %3458 = vmatpush1.bf16.msra.mxu0 %v855
    %3459 = vmatprep.subr.bf16.mxu0 %v860
    %3460 = vmatpush1.bf16.msra.mxu0 %v859
    %3461 = vmatprep.subr.bf16.mxu0 %v864
    %3462 = vmatpush1.bf16.msra.mxu0 %v863
    %3463 = vmatprep.subr.bf16.mxu0 %v868
    %3464 = vmatpush1.bf16.msra.mxu0 %v867
    %3465 = vmatprep.subr.bf16.mxu0 %v872
    %3466 = vmatpush1.bf16.msra.mxu0 %v871
    %3467 = vmatprep.subr.bf16.mxu0 %v876
    %3468 = vmatpush1.bf16.msra.mxu0 %v875
    %3469 = vmatprep.subr.bf16.mxu0 %v880
    %3470 = vmatpush1.bf16.msra.mxu0 %v879
    %3471 = vmatprep.subr.bf16.mxu0 0
    %3472 = vmatpush1.bf16.msra.mxu0 0
    %3473 = vmatprep.subr.bf16.mxu0 0
    %3474 = vmatpush1.bf16.msra.mxu0 0
    %3475 = vmatprep.subr.bf16.mxu0 0
    %3476 = vmatpush1.bf16.msra.mxu0 0
    %3477 = vmatprep.subr.bf16.mxu0 0
    %3478 = vmatpush1.bf16.msra.mxu0 0
    %3479 = vmatprep.subr.bf16.mxu0 0
    %3480 = vmatpush1.bf16.msra.mxu0 0
    %3481 = vmatprep.subr.bf16.mxu0 0
    %3482 = vmatpush1.bf16.msra.mxu0 0
    %3483 = vmatprep.subr.bf16.mxu0 0
    %3484 = vmatpush1.bf16.msra.mxu0 0
    %3485 = vmatprep.subr.bf16.mxu0 0
    %3486 = vmatpush1.bf16.msra.mxu0 0
    %3487 = vmatprep.mubr.bf16.mxu0 0
    %3488 = vmatmul.mubr.bf16.gmra.mrb[0].mxu0 %v3185
    %v3489 = vpop.f32.mrb[0].mxu0
    %v3490 = vadd.f32 %v3404, %v3489
    %v3491 = vpop.f32.mrb[0].mxu0
    %v3492 = vadd.f32 %v3406, %v3491
    %v3493 = vpop.f32.mrb[0].mxu0
    %v3494 = vadd.f32 %v3408, %v3493
    %v3495 = vpop.f32.mrb[0].mxu0
    %v3496 = vadd.f32 %v3410, %v3495
    %3497 = vdwg.mxu0
    %v3498 = vadd.f32 %v3447, %v191
    %v3499 = vadd.f32 %v3449, %v195
    %v3500 = vadd.f32 %v3490, %v199
    %v3501 = vadd.f32 %v3492, %v203
    %v3502 = vadd.f32 %v3451, %v191
    %v3503 = vadd.f32 %v3453, %v195
    %v3504 = vadd.f32 %v3494, %v199
    %v3505 = vadd.f32 %v3496, %v203
    %v3506 = vmul.f32 %v3498, 0.5
    %v3507 = vmul.f32 %v3499, 0.5
    %v3508 = vmul.f32 %v3500, 0.5
    %v3509 = vmul.f32 %v3502, 0.5
    %v3510 = vmul.f32 %v3503, 0.5
    %v3511 = vmul.f32 %v3504, 0.5
    %v3512 = vtanh.pop %v3506
    %v3513 = vtanh.pop %v3507
    %v3514 = vtanh.pop %v3508
    %v3515 = vtanh.pop %v3509
    %v3516 = vtanh.pop %v3510
    %v3517 = vtanh.pop %v3511
    %v3518 = vadd.f32 %v3512, 1.0
    %v3519 = vadd.f32 %v3513, 1.0
    %v3520 = vadd.f32 %v3514, 1.0
    %v3521 = vadd.f32 %v3515, 1.0
    %v3522 = vadd.f32 %v3516, 1.0
    %v3523 = vadd.f32 %v3517, 1.0
    %v3524 = vmul.f32 %v3518, 0.5
    %v3525 = vmul.f32 %v3519, 0.5
    %v3526 = vmul.f32 %v3520, 0.5
    %v3527 = vmul.f32 %v3521, 0.5
    %v3528 = vmul.f32 %v3522, 0.5
    %v3529 = vmul.f32 %v3523, 0.5
    %v3530 = vtanh.pop %v3501
    %v3531 = vtanh.pop %v3505
    %v3532 = vmul.f32 %v3525, %v3179
    %v3533 = vmul.f32 %v3528, %v3180
    %v3534 = vmul.f32 %v3524, %v3530
    %v3535 = vmul.f32 %v3527, %v3531
    %v3536 = vadd.f32 %v3532, %v3534
    %v3537 = vadd.f32 %v3533, %v3535
    %v3538 = vtanh.pop %v3536
    %v3539 = vtanh.pop %v3537
    %v3540 = vmul.f32 %v3526, %v3538
    %v3541 = vmul.f32 %v3529, %v3539
    %v3542 = vpack.c.bf16 %v3541, %v3540
    %v3543 = vld [vmem:[%s5] sm:$0xf]
    %v3544 = vld [vmem:[%s5 + $0x4] sm:$0xf]
    %v3545 = vld [vmem:[%s5 + $0x8] sm:$0xf]
    %v3546 = vld [vmem:[%s5 + $0xc] sm:$0xf]
    %v3547 = vld [vmem:[%s5 + $0x10] sm:$0xf]
    %v3548 = vld [vmem:[%s5 + $0x14] sm:$0xf]
    %v3549 = vld [vmem:[%s5 + $0x18] sm:$0xf]
    %v3550 = vld [vmem:[%s5 + $0x1c] sm:$0xf]
    %v3551 = vld [vmem:[%s5 + $0x20] sm:$0xf]
    %v3552 = vld [vmem:[%s5 + $0x24] sm:$0xf]
    %v3553 = vld [vmem:[%s5 + $0x28] sm:$0xf]
    %v3554 = vld [vmem:[%s5 + $0x2c] sm:$0xf]
    %v3555 = vld [vmem:[%s5 + $0x30] sm:$0xf]
    %v3556 = vld [vmem:[%s5 + $0x34] sm:$0xf]
    %v3557 = vld [vmem:[%s5 + $0x38] sm:$0xf]
    %v3558 = vld [vmem:[%s5 + $0x3c] sm:$0xf]
    %s3559 = sld [smem:[#allocation2]]
    %v3560 = vstv %s3559
    %v3577 = vunpack.c.l.b16 %v3543
    %v3578 = vunpack.c.l.b16 %v3544
    %v3579 = vunpack.c.l.b16 %v3545
    %v3580 = vunpack.c.l.b16 %v3546
    %v3581 = vunpack.c.l.b16 %v3547
    %v3582 = vunpack.c.l.b16 %v3548
    %v3583 = vunpack.c.l.b16 %v3549
    %v3584 = vunpack.c.l.b16 %v3550
    %v3585 = vunpack.c.l.b16 %v3551
    %v3586 = vunpack.c.l.b16 %v3552
    %v3587 = vunpack.c.l.b16 %v3553
    %v3588 = vunpack.c.l.b16 %v3554
    %v3589 = vunpack.c.l.b16 %v3555
    %v3590 = vunpack.c.l.b16 %v3556
    %v3591 = vunpack.c.l.b16 %v3557
    %v3592 = vunpack.c.l.b16 %v3558
    %v3593 = vpack.c.b16 %v3578, %v3577
    %v3594 = vpack.c.b16 %v3580, %v3579
    %v3595 = vpack.c.b16 %v3582, %v3581
    %v3596 = vpack.c.b16 %v3584, %v3583
    %v3597 = vpack.c.b16 %v3586, %v3585
    %v3598 = vpack.c.b16 %v3588, %v3587
    %v3599 = vpack.c.b16 %v3590, %v3589
    %v3600 = vpack.c.b16 %v3592, %v3591
    %3609 = vmatprep.subr.bf16.mxu0 0
    %3610 = vmatpush1.bf16.msra.mxu0 %v3593
    %3611 = vmatprep.subr.bf16.mxu0 0
    %3612 = vmatpush1.bf16.msra.mxu0 %v3594
    %3613 = vmatprep.subr.bf16.mxu0 0
    %3614 = vmatpush1.bf16.msra.mxu0 %v3595
    %3615 = vmatprep.subr.bf16.mxu0 0
    %3616 = vmatpush1.bf16.msra.mxu0 %v3596
    %3617 = vmatprep.subr.bf16.mxu0 0
    %3618 = vmatpush1.bf16.msra.mxu0 %v3597
    %3619 = vmatprep.subr.bf16.mxu0 0
    %3620 = vmatpush1.bf16.msra.mxu0 %v3598
    %3621 = vmatprep.subr.bf16.mxu0 0
    %3622 = vmatpush1.bf16.msra.mxu0 %v3599
    %3623 = vmatprep.subr.bf16.mxu0 0
    %3624 = vmatpush1.bf16.msra.mxu0 %v3600
    %3625 = vmatprep.subr.bf16.mxu0 0
    %3626 = vmatpush1.bf16.msra.mxu0 0
    %3627 = vmatprep.subr.bf16.mxu0 0
    %3628 = vmatpush1.bf16.msra.mxu0 0
    %3629 = vmatprep.subr.bf16.mxu0 0
    %3630 = vmatpush1.bf16.msra.mxu0 0
    %3631 = vmatprep.subr.bf16.mxu0 0
    %3632 = vmatpush1.bf16.msra.mxu0 0
    %3633 = vmatprep.subr.bf16.mxu0 0
    %3634 = vmatpush1.bf16.msra.mxu0 0
    %3635 = vmatprep.subr.bf16.mxu0 0
    %3636 = vmatpush1.bf16.msra.mxu0 0
    %3637 = vmatprep.subr.bf16.mxu0 0
    %3638 = vmatpush1.bf16.msra.mxu0 0
    %3639 = vmatprep.subr.bf16.mxu0 0
    %3640 = vmatpush1.bf16.msra.mxu0 0
    %3641 = vmatprep.mubr.bf16.mxu0 0
    %3642 = vmatmul.mubr.bf16.gmra.mrb[0].mxu0 %v1043
    %v3643 = vpop.f32.mrb[0].mxu0
    %v3644 = vadd.f32 %v3560, %v3643
    %v3645 = vpop.f32.mrb[0].mxu0
    %v3646 = vpop.f32.mrb[0].mxu0
    %v3647 = vadd.f32 %v3560, %v3646
    %v3648 = vpop.f32.mrb[0].mxu0
    %3649 = vmatprep.mubr.bf16.mxu0 0
    %3650 = vmatmul.mubr.bf16.gmra.mrb[0].mxu0 %v1400
    %v3651 = vpop.f32.mrb[0].mxu0
    %v3652 = vadd.f32 %v3560, %v3651
    %v3653 = vpop.f32.mrb[0].mxu0
    %v3654 = vpop.f32.mrb[0].mxu0
    %v3655 = vadd.f32 %v3560, %v3654
    %v3656 = vpop.f32.mrb[0].mxu0
    %3657 = vmatprep.mubr.bf16.mxu0 0
    %3658 = vmatmul.mubr.bf16.gmra.mrb[0].mxu0 %v1757
    %v3659 = vpop.f32.mrb[0].mxu0
    %v3660 = vadd.f32 %v3560, %v3659
    %v3661 = vpop.f32.mrb[0].mxu0
    %v3662 = vpop.f32.mrb[0].mxu0
    %v3663 = vadd.f32 %v3560, %v3662
    %v3664 = vpop.f32.mrb[0].mxu0
    %3665 = vmatprep.mubr.bf16.mxu0 0
    %3666 = vmatmul.mubr.bf16.gmra.mrb[0].mxu0 %v2114
    %v3667 = vpop.f32.mrb[0].mxu0
    %v3668 = vadd.f32 %v3560, %v3667
    %v3669 = vpop.f32.mrb[0].mxu0
    %v3670 = vpop.f32.mrb[0].mxu0
    %v3671 = vadd.f32 %v3560, %v3670
    %v3672 = vpop.f32.mrb[0].mxu0
    %3673 = vmatprep.mubr.bf16.mxu0 0
    %3674 = vmatmul.mubr.bf16.gmra.mrb[0].mxu0 %v2471
    %v3675 = vpop.f32.mrb[0].mxu0
    %v3676 = vadd.f32 %v3560, %v3675
    %v3677 = vpop.f32.mrb[0].mxu0
    %v3678 = vpop.f32.mrb[0].mxu0
    %v3679 = vadd.f32 %v3560, %v3678
    %v3680 = vpop.f32.mrb[0].mxu0
    %3681 = vmatprep.mubr.bf16.mxu0 0
    %3682 = vmatmul.mubr.bf16.gmra.mrb[0].mxu0 %v2828
    %v3683 = vpop.f32.mrb[0].mxu0
    %v3684 = vadd.f32 %v3560, %v3683
    %v3685 = vpop.f32.mrb[0].mxu0
    %v3686 = vpop.f32.mrb[0].mxu0
    %v3687 = vadd.f32 %v3560, %v3686
    %v3688 = vpop.f32.mrb[0].mxu0
    %3689 = vmatprep.mubr.bf16.mxu0 0
    %3690 = vmatmul.mubr.bf16.gmra.mrb[0].mxu0 %v3185
    %v3691 = vpop.f32.mrb[0].mxu0
    %v3692 = vadd.f32 %v3560, %v3691
    %v3693 = vpop.f32.mrb[0].mxu0
    %v3694 = vpop.f32.mrb[0].mxu0
    %v3695 = vadd.f32 %v3560, %v3694
    %v3696 = vpop.f32.mrb[0].mxu0
    %3697 = vmatprep.mubr.bf16.mxu0 0
    %3698 = vmatmul.mubr.bf16.gmra.mrb[0].mxu0 %v3542
    %v3699 = vpop.f32.mrb[0].mxu0
    %v3700 = vadd.f32 %v3560, %v3699
    %v3701 = vpop.f32.mrb[0].mxu0
    %v3702 = vpop.f32.mrb[0].mxu0
    %v3703 = vadd.f32 %v3560, %v3702
    %v3704 = vpop.f32.mrb[0].mxu0
    %3705 = vdwg.mxu0
    %vm3706 = vcmask 7168
    %v3707 = vsel %vm3706, %v3644, -inf
    %v3708 = vsel %vm3706, %v3652, -inf
    %v3709 = vsel %vm3706, %v3660, -inf
    %v3710 = vmax.f32 %v3707, %v3709
    %v3711 = vsel %vm3706, %v3668, -inf
    %v3712 = vmax.f32 %v3708, %v3711
    %v3713 = vsel %vm3706, %v3676, -inf
    %v3714 = vmax.f32 %v3710, %v3713
    %v3715 = vsel %vm3706, %v3684, -inf
    %v3716 = vmax.f32 %v3712, %v3715
    %v3717 = vsel %vm3706, %v3692, -inf
    %v3718 = vmax.f32 %v3714, %v3717
    %v3719 = vsel %vm3706, %v3700, -inf
    %v3720 = vmax.f32 %v3716, %v3719
    %v3721 = vmax.f32 %v3718, %v3720
    %v3722 = vsel %vm3706, %v3647, -inf
    %v3723 = vsel %vm3706, %v3655, -inf
    %v3724 = vsel %vm3706, %v3663, -inf
    %v3725 = vmax.f32 %v3722, %v3724
    %v3726 = vsel %vm3706, %v3671, -inf
    %v3727 = vmax.f32 %v3723, %v3726
    %v3728 = vsel %vm3706, %v3679, -inf
    %v3729 = vmax.f32 %v3725, %v3728
    %v3730 = vsel %vm3706, %v3687, -inf
    %v3731 = vmax.f32 %v3727, %v3730
    %v3732 = vsel %vm3706, %v3695, -inf
    %v3733 = vmax.f32 %v3729, %v3732
    %v3734 = vsel %vm3706, %v3703, -inf
    %v3735 = vmax.f32 %v3731, %v3734
    %v3736 = vmax.f32 %v3733, %v3735
    %v3737 = vsub.f32 %v3644, %v3721
    %v3738 = vsub.f32 %v3647, %v3736
    %v3739 = vsub.f32 %v3652, %v3721
    %v3740 = vsub.f32 %v3655, %v3736
    %v3741 = vsub.f32 %v3660, %v3721
    %v3742 = vsub.f32 %v3663, %v3736
    %v3743 = vsub.f32 %v3668, %v3721
    %v3744 = vsub.f32 %v3671, %v3736
    %v3745 = vsub.f32 %v3676, %v3721
    %v3746 = vsub.f32 %v3679, %v3736
    %v3747 = vsub.f32 %v3684, %v3721
    %v3748 = vsub.f32 %v3687, %v3736
    %v3749 = vsub.f32 %v3692, %v3721
    %v3750 = vsub.f32 %v3695, %v3736
    %v3751 = vsub.f32 %v3700, %v3721
    %v3752 = vsub.f32 %v3703, %v3736
    %v3753 = vmul.f32 %v3737, 1.442695
    %v3754 = vpow.pop %v3753
    %v3755 = vmul.f32 %v3738, 1.442695
    %v3756 = vpow.pop %v3755
    %v3757 = vmul.f32 %v3739, 1.442695
    %v3758 = vpow.pop %v3757
    %v3759 = vmul.f32 %v3740, 1.442695
    %v3760 = vpow.pop %v3759
    %v3761 = vmul.f32 %v3741, 1.442695
    %v3762 = vpow.pop %v3761
    %v3763 = vmul.f32 %v3742, 1.442695
    %v3764 = vpow.pop %v3763
    %v3765 = vmul.f32 %v3743, 1.442695
    %v3766 = vpow.pop %v3765
    %v3767 = vmul.f32 %v3744, 1.442695
    %v3768 = vpow.pop %v3767
    %v3769 = vmul.f32 %v3745, 1.442695
    %v3770 = vpow.pop %v3769
    %v3771 = vmul.f32 %v3746, 1.442695
    %v3772 = vpow.pop %v3771
    %v3773 = vmul.f32 %v3747, 1.442695
    %v3774 = vpow.pop %v3773
    %v3775 = vmul.f32 %v3748, 1.442695
    %v3776 = vpow.pop %v3775
    %v3777 = vmul.f32 %v3749, 1.442695
    %v3778 = vpow.pop %v3777
    %v3779 = vmul.f32 %v3750, 1.442695
    %v3780 = vpow.pop %v3779
    %v3781 = vmul.f32 %v3751, 1.442695
    %v3782 = vpow.pop %v3781
    %v3783 = vmul.f32 %v3752, 1.442695
    %v3784 = vpow.pop %v3783
    %v3785 = vsel %vm3706, %v3754, 0.0
    %v3786 = vsel %vm3706, %v3758, 0.0
    %v3787 = vadd.f32 %v3785, %v3786
    %v3788 = vsel %vm3706, %v3762, 0.0
    %v3789 = vadd.f32 %v3787, %v3788
    %v3790 = vsel %vm3706, %v3766, 0.0
    %v3791 = vadd.f32 %v3789, %v3790
    %v3792 = vsel %vm3706, %v3770, 0.0
    %v3793 = vadd.f32 %v3791, %v3792
    %v3794 = vsel %vm3706, %v3774, 0.0
    %v3795 = vadd.f32 %v3793, %v3794
    %v3796 = vsel %vm3706, %v3778, 0.0
    %v3797 = vadd.f32 %v3795, %v3796
    %v3798 = vsel %vm3706, %v3782, 0.0
    %v3799 = vadd.f32 %v3797, %v3798
    %v3800 = vsel %vm3706, %v3756, 0.0
    %v3801 = vsel %vm3706, %v3760, 0.0
    %v3802 = vadd.f32 %v3800, %v3801
    %v3803 = vsel %vm3706, %v3764, 0.0
    %v3804 = vadd.f32 %v3802, %v3803
    %v3805 = vsel %vm3706, %v3768, 0.0
    %v3806 = vadd.f32 %v3804, %v3805
    %v3807 = vsel %vm3706, %v3772, 0.0
    %v3808 = vadd.f32 %v3806, %v3807
    %v3809 = vsel %vm3706, %v3776, 0.0
    %v3810 = vadd.f32 %v3808, %v3809
    %v3811 = vsel %vm3706, %v3780, 0.0
    %v3812 = vadd.f32 %v3810, %v3811
    %v3813 = vsel %vm3706, %v3784, 0.0
    %v3814 = vadd.f32 %v3812, %v3813
    %v3815 = vrcp.pop %v3799
    %v3816 = vrcp.pop %v3814
    %v3817 = vmul.f32 %v3754, %v3815
    %v3818 = vmul.f32 %v3756, %v3816
    %v3819 = vmul.f32 %v3758, %v3815
    %v3820 = vmul.f32 %v3760, %v3816
    %v3821 = vmul.f32 %v3762, %v3815
    %v3822 = vmul.f32 %v3764, %v3816
    %v3823 = vmul.f32 %v3766, %v3815
    %v3824 = vmul.f32 %v3768, %v3816
    %v3825 = vmul.f32 %v3770, %v3815
    %v3826 = vmul.f32 %v3772, %v3816
    %v3827 = vmul.f32 %v3774, %v3815
    %v3828 = vmul.f32 %v3776, %v3816
    %v3829 = vmul.f32 %v3778, %v3815
    %v3830 = vmul.f32 %v3780, %v3816
    %v3831 = vmul.f32 %v3782, %v3815
    %v3832 = vmul.f32 %v3784, %v3816
    %3834 = vset.pattern.permute.xlu0 0
    %3835 = vperm.xlu0 %3834, %v3817
    %v3836 = vpop.permute.xlu0 %3835
    %3839 = vset.pattern.permute.xlu0 0
    %3840 = vperm.xlu0 %3839, %v3818
    %v3841 = vpop.permute.xlu0 %3840
    %v3843 = vmul.f32 %v3836, %v1041
    %v3844 = vmul.f32 %v3841, %v1042
    %v3845 = vadd.f32 %v3843, 0.0
    %v3846 = vadd.f32 %v3844, 0.0
    %3848 = vset.pattern.permute.xlu0 0
    %3849 = vperm.xlu0 %3848, %v3819
    %v3850 = vpop.permute.xlu0 %3849
    %3853 = vset.pattern.permute.xlu0 0
    %3854 = vperm.xlu0 %3853, %v3820
    %v3855 = vpop.permute.xlu0 %3854
    %v3857 = vmul.f32 %v3850, %v1398
    %v3858 = vmul.f32 %v3855, %v1399
    %v3859 = vadd.f32 %v3845, %v3857
    %v3860 = vadd.f32 %v3846, %v3858
    %3862 = vset.pattern.permute.xlu0 0
    %3863 = vperm.xlu0 %3862, %v3821
    %v3864 = vpop.permute.xlu0 %3863
    %3867 = vset.pattern.permute.xlu0 0
    %3868 = vperm.xlu0 %3867, %v3822
    %v3869 = vpop.permute.xlu0 %3868
    %v3871 = vmul.f32 %v3864, %v1755
    %v3872 = vmul.f32 %v3869, %v1756
    %v3873 = vadd.f32 %v3859, %v3871
    %v3874 = vadd.f32 %v3860, %v3872
    %3876 = vset.pattern.permute.xlu0 0
    %3877 = vperm.xlu0 %3876, %v3823
    %v3878 = vpop.permute.xlu0 %3877
    %3881 = vset.pattern.permute.xlu0 0
    %3882 = vperm.xlu0 %3881, %v3824
    %v3883 = vpop.permute.xlu0 %3882
    %v3885 = vmul.f32 %v3878, %v2112
    %v3886 = vmul.f32 %v3883, %v2113
    %v3887 = vadd.f32 %v3873, %v3885
    %v3888 = vadd.f32 %v3874, %v3886
    %3890 = vset.pattern.permute.xlu0 0
    %3891 = vperm.xlu0 %3890, %v3825
    %v3892 = vpop.permute.xlu0 %3891
    %3895 = vset.pattern.permute.xlu0 0
    %3896 = vperm.xlu0 %3895, %v3826
    %v3897 = vpop.permute.xlu0 %3896
    %v3899 = vmul.f32 %v3892, %v2469
    %v3900 = vmul.f32 %v3897, %v2470
    %v3901 = vadd.f32 %v3887, %v3899
    %v3902 = vadd.f32 %v3888, %v3900
    %3904 = vset.pattern.permute.xlu0 0
    %3905 = vperm.xlu0 %3904, %v3827
    %v3906 = vpop.permute.xlu0 %3905
    %3909 = vset.pattern.permute.xlu0 0
    %3910 = vperm.xlu0 %3909, %v3828
    %v3911 = vpop.permute.xlu0 %3910
    %v3913 = vmul.f32 %v3906, %v2826
    %v3914 = vmul.f32 %v3911, %v2827
    %v3915 = vadd.f32 %v3901, %v3913
    %v3916 = vadd.f32 %v3902, %v3914
    %3918 = vset.pattern.permute.xlu0 0
    %3919 = vperm.xlu0 %3918, %v3829
    %v3920 = vpop.permute.xlu0 %3919
    %3923 = vset.pattern.permute.xlu0 0
    %3924 = vperm.xlu0 %3923, %v3830
    %v3925 = vpop.permute.xlu0 %3924
    %v3927 = vmul.f32 %v3920, %v3183
    %v3928 = vmul.f32 %v3925, %v3184
    %v3929 = vadd.f32 %v3915, %v3927
    %v3930 = vadd.f32 %v3916, %v3928
    %3932 = vset.pattern.permute.xlu0 0
    %3933 = vperm.xlu0 %3932, %v3831
    %v3934 = vpop.permute.xlu0 %3933
    %3937 = vset.pattern.permute.xlu0 0
    %3938 = vperm.xlu0 %3937, %v3832
    %v3939 = vpop.permute.xlu0 %3938
    %v3941 = vmul.f32 %v3934, %v3540
    %v3942 = vmul.f32 %v3939, %v3541
    %v3943 = vadd.f32 %v3929, %v3941
    %v3944 = vadd.f32 %v3930, %v3942
    %v3945 = vpack.c.bf16 %v3944, %v3943
    %v3946 = vld [vmem:[%s7] sm:$0xf]
    %v3947 = vld [vmem:[%s7 + $0x4] sm:$0xf]
    %v3948 = vld [vmem:[%s7 + $0x8] sm:$0xf]
    %v3949 = vld [vmem:[%s7 + $0xc] sm:$0xf]
    %v3950 = vld [vmem:[%s7 + $0x10] sm:$0xf]
    %v3951 = vld [vmem:[%s7 + $0x14] sm:$0xf]
    %v3952 = vld [vmem:[%s7 + $0x18] sm:$0xf]
    %v3953 = vld [vmem:[%s7 + $0x1c] sm:$0xf]
    %v3954 = vld [vmem:[%s7 + $0x20] sm:$0xf]
    %v3955 = vld [vmem:[%s7 + $0x24] sm:$0xf]
    %v3956 = vld [vmem:[%s7 + $0x28] sm:$0xf]
    %v3957 = vld [vmem:[%s7 + $0x2c] sm:$0xf]
    %v3958 = vld [vmem:[%s7 + $0x30] sm:$0xf]
    %v3959 = vld [vmem:[%s7 + $0x34] sm:$0xf]
    %v3960 = vld [vmem:[%s7 + $0x38] sm:$0xf]
    %v3961 = vld [vmem:[%s7 + $0x3c] sm:$0xf]
    %s3962 = sld [smem:[#allocation3]]
    %v3963 = vstv %s3962
    %v3980 = vunpack.c.l.b16 %v3946
    %v3981 = vunpack.c.l.b16 %v3947
    %v3982 = vunpack.c.l.b16 %v3948
    %v3983 = vunpack.c.l.b16 %v3949
    %v3984 = vunpack.c.l.b16 %v3950
    %v3985 = vunpack.c.l.b16 %v3951
    %v3986 = vunpack.c.l.b16 %v3952
    %v3987 = vunpack.c.l.b16 %v3953
    %v3988 = vunpack.c.l.b16 %v3954
    %v3989 = vunpack.c.l.b16 %v3955
    %v3990 = vunpack.c.l.b16 %v3956
    %v3991 = vunpack.c.l.b16 %v3957
    %v3992 = vunpack.c.l.b16 %v3958
    %v3993 = vunpack.c.l.b16 %v3959
    %v3994 = vunpack.c.l.b16 %v3960
    %v3995 = vunpack.c.l.b16 %v3961
    %v3996 = vpack.c.b16 %v3981, %v3980
    %v3997 = vpack.c.b16 %v3983, %v3982
    %v3998 = vpack.c.b16 %v3985, %v3984
    %v3999 = vpack.c.b16 %v3987, %v3986
    %v4000 = vpack.c.b16 %v3989, %v3988
    %v4001 = vpack.c.b16 %v3991, %v3990
    %v4002 = vpack.c.b16 %v3993, %v3992
    %v4003 = vpack.c.b16 %v3995, %v3994
    %4012 = vmatprep.subr.bf16.mxu0 0
    %4013 = vmatpush1.bf16.msra.mxu0 %v3996
    %4014 = vmatprep.subr.bf16.mxu0 0
    %4015 = vmatpush1.bf16.msra.mxu0 %v3997
    %4016 = vmatprep.subr.bf16.mxu0 0
    %4017 = vmatpush1.bf16.msra.mxu0 %v3998
    %4018 = vmatprep.subr.bf16.mxu0 0
    %4019 = vmatpush1.bf16.msra.mxu0 %v3999
    %4020 = vmatprep.subr.bf16.mxu0 0
    %4021 = vmatpush1.bf16.msra.mxu0 %v4000
    %4022 = vmatprep.subr.bf16.mxu0 0
    %4023 = vmatpush1.bf16.msra.mxu0 %v4001
    %4024 = vmatprep.subr.bf16.mxu0 0
    %4025 = vmatpush1.bf16.msra.mxu0 %v4002
    %4026 = vmatprep.subr.bf16.mxu0 0
    %4027 = vmatpush1.bf16.msra.mxu0 %v4003
    %4028 = vmatprep.subr.bf16.mxu0 0
    %4029 = vmatpush1.bf16.msra.mxu0 0
    %4030 = vmatprep.subr.bf16.mxu0 0
    %4031 = vmatpush1.bf16.msra.mxu0 0
    %4032 = vmatprep.subr.bf16.mxu0 0
    %4033 = vmatpush1.bf16.msra.mxu0 0
    %4034 = vmatprep.subr.bf16.mxu0 0
    %4035 = vmatpush1.bf16.msra.mxu0 0
    %4036 = vmatprep.subr.bf16.mxu0 0
    %4037 = vmatpush1.bf16.msra.mxu0 0
    %4038 = vmatprep.subr.bf16.mxu0 0
    %4039 = vmatpush1.bf16.msra.mxu0 0
    %4040 = vmatprep.subr.bf16.mxu0 0
    %4041 = vmatpush1.bf16.msra.mxu0 0
    %4042 = vmatprep.subr.bf16.mxu0 0
    %4043 = vmatpush1.bf16.msra.mxu0 0
    %4044 = vmatprep.mubr.bf16.mxu0 0
    %4045 = vmatmul.mubr.bf16.gmra.mrb[0].mxu0 %v3945
    %v4046 = vpop.f32.mrb[0].mxu0
    %v4047 = vadd.f32 %v3963, %v4046
    %v4048 = vpop.f32.mrb[0].mxu0
    %v4049 = vpop.f32.mrb[0].mxu0
    %v4050 = vadd.f32 %v3963, %v4049
    %v4051 = vpop.f32.mrb[0].mxu0
    %4052 = vdwg.mxu0
    %4053 = vst.msk [vmem:[%s9] sm:$0xff] %vm3706, %v4047
    %4054 = vst.msk [vmem:[%s9 + $0x8] sm:$0xff] %vm3706, %v4050
    // Predicated region
    $region54: #{tpu_custom_call.1} parent=1 // pred_check
      _
    $region55: #{tpu_custom_call.1} parent=1 // pred_check_branch
      %4056 = sbr.rel (0) target = $region57
    $region56: #{tpu_custom_call.1} parent=1 // pred_region
      _
    $region57: #{tpu_custom_call.1} parent=1 // pred_fallthru
      _
    // Predicated region
    $region58: #{tpu_custom_call.1} parent=1 // pred_check
      _
    $region59: #{tpu_custom_call.1} parent=1 // pred_check_branch
      %4058 = sbr.rel (0) target = $region61
    $region60: #{tpu_custom_call.1} parent=1 // pred_region
      _
    $region61: #{tpu_custom_call.1} parent=1 // pred_fallthru
      _
    %4059 = vsyncpa [#allocation5], 1
    %4060 = vsyncpa [#allocation7], 1
    %4061 = vsyncpa [#allocation10], 1

</llo_original>
